<compile_context>
chip_gen: v7x
topology: tpu7x:2x2x1
jax: 0.10.0
libtpu: 0.0.40
codegen_flags: <defaults>
</compile_context>

<pallas_src>
import functools
import math

import jax
import jax.numpy as jnp
from jax.experimental import pallas as pl
from jax.experimental.pallas import tpu as pltpu


# -----------------------------------------------------------------------------
# Config (small, deterministic)
# -----------------------------------------------------------------------------
class Config:
    vocab_size = 64
    d_model = 32
    max_len = 16
    num_heads = 4
    num_layers = 2


LN_EPS = 1e-5
APPROX_RECIPROCAL = True   # exact-division fallback for the softmax denominator


# -----------------------------------------------------------------------------
# Pallas kernel: full transformer stack + LM head for one batch row-block
# -----------------------------------------------------------------------------
def _layernorm(x, gamma, beta):
    # x: (S, D) f32; gamma/beta: (1, D) f32
    mu = jnp.mean(x, axis=-1, keepdims=True)
    var = jnp.mean((x - mu) ** 2, axis=-1, keepdims=True)
    return (x - mu) * jax.lax.rsqrt(var + LN_EPS) * gamma + beta


def transformer_kernel(x_ref,
                       ln1_g_ref, ln1_b_ref, wq_ref, wk_ref, wv_ref, wo_ref,
                       ln2_g_ref, ln2_b_ref, w1_ref, b1_ref, w2_ref, b2_ref,
                       w_head_ref,
                       o_ref,
                       *, heads, layers):
    """x_ref: (S, D) residual stream for one batch element (grid axis 0 = batch).

    Weight refs carry a leading layer axis (L, ...) indexed with a static Python
    layer index; matmul weights are bf16, LN params / biases are f32.
    """
    x = x_ref[...]                                   # (S, D) f32 residual stream
    S, D = x.shape
    hd = D // heads

    # Plain causal mask per program (batch element) — no block-diagonal construction.
    row = jax.lax.broadcasted_iota(jnp.int32, (S, S), 0)
    col = jax.lax.broadcasted_iota(jnp.int32, (S, S), 1)
    causal = (row >= col)[None, :, :]                # (1, S, S)
    neg_inf = jnp.float32(-1e30)

    for l in range(layers):                          # static unroll (L=2)
        # ---- attention sub-layer (pre-LN) ----------------------------------
        xn = _layernorm(x, ln1_g_ref[l], ln1_b_ref[l]).astype(jnp.bfloat16)
        # 1/sqrt(hd) already folded into wq at weight-prep time.
        q = jnp.dot(xn, wq_ref[l], preferred_element_type=jnp.float32)   # (S, D)
        k = jnp.dot(xn, wk_ref[l], preferred_element_type=jnp.float32)
        v = jnp.dot(xn, wv_ref[l], preferred_element_type=jnp.float32)

        # Heads-batched contraction (no per-head lane slices, no lane concat).
        qh = jnp.swapaxes(q.reshape(S, heads, hd), 0, 1).astype(jnp.bfloat16)  # (H,S,hd)
        kh = jnp.swapaxes(k.reshape(S, heads, hd), 0, 1).astype(jnp.bfloat16)
        vh = jnp.swapaxes(v.reshape(S, heads, hd), 0, 1).astype(jnp.bfloat16)

        s = jnp.einsum('hqd,hkd->hqk', qh, kh,
                       preferred_element_type=jnp.float32)               # (H,S,S) f32
        s = jnp.where(causal, s, neg_inf)
        m = jnp.max(s, axis=-1, keepdims=True)
        p = jnp.exp(s - m)                                               # f32 softmax math
        denom = jnp.sum(p, axis=-1, keepdims=True)
        if APPROX_RECIPROCAL:
            p = p * pl.reciprocal(denom, approx=True)
        else:
            p = p / denom
        ctx = jnp.einsum('hqk,hkd->hqd', p.astype(jnp.bfloat16), vh,
                         preferred_element_type=jnp.float32)             # (H,S,hd)
        attn = jnp.swapaxes(ctx, 0, 1).reshape(S, D).astype(jnp.bfloat16)
        x = x + jnp.dot(attn, wo_ref[l], preferred_element_type=jnp.float32)

        # ---- feed-forward sub-layer (pre-LN) --------------------------------
        xn2 = _layernorm(x, ln2_g_ref[l], ln2_b_ref[l]).astype(jnp.bfloat16)
        h1 = jnp.dot(xn2, w1_ref[l], preferred_element_type=jnp.float32) + b1_ref[l]
        h1 = jnp.maximum(h1, 0.0).astype(jnp.bfloat16)
        x = x + jnp.dot(h1, w2_ref[l], preferred_element_type=jnp.float32) + b2_ref[l]

    # ---- LM head (output padded to 128 lanes => unmasked full-width stores) ---
    o_ref[...] = jnp.dot(x.astype(jnp.bfloat16), w_head_ref[...],
                         preferred_element_type=jnp.float32)


# -----------------------------------------------------------------------------
# One-time weight prep: stack layers, split qkv, fold scale, cast bf16, pad head
# -----------------------------------------------------------------------------
def prepare_kernel_params(params, cfg):
    D, H = cfg.d_model, cfg.num_heads
    hd = D // H
    scale = 1.0 / math.sqrt(hd)
    st = {k: jnp.stack([blk[k] for blk in params["blocks"]], axis=0)
          for k in params["blocks"][0]}
    wqkv = st["wqkv"]                                         # (L, D, 3D), (in, out)
    bf = lambda a: a.astype(jnp.bfloat16)
    v_pad = ((cfg.vocab_size + 127) // 128) * 128
    w_head_pad = jnp.zeros((D, v_pad), jnp.float32).at[:, :cfg.vocab_size].set(
        params["w_head"])
    return dict(
        ln1_g=st["ln1_g"], ln1_b=st["ln1_b"],
        wq=bf(wqkv[:, :, 0 * D:1 * D] * scale),               # scale folded into Q weights
        wk=bf(wqkv[:, :, 1 * D:2 * D]),
        wv=bf(wqkv[:, :, 2 * D:3 * D]),
        wo=bf(st["wo"]),
        ln2_g=st["ln2_g"], ln2_b=st["ln2_b"],
        w1=bf(st["w1"]), b1=st["b1"], w2=bf(st["w2"]), b2=st["b2"],
        w_head=bf(w_head_pad),
    )


# -----------------------------------------------------------------------------
# Wrapper: embedding gather (plain JAX) + single pallas_call over grid=(B,)
# -----------------------------------------------------------------------------
def transformer_forward(params, kp, input_ids, cfg):
    B, S = input_ids.shape
    D, V = cfg.d_model, cfg.vocab_size
    L, H = cfg.num_layers, cfg.num_heads
    v_pad = kp["w_head"].shape[1]

    # TODO(synk): nn.Embedding gather stays in plain JAX (no clean Pallas gather here).
    positions = jnp.arange(S, dtype=jnp.int32)
    x = params["tok_emb"][input_ids] + params["pos_emb"][positions][None, :, :]
    x2d = x.reshape(B * S, D).astype(jnp.float32)

    def full(arr):
        nd = arr.ndim
        return pl.BlockSpec(arr.shape, lambda b, _nd=nd: (0,) * _nd)

    weight_order = ["ln1_g", "ln1_b", "wq", "wk", "wv", "wo",
                    "ln2_g", "ln2_b", "w1", "b1", "w2", "b2", "w_head"]
    weights = [kp[k] for k in weight_order]

    logits_pad = pl.pallas_call(
        functools.partial(transformer_kernel, heads=H, layers=L),
        out_shape=jax.ShapeDtypeStruct((B * S, v_pad), jnp.float32),
        grid=(B,),
        in_specs=[pl.BlockSpec((S, D), lambda b: (b, 0))] + [full(w) for w in weights],
        out_specs=pl.BlockSpec((S, v_pad), lambda b: (b, 0)),
        compiler_params=pltpu.CompilerParams(dimension_semantics=("parallel",)),
    )(x2d, *weights)

    return logits_pad[:, :V].reshape(B, S, V)


# -----------------------------------------------------------------------------
# Parameter init (deterministic; Linear weights pre-transposed to (in, out))
# -----------------------------------------------------------------------------
def init_params(cfg, key):
    D, V, L = cfg.d_model, cfg.vocab_size, cfg.num_layers
    keys = jax.random.split(key, 3 + 6 * L)
    it = iter(keys)
    nrm = lambda k, shape, s=0.02: (s * jax.random.normal(k, shape)).astype(jnp.float32)

    params = {
        "tok_emb": nrm(next(it), (V, D)),
        "pos_emb": nrm(next(it), (cfg.max_len, D)),
        "w_head": nrm(next(it), (D, V)),     # (in, out) layout
        "blocks": [],
    }
    for _ in range(L):
        params["blocks"].append({
            "ln1_g": jnp.ones((1, D), jnp.float32),
            "ln1_b": jnp.zeros((1, D), jnp.float32),
            "wqkv": nrm(next(it), (D, 3 * D)),
            "wo": nrm(next(it), (D, D)),
            "ln2_g": jnp.ones((1, D), jnp.float32),
            "ln2_b": jnp.zeros((1, D), jnp.float32),
            "w1": nrm(next(it), (D, 4 * D)),
            "b1": nrm(next(it), (1, 4 * D)),
            "w2": nrm(next(it), (4 * D, D)),
            "b2": nrm(next(it), (1, D)),
        })
    return params


# -----------------------------------------------------------------------------
# Pure-JAX f32 reference (mirrors the PyTorch module)
# -----------------------------------------------------------------------------
def reference_forward(params, input_ids, cfg):
    B, S = input_ids.shape
    D, H = cfg.d_model, cfg.num_heads
    hd = D // H
    x = params["tok_emb"][input_ids] + params["pos_emb"][jnp.arange(S)][None]

    def ln(x, g, b):
        mu = x.mean(-1, keepdims=True)
        var = ((x - mu) ** 2).mean(-1, keepdims=True)
        return (x - mu) / jnp.sqrt(var + LN_EPS) * g + b

    for bp in params["blocks"]:
        xn = ln(x, bp["ln1_g"], bp["ln1_b"])
        proj = xn @ bp["wqkv"]
        q, k, v = jnp.split(proj, 3, axis=-1)
        q = q.reshape(B, S, H, hd).transpose(0, 2, 1, 3)
        k = k.reshape(B, S, H, hd).transpose(0, 2, 1, 3)
        v = v.reshape(B, S, H, hd).transpose(0, 2, 1, 3)
        s = jnp.einsum("bhqd,bhkd->bhqk", q, k) / math.sqrt(hd)
        mask = jnp.tril(jnp.ones((S, S), bool))
        s = jnp.where(mask, s, -1e30)
        p = jax.nn.softmax(s, axis=-1)
        a = jnp.einsum("bhqk,bhkd->bhqd", p, v).transpose(0, 2, 1, 3).reshape(B, S, D)
        x = x + a @ bp["wo"]
        xn2 = ln(x, bp["ln2_g"], bp["ln2_b"])
        h1 = jnp.maximum(xn2 @ bp["w1"] + bp["b1"], 0.0)
        x = x + h1 @ bp["w2"] + bp["b2"]
    return x @ params["w_head"]


# -----------------------------------------------------------------------------
if __name__ == "__main__":
    cfg = Config()
    B, S = 2, 8

    key = jax.random.PRNGKey(0)
    pkey, ikey = jax.random.split(key)
    params = init_params(cfg, pkey)
    kparams = prepare_kernel_params(params, cfg)   # one-time fold / cast / pad
    input_ids = jax.random.randint(ikey, (B, S), 0, cfg.vocab_size, dtype=jnp.int32)

    logits = transformer_forward(params, kparams, input_ids, cfg)
    logits = jax.block_until_ready(logits)
    assert logits.shape == (B, S, cfg.vocab_size)

    ref = reference_forward(params, input_ids, cfg)
    # bf16 MXU operands in the kernel => slightly looser tolerance vs. the f32 reference
    # (expected precision loss, not a bug).
    assert jnp.allclose(logits, ref, atol=2e-3, rtol=2e-2), (
        "mismatch vs reference: max abs diff = "
        f"{float(jnp.max(jnp.abs(logits - ref)))}")

    print("KERNEL_OK")
</pallas_src>

<mosaic_0001>
module attributes {stable_mosaic.version = 11 : i64} {
  func.func @transformer_kernel(%arg0: i32, %arg1: memref<8x32xf32, #tpu.memory_space<vmem>>, %arg2: memref<2x1x32xf32, #tpu.memory_space<vmem>>, %arg3: memref<2x1x32xf32, #tpu.memory_space<vmem>>, %arg4: memref<2x32x32xbf16, #tpu.memory_space<vmem>>, %arg5: memref<2x32x32xbf16, #tpu.memory_space<vmem>>, %arg6: memref<2x32x32xbf16, #tpu.memory_space<vmem>>, %arg7: memref<2x32x32xbf16, #tpu.memory_space<vmem>>, %arg8: memref<2x1x32xf32, #tpu.memory_space<vmem>>, %arg9: memref<2x1x32xf32, #tpu.memory_space<vmem>>, %arg10: memref<2x32x128xbf16, #tpu.memory_space<vmem>>, %arg11: memref<2x1x128xf32, #tpu.memory_space<vmem>>, %arg12: memref<2x128x32xbf16, #tpu.memory_space<vmem>>, %arg13: memref<2x1x32xf32, #tpu.memory_space<vmem>>, %arg14: memref<32x128xbf16, #tpu.memory_space<vmem>>, %arg15: memref<8x128xf32, #tpu.memory_space<vmem>>) attributes {dimension_semantics = [#tpu.dimension_semantics<parallel>], iteration_bounds = array<i64: 2>, scalar_prefetch = 0 : i64, scratch_operands = 0 : i64, tpu.core_type = #tpu.core_type<tc>, window_params = [{transform_indices = @transform_0, window_bounds = array<i64: 8, 32>}, {pipeline_mode = #tpu.pipeline_mode<synchronous>, transform_indices = @transform_1, window_bounds = array<i64: 2, 1, 32>}, {pipeline_mode = #tpu.pipeline_mode<synchronous>, transform_indices = @transform_2, window_bounds = array<i64: 2, 1, 32>}, {pipeline_mode = #tpu.pipeline_mode<synchronous>, transform_indices = @transform_3, window_bounds = array<i64: 2, 32, 32>}, {pipeline_mode = #tpu.pipeline_mode<synchronous>, transform_indices = @transform_4, window_bounds = array<i64: 2, 32, 32>}, {pipeline_mode = #tpu.pipeline_mode<synchronous>, transform_indices = @transform_5, window_bounds = array<i64: 2, 32, 32>}, {pipeline_mode = #tpu.pipeline_mode<synchronous>, transform_indices = @transform_6, window_bounds = array<i64: 2, 32, 32>}, {pipeline_mode = #tpu.pipeline_mode<synchronous>, transform_indices = @transform_7, window_bounds = array<i64: 2, 1, 32>}, {pipeline_mode = #tpu.pipeline_mode<synchronous>, transform_indices = @transform_8, window_bounds = array<i64: 2, 1, 32>}, {pipeline_mode = #tpu.pipeline_mode<synchronous>, transform_indices = @transform_9, window_bounds = array<i64: 2, 32, 128>}, {pipeline_mode = #tpu.pipeline_mode<synchronous>, transform_indices = @transform_10, window_bounds = array<i64: 2, 1, 128>}, {pipeline_mode = #tpu.pipeline_mode<synchronous>, transform_indices = @transform_11, window_bounds = array<i64: 2, 128, 32>}, {pipeline_mode = #tpu.pipeline_mode<synchronous>, transform_indices = @transform_12, window_bounds = array<i64: 2, 1, 32>}, {pipeline_mode = #tpu.pipeline_mode<synchronous>, transform_indices = @transform_13, window_bounds = array<i64: 32, 128>}, {transform_indices = @transform_14, window_bounds = array<i64: 8, 128>}]} {
    %c0 = arith.constant 0 : index
    %c0_0 = arith.constant 0 : index
    %0 = vector.load %arg1[%c0, %c0_0] : memref<8x32xf32, #tpu.memory_space<vmem>>, vector<8x32xf32>
    %1 = tpu.iota {dimensions = array<i32: 0>} : vector<8x8xi32>
    %2 = tpu.iota {dimensions = array<i32: 1>} : vector<8x8xi32>
    %3 = arith.cmpi sge, %1, %2 : vector<8x8xi32>
    %4 = vector.shape_cast %3 : vector<8x8xi1> to vector<1x8x8xi1>
    %c0_1 = arith.constant 0 : index
    %c0_2 = arith.constant 0 : index
    %c0_3 = arith.constant 0 : index
    %5 = vector.load %arg2[%c0_1, %c0_2, %c0_3] : memref<2x1x32xf32, #tpu.memory_space<vmem>>, vector<1x1x32xf32>
    %6 = vector.shape_cast %5 : vector<1x1x32xf32> to vector<1x32xf32>
    %c0_4 = arith.constant 0 : index
    %c0_5 = arith.constant 0 : index
    %c0_6 = arith.constant 0 : index
    %7 = vector.load %arg3[%c0_4, %c0_5, %c0_6] : memref<2x1x32xf32, #tpu.memory_space<vmem>>, vector<1x1x32xf32>
    %8 = vector.shape_cast %7 : vector<1x1x32xf32> to vector<1x32xf32>
    %cst = arith.constant dense<0.000000e+00> : vector<8xf32>
    %9 = vector.multi_reduction <add>, %0, %cst [1] : vector<8x32xf32> to vector<8xf32>
    %10 = vector.shape_cast %9 : vector<8xf32> to vector<8x1xf32>
    %cst_7 = arith.constant 3.200000e+01 : f32
    %11 = vector.broadcast %cst_7 : f32 to vector<8x1xf32>
    %12 = arith.divf %10, %11 : vector<8x1xf32>
    %13 = vector.broadcast %12 : vector<8x1xf32> to vector<8x32xf32>
    %14 = arith.subf %0, %13 : vector<8x32xf32>
    %15 = arith.mulf %14, %14 : vector<8x32xf32>
    %cst_8 = arith.constant dense<0.000000e+00> : vector<8xf32>
    %16 = vector.multi_reduction <add>, %15, %cst_8 [1] : vector<8x32xf32> to vector<8xf32>
    %17 = vector.shape_cast %16 : vector<8xf32> to vector<8x1xf32>
    %cst_9 = arith.constant 3.200000e+01 : f32
    %18 = vector.broadcast %cst_9 : f32 to vector<8x1xf32>
    %19 = arith.divf %17, %18 : vector<8x1xf32>
    %20 = vector.broadcast %12 : vector<8x1xf32> to vector<8x32xf32>
    %21 = arith.subf %0, %20 : vector<8x32xf32>
    %cst_10 = arith.constant 9.99999974E-6 : f32
    %22 = vector.broadcast %cst_10 : f32 to vector<8x1xf32>
    %23 = arith.addf %19, %22 : vector<8x1xf32>
    %24 = math.rsqrt %23 : vector<8x1xf32>
    %25 = vector.broadcast %24 : vector<8x1xf32> to vector<8x32xf32>
    %26 = arith.mulf %21, %25 : vector<8x32xf32>
    %27 = vector.broadcast %6 : vector<1x32xf32> to vector<8x32xf32>
    %28 = arith.mulf %26, %27 : vector<8x32xf32>
    %29 = vector.broadcast %8 : vector<1x32xf32> to vector<8x32xf32>
    %30 = arith.addf %28, %29 : vector<8x32xf32>
    %31 = arith.truncf %30 : vector<8x32xf32> to vector<8x32xbf16>
    %c0_11 = arith.constant 0 : index
    %c0_12 = arith.constant 0 : index
    %c0_13 = arith.constant 0 : index
    %32 = vector.load %arg4[%c0_11, %c0_12, %c0_13] : memref<2x32x32xbf16, #tpu.memory_space<vmem>>, vector<1x32x32xbf16>
    %33 = vector.shape_cast %32 : vector<1x32x32xbf16> to vector<32x32xbf16>
    %cst_14 = arith.constant dense<0.000000e+00> : vector<8x32xf32>
    %34 = tpu.matmul %31, %33, %cst_14 {dimension_numbers = #tpu.dot_dimension_numbers<[1], [0], [0], [1], [0, 0, 1, 1], [], []>} : vector<8x32xbf16>, vector<32x32xbf16>, vector<8x32xf32> -> vector<8x32xf32>
    %c0_15 = arith.constant 0 : index
    %c0_16 = arith.constant 0 : index
    %c0_17 = arith.constant 0 : index
    %35 = vector.load %arg5[%c0_15, %c0_16, %c0_17] : memref<2x32x32xbf16, #tpu.memory_space<vmem>>, vector<1x32x32xbf16>
    %36 = vector.shape_cast %35 : vector<1x32x32xbf16> to vector<32x32xbf16>
    %cst_18 = arith.constant dense<0.000000e+00> : vector<8x32xf32>
    %37 = tpu.matmul %31, %36, %cst_18 {dimension_numbers = #tpu.dot_dimension_numbers<[1], [0], [0], [1], [0, 0, 1, 1], [], []>} : vector<8x32xbf16>, vector<32x32xbf16>, vector<8x32xf32> -> vector<8x32xf32>
    %c0_19 = arith.constant 0 : index
    %c0_20 = arith.constant 0 : index
    %c0_21 = arith.constant 0 : index
    %38 = vector.load %arg6[%c0_19, %c0_20, %c0_21] : memref<2x32x32xbf16, #tpu.memory_space<vmem>>, vector<1x32x32xbf16>
    %39 = vector.shape_cast %38 : vector<1x32x32xbf16> to vector<32x32xbf16>
    %cst_22 = arith.constant dense<0.000000e+00> : vector<8x32xf32>
    %40 = tpu.matmul %31, %39, %cst_22 {dimension_numbers = #tpu.dot_dimension_numbers<[1], [0], [0], [1], [0, 0, 1, 1], [], []>} : vector<8x32xbf16>, vector<32x32xbf16>, vector<8x32xf32> -> vector<8x32xf32>
    %41 = vector.shape_cast %34 : vector<8x32xf32> to vector<8x4x8xf32>
    %42 = tpu.transpose %41, [1, 0, 2] : vector<8x4x8xf32> -> vector<4x8x8xf32>
    %43 = arith.truncf %42 : vector<4x8x8xf32> to vector<4x8x8xbf16>
    %44 = vector.shape_cast %37 : vector<8x32xf32> to vector<8x4x8xf32>
    %45 = tpu.transpose %44, [1, 0, 2] : vector<8x4x8xf32> -> vector<4x8x8xf32>
    %46 = arith.truncf %45 : vector<4x8x8xf32> to vector<4x8x8xbf16>
    %47 = vector.shape_cast %40 : vector<8x32xf32> to vector<8x4x8xf32>
    %48 = tpu.transpose %47, [1, 0, 2] : vector<8x4x8xf32> -> vector<4x8x8xf32>
    %49 = arith.truncf %48 : vector<4x8x8xf32> to vector<4x8x8xbf16>
    "tpu.trace_start"() <{level = 10 : i32, message = "hqd,hkd->hqk"}> : () -> ()
    %cst_23 = arith.constant dense<0.000000e+00> : vector<4x8x8xf32>
    %50 = tpu.matmul %43, %46, %cst_23 {dimension_numbers = #tpu.dot_dimension_numbers<[2], [2], [1], [1], [0, 0, 0, 1, 1, 1], [0], [0]>} : vector<4x8x8xbf16>, vector<4x8x8xbf16>, vector<4x8x8xf32> -> vector<4x8x8xf32>
    %cst_24 = arith.constant -1.000000e+30 : f32
    "tpu.trace_stop"() : () -> ()
    %51 = vector.shape_cast %4 : vector<1x8x8xi1> to vector<1x8x8xi1>
    %52 = vector.broadcast %51 : vector<1x8x8xi1> to vector<4x8x8xi1>
    %53 = vector.broadcast %cst_24 : f32 to vector<4x8x8xf32>
    %54 = arith.select %52, %50, %53 : vector<4x8x8xi1>, vector<4x8x8xf32>
    %cst_25 = arith.constant dense<0xFF800000> : vector<4x8xf32>
    %55 = vector.multi_reduction <maximumf>, %54, %cst_25 [2] : vector<4x8x8xf32> to vector<4x8xf32>
    %56 = vector.shape_cast %55 : vector<4x8xf32> to vector<4x8x1xf32>
    %57 = vector.broadcast %56 : vector<4x8x1xf32> to vector<4x8x8xf32>
    %58 = arith.subf %54, %57 : vector<4x8x8xf32>
    %59 = math.exp %58 : vector<4x8x8xf32>
    %cst_26 = arith.constant dense<0.000000e+00> : vector<4x8xf32>
    %60 = vector.multi_reduction <add>, %59, %cst_26 [2] : vector<4x8x8xf32> to vector<4x8xf32>
    %61 = vector.shape_cast %60 : vector<4x8xf32> to vector<4x8x1xf32>
    %62 = tpu.reciprocal %61 {approx = true} : vector<4x8x1xf32> -> vector<4x8x1xf32>
    %63 = vector.broadcast %62 : vector<4x8x1xf32> to vector<4x8x8xf32>
    %64 = arith.mulf %59, %63 : vector<4x8x8xf32>
    %65 = arith.truncf %64 : vector<4x8x8xf32> to vector<4x8x8xbf16>
    "tpu.trace_start"() <{level = 10 : i32, message = "hqk,hkd->hqd"}> : () -> ()
    %cst_27 = arith.constant dense<0.000000e+00> : vector<4x8x8xf32>
    %66 = tpu.matmul %65, %49, %cst_27 {dimension_numbers = #tpu.dot_dimension_numbers<[2], [1], [1], [2], [0, 0, 0, 1, 1, 2], [0], [0]>} : vector<4x8x8xbf16>, vector<4x8x8xbf16>, vector<4x8x8xf32> -> vector<4x8x8xf32>
    "tpu.trace_stop"() : () -> ()
    %67 = tpu.transpose %66, [1, 0, 2] : vector<4x8x8xf32> -> vector<8x4x8xf32>
    %68 = vector.shape_cast %67 : vector<8x4x8xf32> to vector<8x32xf32>
    %69 = arith.truncf %68 : vector<8x32xf32> to vector<8x32xbf16>
    %c0_28 = arith.constant 0 : index
    %c0_29 = arith.constant 0 : index
    %c0_30 = arith.constant 0 : index
    %70 = vector.load %arg7[%c0_28, %c0_29, %c0_30] : memref<2x32x32xbf16, #tpu.memory_space<vmem>>, vector<1x32x32xbf16>
    %71 = vector.shape_cast %70 : vector<1x32x32xbf16> to vector<32x32xbf16>
    %cst_31 = arith.constant dense<0.000000e+00> : vector<8x32xf32>
    %72 = tpu.matmul %69, %71, %cst_31 {dimension_numbers = #tpu.dot_dimension_numbers<[1], [0], [0], [1], [0, 0, 1, 1], [], []>} : vector<8x32xbf16>, vector<32x32xbf16>, vector<8x32xf32> -> vector<8x32xf32>
    %73 = arith.addf %0, %72 : vector<8x32xf32>
    %c0_32 = arith.constant 0 : index
    %c0_33 = arith.constant 0 : index
    %c0_34 = arith.constant 0 : index
    %74 = vector.load %arg8[%c0_32, %c0_33, %c0_34] : memref<2x1x32xf32, #tpu.memory_space<vmem>>, vector<1x1x32xf32>
    %75 = vector.shape_cast %74 : vector<1x1x32xf32> to vector<1x32xf32>
    %c0_35 = arith.constant 0 : index
    %c0_36 = arith.constant 0 : index
    %c0_37 = arith.constant 0 : index
    %76 = vector.load %arg9[%c0_35, %c0_36, %c0_37] : memref<2x1x32xf32, #tpu.memory_space<vmem>>, vector<1x1x32xf32>
    %77 = vector.shape_cast %76 : vector<1x1x32xf32> to vector<1x32xf32>
    %cst_38 = arith.constant dense<0.000000e+00> : vector<8xf32>
    %78 = vector.multi_reduction <add>, %73, %cst_38 [1] : vector<8x32xf32> to vector<8xf32>
    %79 = vector.shape_cast %78 : vector<8xf32> to vector<8x1xf32>
    %cst_39 = arith.constant 3.200000e+01 : f32
    %80 = vector.broadcast %cst_39 : f32 to vector<8x1xf32>
    %81 = arith.divf %79, %80 : vector<8x1xf32>
    %82 = vector.broadcast %81 : vector<8x1xf32> to vector<8x32xf32>
    %83 = arith.subf %73, %82 : vector<8x32xf32>
    %84 = arith.mulf %83, %83 : vector<8x32xf32>
    %cst_40 = arith.constant dense<0.000000e+00> : vector<8xf32>
    %85 = vector.multi_reduction <add>, %84, %cst_40 [1] : vector<8x32xf32> to vector<8xf32>
    %86 = vector.shape_cast %85 : vector<8xf32> to vector<8x1xf32>
    %cst_41 = arith.constant 3.200000e+01 : f32
    %87 = vector.broadcast %cst_41 : f32 to vector<8x1xf32>
    %88 = arith.divf %86, %87 : vector<8x1xf32>
    %89 = vector.broadcast %81 : vector<8x1xf32> to vector<8x32xf32>
    %90 = arith.subf %73, %89 : vector<8x32xf32>
    %cst_42 = arith.constant 9.99999974E-6 : f32
    %91 = vector.broadcast %cst_42 : f32 to vector<8x1xf32>
    %92 = arith.addf %88, %91 : vector<8x1xf32>
    %93 = math.rsqrt %92 : vector<8x1xf32>
    %94 = vector.broadcast %93 : vector<8x1xf32> to vector<8x32xf32>
    %95 = arith.mulf %90, %94 : vector<8x32xf32>
    %96 = vector.broadcast %75 : vector<1x32xf32> to vector<8x32xf32>
    %97 = arith.mulf %95, %96 : vector<8x32xf32>
    %98 = vector.broadcast %77 : vector<1x32xf32> to vector<8x32xf32>
    %99 = arith.addf %97, %98 : vector<8x32xf32>
    %100 = arith.truncf %99 : vector<8x32xf32> to vector<8x32xbf16>
    %c0_43 = arith.constant 0 : index
    %c0_44 = arith.constant 0 : index
    %c0_45 = arith.constant 0 : index
    %101 = vector.load %arg10[%c0_43, %c0_44, %c0_45] : memref<2x32x128xbf16, #tpu.memory_space<vmem>>, vector<1x32x128xbf16>
    %102 = vector.shape_cast %101 : vector<1x32x128xbf16> to vector<32x128xbf16>
    %cst_46 = arith.constant dense<0.000000e+00> : vector<8x128xf32>
    %103 = tpu.matmul %100, %102, %cst_46 {dimension_numbers = #tpu.dot_dimension_numbers<[1], [0], [0], [1], [0, 0, 1, 1], [], []>} : vector<8x32xbf16>, vector<32x128xbf16>, vector<8x128xf32> -> vector<8x128xf32>
    %c0_47 = arith.constant 0 : index
    %c0_48 = arith.constant 0 : index
    %c0_49 = arith.constant 0 : index
    %104 = vector.load %arg11[%c0_47, %c0_48, %c0_49] : memref<2x1x128xf32, #tpu.memory_space<vmem>>, vector<1x1x128xf32>
    %105 = vector.shape_cast %104 : vector<1x1x128xf32> to vector<1x128xf32>
    %106 = vector.broadcast %105 : vector<1x128xf32> to vector<8x128xf32>
    %107 = arith.addf %103, %106 : vector<8x128xf32>
    %cst_50 = arith.constant 0.000000e+00 : f32
    %108 = vector.broadcast %cst_50 : f32 to vector<8x128xf32>
    %109 = arith.maximumf %107, %108 : vector<8x128xf32>
    %110 = arith.truncf %109 : vector<8x128xf32> to vector<8x128xbf16>
    %c0_51 = arith.constant 0 : index
    %c0_52 = arith.constant 0 : index
    %c0_53 = arith.constant 0 : index
    %111 = vector.load %arg12[%c0_51, %c0_52, %c0_53] : memref<2x128x32xbf16, #tpu.memory_space<vmem>>, vector<1x128x32xbf16>
    %112 = vector.shape_cast %111 : vector<1x128x32xbf16> to vector<128x32xbf16>
    %cst_54 = arith.constant dense<0.000000e+00> : vector<8x32xf32>
    %113 = tpu.matmul %110, %112, %cst_54 {dimension_numbers = #tpu.dot_dimension_numbers<[1], [0], [0], [1], [0, 0, 1, 1], [], []>} : vector<8x128xbf16>, vector<128x32xbf16>, vector<8x32xf32> -> vector<8x32xf32>
    %114 = arith.addf %73, %113 : vector<8x32xf32>
    %c0_55 = arith.constant 0 : index
    %c0_56 = arith.constant 0 : index
    %c0_57 = arith.constant 0 : index
    %115 = vector.load %arg13[%c0_55, %c0_56, %c0_57] : memref<2x1x32xf32, #tpu.memory_space<vmem>>, vector<1x1x32xf32>
    %116 = vector.shape_cast %115 : vector<1x1x32xf32> to vector<1x32xf32>
    %117 = vector.broadcast %116 : vector<1x32xf32> to vector<8x32xf32>
    %118 = arith.addf %114, %117 : vector<8x32xf32>
    %c1 = arith.constant 1 : index
    %c0_58 = arith.constant 0 : index
    %c0_59 = arith.constant 0 : index
    %119 = vector.load %arg2[%c1, %c0_58, %c0_59] : memref<2x1x32xf32, #tpu.memory_space<vmem>>, vector<1x1x32xf32>
    %120 = vector.shape_cast %119 : vector<1x1x32xf32> to vector<1x32xf32>
    %c1_60 = arith.constant 1 : index
    %c0_61 = arith.constant 0 : index
    %c0_62 = arith.constant 0 : index
    %121 = vector.load %arg3[%c1_60, %c0_61, %c0_62] : memref<2x1x32xf32, #tpu.memory_space<vmem>>, vector<1x1x32xf32>
    %122 = vector.shape_cast %121 : vector<1x1x32xf32> to vector<1x32xf32>
    %cst_63 = arith.constant dense<0.000000e+00> : vector<8xf32>
    %123 = vector.multi_reduction <add>, %118, %cst_63 [1] : vector<8x32xf32> to vector<8xf32>
    %124 = vector.shape_cast %123 : vector<8xf32> to vector<8x1xf32>
    %cst_64 = arith.constant 3.200000e+01 : f32
    %125 = vector.broadcast %cst_64 : f32 to vector<8x1xf32>
    %126 = arith.divf %124, %125 : vector<8x1xf32>
    %127 = vector.broadcast %126 : vector<8x1xf32> to vector<8x32xf32>
    %128 = arith.subf %118, %127 : vector<8x32xf32>
    %129 = arith.mulf %128, %128 : vector<8x32xf32>
    %cst_65 = arith.constant dense<0.000000e+00> : vector<8xf32>
    %130 = vector.multi_reduction <add>, %129, %cst_65 [1] : vector<8x32xf32> to vector<8xf32>
    %131 = vector.shape_cast %130 : vector<8xf32> to vector<8x1xf32>
    %cst_66 = arith.constant 3.200000e+01 : f32
    %132 = vector.broadcast %cst_66 : f32 to vector<8x1xf32>
    %133 = arith.divf %131, %132 : vector<8x1xf32>
    %134 = vector.broadcast %126 : vector<8x1xf32> to vector<8x32xf32>
    %135 = arith.subf %118, %134 : vector<8x32xf32>
    %cst_67 = arith.constant 9.99999974E-6 : f32
    %136 = vector.broadcast %cst_67 : f32 to vector<8x1xf32>
    %137 = arith.addf %133, %136 : vector<8x1xf32>
    %138 = math.rsqrt %137 : vector<8x1xf32>
    %139 = vector.broadcast %138 : vector<8x1xf32> to vector<8x32xf32>
    %140 = arith.mulf %135, %139 : vector<8x32xf32>
    %141 = vector.broadcast %120 : vector<1x32xf32> to vector<8x32xf32>
    %142 = arith.mulf %140, %141 : vector<8x32xf32>
    %143 = vector.broadcast %122 : vector<1x32xf32> to vector<8x32xf32>
    %144 = arith.addf %142, %143 : vector<8x32xf32>
    %145 = arith.truncf %144 : vector<8x32xf32> to vector<8x32xbf16>
    %c1_68 = arith.constant 1 : index
    %c0_69 = arith.constant 0 : index
    %c0_70 = arith.constant 0 : index
    %146 = vector.load %arg4[%c1_68, %c0_69, %c0_70] : memref<2x32x32xbf16, #tpu.memory_space<vmem>>, vector<1x32x32xbf16>
    %147 = vector.shape_cast %146 : vector<1x32x32xbf16> to vector<32x32xbf16>
    %cst_71 = arith.constant dense<0.000000e+00> : vector<8x32xf32>
    %148 = tpu.matmul %145, %147, %cst_71 {dimension_numbers = #tpu.dot_dimension_numbers<[1], [0], [0], [1], [0, 0, 1, 1], [], []>} : vector<8x32xbf16>, vector<32x32xbf16>, vector<8x32xf32> -> vector<8x32xf32>
    %c1_72 = arith.constant 1 : index
    %c0_73 = arith.constant 0 : index
    %c0_74 = arith.constant 0 : index
    %149 = vector.load %arg5[%c1_72, %c0_73, %c0_74] : memref<2x32x32xbf16, #tpu.memory_space<vmem>>, vector<1x32x32xbf16>
    %150 = vector.shape_cast %149 : vector<1x32x32xbf16> to vector<32x32xbf16>
    %cst_75 = arith.constant dense<0.000000e+00> : vector<8x32xf32>
    %151 = tpu.matmul %145, %150, %cst_75 {dimension_numbers = #tpu.dot_dimension_numbers<[1], [0], [0], [1], [0, 0, 1, 1], [], []>} : vector<8x32xbf16>, vector<32x32xbf16>, vector<8x32xf32> -> vector<8x32xf32>
    %c1_76 = arith.constant 1 : index
    %c0_77 = arith.constant 0 : index
    %c0_78 = arith.constant 0 : index
    %152 = vector.load %arg6[%c1_76, %c0_77, %c0_78] : memref<2x32x32xbf16, #tpu.memory_space<vmem>>, vector<1x32x32xbf16>
    %153 = vector.shape_cast %152 : vector<1x32x32xbf16> to vector<32x32xbf16>
    %cst_79 = arith.constant dense<0.000000e+00> : vector<8x32xf32>
    %154 = tpu.matmul %145, %153, %cst_79 {dimension_numbers = #tpu.dot_dimension_numbers<[1], [0], [0], [1], [0, 0, 1, 1], [], []>} : vector<8x32xbf16>, vector<32x32xbf16>, vector<8x32xf32> -> vector<8x32xf32>
    %155 = vector.shape_cast %148 : vector<8x32xf32> to vector<8x4x8xf32>
    %156 = tpu.transpose %155, [1, 0, 2] : vector<8x4x8xf32> -> vector<4x8x8xf32>
    %157 = arith.truncf %156 : vector<4x8x8xf32> to vector<4x8x8xbf16>
    %158 = vector.shape_cast %151 : vector<8x32xf32> to vector<8x4x8xf32>
    %159 = tpu.transpose %158, [1, 0, 2] : vector<8x4x8xf32> -> vector<4x8x8xf32>
    %160 = arith.truncf %159 : vector<4x8x8xf32> to vector<4x8x8xbf16>
    %161 = vector.shape_cast %154 : vector<8x32xf32> to vector<8x4x8xf32>
    %162 = tpu.transpose %161, [1, 0, 2] : vector<8x4x8xf32> -> vector<4x8x8xf32>
    %163 = arith.truncf %162 : vector<4x8x8xf32> to vector<4x8x8xbf16>
    "tpu.trace_start"() <{level = 10 : i32, message = "hqd,hkd->hqk"}> : () -> ()
    %cst_80 = arith.constant dense<0.000000e+00> : vector<4x8x8xf32>
    %164 = tpu.matmul %157, %160, %cst_80 {dimension_numbers = #tpu.dot_dimension_numbers<[2], [2], [1], [1], [0, 0, 0, 1, 1, 1], [0], [0]>} : vector<4x8x8xbf16>, vector<4x8x8xbf16>, vector<4x8x8xf32> -> vector<4x8x8xf32>
    %cst_81 = arith.constant -1.000000e+30 : f32
    "tpu.trace_stop"() : () -> ()
    %165 = vector.shape_cast %4 : vector<1x8x8xi1> to vector<1x8x8xi1>
    %166 = vector.broadcast %165 : vector<1x8x8xi1> to vector<4x8x8xi1>
    %167 = vector.broadcast %cst_81 : f32 to vector<4x8x8xf32>
    %168 = arith.select %166, %164, %167 : vector<4x8x8xi1>, vector<4x8x8xf32>
    %cst_82 = arith.constant dense<0xFF800000> : vector<4x8xf32>
    %169 = vector.multi_reduction <maximumf>, %168, %cst_82 [2] : vector<4x8x8xf32> to vector<4x8xf32>
    %170 = vector.shape_cast %169 : vector<4x8xf32> to vector<4x8x1xf32>
    %171 = vector.broadcast %170 : vector<4x8x1xf32> to vector<4x8x8xf32>
    %172 = arith.subf %168, %171 : vector<4x8x8xf32>
    %173 = math.exp %172 : vector<4x8x8xf32>
    %cst_83 = arith.constant dense<0.000000e+00> : vector<4x8xf32>
    %174 = vector.multi_reduction <add>, %173, %cst_83 [2] : vector<4x8x8xf32> to vector<4x8xf32>
    %175 = vector.shape_cast %174 : vector<4x8xf32> to vector<4x8x1xf32>
    %176 = tpu.reciprocal %175 {approx = true} : vector<4x8x1xf32> -> vector<4x8x1xf32>
    %177 = vector.broadcast %176 : vector<4x8x1xf32> to vector<4x8x8xf32>
    %178 = arith.mulf %173, %177 : vector<4x8x8xf32>
    %179 = arith.truncf %178 : vector<4x8x8xf32> to vector<4x8x8xbf16>
    "tpu.trace_start"() <{level = 10 : i32, message = "hqk,hkd->hqd"}> : () -> ()
    %cst_84 = arith.constant dense<0.000000e+00> : vector<4x8x8xf32>
    %180 = tpu.matmul %179, %163, %cst_84 {dimension_numbers = #tpu.dot_dimension_numbers<[2], [1], [1], [2], [0, 0, 0, 1, 1, 2], [0], [0]>} : vector<4x8x8xbf16>, vector<4x8x8xbf16>, vector<4x8x8xf32> -> vector<4x8x8xf32>
    "tpu.trace_stop"() : () -> ()
    %181 = tpu.transpose %180, [1, 0, 2] : vector<4x8x8xf32> -> vector<8x4x8xf32>
    %182 = vector.shape_cast %181 : vector<8x4x8xf32> to vector<8x32xf32>
    %183 = arith.truncf %182 : vector<8x32xf32> to vector<8x32xbf16>
    %c1_85 = arith.constant 1 : index
    %c0_86 = arith.constant 0 : index
    %c0_87 = arith.constant 0 : index
    %184 = vector.load %arg7[%c1_85, %c0_86, %c0_87] : memref<2x32x32xbf16, #tpu.memory_space<vmem>>, vector<1x32x32xbf16>
    %185 = vector.shape_cast %184 : vector<1x32x32xbf16> to vector<32x32xbf16>
    %cst_88 = arith.constant dense<0.000000e+00> : vector<8x32xf32>
    %186 = tpu.matmul %183, %185, %cst_88 {dimension_numbers = #tpu.dot_dimension_numbers<[1], [0], [0], [1], [0, 0, 1, 1], [], []>} : vector<8x32xbf16>, vector<32x32xbf16>, vector<8x32xf32> -> vector<8x32xf32>
    %187 = arith.addf %118, %186 : vector<8x32xf32>
    %c1_89 = arith.constant 1 : index
    %c0_90 = arith.constant 0 : index
    %c0_91 = arith.constant 0 : index
    %188 = vector.load %arg8[%c1_89, %c0_90, %c0_91] : memref<2x1x32xf32, #tpu.memory_space<vmem>>, vector<1x1x32xf32>
    %189 = vector.shape_cast %188 : vector<1x1x32xf32> to vector<1x32xf32>
    %c1_92 = arith.constant 1 : index
    %c0_93 = arith.constant 0 : index
    %c0_94 = arith.constant 0 : index
    %190 = vector.load %arg9[%c1_92, %c0_93, %c0_94] : memref<2x1x32xf32, #tpu.memory_space<vmem>>, vector<1x1x32xf32>
    %191 = vector.shape_cast %190 : vector<1x1x32xf32> to vector<1x32xf32>
    %cst_95 = arith.constant dense<0.000000e+00> : vector<8xf32>
    %192 = vector.multi_reduction <add>, %187, %cst_95 [1] : vector<8x32xf32> to vector<8xf32>
    %193 = vector.shape_cast %192 : vector<8xf32> to vector<8x1xf32>
    %cst_96 = arith.constant 3.200000e+01 : f32
    %194 = vector.broadcast %cst_96 : f32 to vector<8x1xf32>
    %195 = arith.divf %193, %194 : vector<8x1xf32>
    %196 = vector.broadcast %195 : vector<8x1xf32> to vector<8x32xf32>
    %197 = arith.subf %187, %196 : vector<8x32xf32>
    %198 = arith.mulf %197, %197 : vector<8x32xf32>
    %cst_97 = arith.constant dense<0.000000e+00> : vector<8xf32>
    %199 = vector.multi_reduction <add>, %198, %cst_97 [1] : vector<8x32xf32> to vector<8xf32>
    %200 = vector.shape_cast %199 : vector<8xf32> to vector<8x1xf32>
    %cst_98 = arith.constant 3.200000e+01 : f32
    %201 = vector.broadcast %cst_98 : f32 to vector<8x1xf32>
    %202 = arith.divf %200, %201 : vector<8x1xf32>
    %203 = vector.broadcast %195 : vector<8x1xf32> to vector<8x32xf32>
    %204 = arith.subf %187, %203 : vector<8x32xf32>
    %cst_99 = arith.constant 9.99999974E-6 : f32
    %205 = vector.broadcast %cst_99 : f32 to vector<8x1xf32>
    %206 = arith.addf %202, %205 : vector<8x1xf32>
    %207 = math.rsqrt %206 : vector<8x1xf32>
    %208 = vector.broadcast %207 : vector<8x1xf32> to vector<8x32xf32>
    %209 = arith.mulf %204, %208 : vector<8x32xf32>
    %210 = vector.broadcast %189 : vector<1x32xf32> to vector<8x32xf32>
    %211 = arith.mulf %209, %210 : vector<8x32xf32>
    %212 = vector.broadcast %191 : vector<1x32xf32> to vector<8x32xf32>
    %213 = arith.addf %211, %212 : vector<8x32xf32>
    %214 = arith.truncf %213 : vector<8x32xf32> to vector<8x32xbf16>
    %c1_100 = arith.constant 1 : index
    %c0_101 = arith.constant 0 : index
    %c0_102 = arith.constant 0 : index
    %215 = vector.load %arg10[%c1_100, %c0_101, %c0_102] : memref<2x32x128xbf16, #tpu.memory_space<vmem>>, vector<1x32x128xbf16>
    %216 = vector.shape_cast %215 : vector<1x32x128xbf16> to vector<32x128xbf16>
    %cst_103 = arith.constant dense<0.000000e+00> : vector<8x128xf32>
    %217 = tpu.matmul %214, %216, %cst_103 {dimension_numbers = #tpu.dot_dimension_numbers<[1], [0], [0], [1], [0, 0, 1, 1], [], []>} : vector<8x32xbf16>, vector<32x128xbf16>, vector<8x128xf32> -> vector<8x128xf32>
    %c1_104 = arith.constant 1 : index
    %c0_105 = arith.constant 0 : index
    %c0_106 = arith.constant 0 : index
    %218 = vector.load %arg11[%c1_104, %c0_105, %c0_106] : memref<2x1x128xf32, #tpu.memory_space<vmem>>, vector<1x1x128xf32>
    %219 = vector.shape_cast %218 : vector<1x1x128xf32> to vector<1x128xf32>
    %220 = vector.broadcast %219 : vector<1x128xf32> to vector<8x128xf32>
    %221 = arith.addf %217, %220 : vector<8x128xf32>
    %cst_107 = arith.constant 0.000000e+00 : f32
    %222 = vector.broadcast %cst_107 : f32 to vector<8x128xf32>
    %223 = arith.maximumf %221, %222 : vector<8x128xf32>
    %224 = arith.truncf %223 : vector<8x128xf32> to vector<8x128xbf16>
    %c1_108 = arith.constant 1 : index
    %c0_109 = arith.constant 0 : index
    %c0_110 = arith.constant 0 : index
    %225 = vector.load %arg12[%c1_108, %c0_109, %c0_110] : memref<2x128x32xbf16, #tpu.memory_space<vmem>>, vector<1x128x32xbf16>
    %226 = vector.shape_cast %225 : vector<1x128x32xbf16> to vector<128x32xbf16>
    %cst_111 = arith.constant dense<0.000000e+00> : vector<8x32xf32>
    %227 = tpu.matmul %224, %226, %cst_111 {dimension_numbers = #tpu.dot_dimension_numbers<[1], [0], [0], [1], [0, 0, 1, 1], [], []>} : vector<8x128xbf16>, vector<128x32xbf16>, vector<8x32xf32> -> vector<8x32xf32>
    %228 = arith.addf %187, %227 : vector<8x32xf32>
    %c1_112 = arith.constant 1 : index
    %c0_113 = arith.constant 0 : index
    %c0_114 = arith.constant 0 : index
    %229 = vector.load %arg13[%c1_112, %c0_113, %c0_114] : memref<2x1x32xf32, #tpu.memory_space<vmem>>, vector<1x1x32xf32>
    %230 = vector.shape_cast %229 : vector<1x1x32xf32> to vector<1x32xf32>
    %231 = vector.broadcast %230 : vector<1x32xf32> to vector<8x32xf32>
    %232 = arith.addf %228, %231 : vector<8x32xf32>
    %233 = arith.truncf %232 : vector<8x32xf32> to vector<8x32xbf16>
    %c0_115 = arith.constant 0 : index
    %c0_116 = arith.constant 0 : index
    %234 = vector.load %arg14[%c0_115, %c0_116] : memref<32x128xbf16, #tpu.memory_space<vmem>>, vector<32x128xbf16>
    %cst_117 = arith.constant dense<0.000000e+00> : vector<8x128xf32>
    %235 = tpu.matmul %233, %234, %cst_117 {dimension_numbers = #tpu.dot_dimension_numbers<[1], [0], [0], [1], [0, 0, 1, 1], [], []>} : vector<8x32xbf16>, vector<32x128xbf16>, vector<8x128xf32> -> vector<8x128xf32>
    %c0_118 = arith.constant 0 : index
    %c0_119 = arith.constant 0 : index
    %236 = vector.load %arg15[%c0_118, %c0_119] : memref<8x128xf32, #tpu.memory_space<vmem>>, vector<8x128xf32>
    tpu.vector_store %arg15[%c0_118, %c0_119], %235 {strides = array<i32>} : memref<8x128xf32, #tpu.memory_space<vmem>>, vector<8x128xf32>,
    return
  }
  func.func @transform_0(%arg0: i32) -> (i32, i32) {
    %c0_i32 = arith.constant 0 : i32
    %c0_i32_0 = arith.constant 0 : i32
    return %arg0, %c0_i32 : i32, i32
  }
  func.func @transform_1(%arg0: i32) -> (i32, i32, i32) {
    %c0_i32 = arith.constant 0 : i32
    %c0_i32_0 = arith.constant 0 : i32
    %c0_i32_1 = arith.constant 0 : i32
    %c0_i32_2 = arith.constant 0 : i32
    return %c0_i32, %c0_i32_0, %c0_i32_1 : i32, i32, i32
  }
  func.func @transform_2(%arg0: i32) -> (i32, i32, i32) {
    %c0_i32 = arith.constant 0 : i32
    %c0_i32_0 = arith.constant 0 : i32
    %c0_i32_1 = arith.constant 0 : i32
    %c0_i32_2 = arith.constant 0 : i32
    return %c0_i32, %c0_i32_0, %c0_i32_1 : i32, i32, i32
  }
  func.func @transform_3(%arg0: i32) -> (i32, i32, i32) {
    %c0_i32 = arith.constant 0 : i32
    %c0_i32_0 = arith.constant 0 : i32
    %c0_i32_1 = arith.constant 0 : i32
    %c0_i32_2 = arith.constant 0 : i32
    return %c0_i32, %c0_i32_0, %c0_i32_1 : i32, i32, i32
  }
  func.func @transform_4(%arg0: i32) -> (i32, i32, i32) {
    %c0_i32 = arith.constant 0 : i32
    %c0_i32_0 = arith.constant 0 : i32
    %c0_i32_1 = arith.constant 0 : i32
    %c0_i32_2 = arith.constant 0 : i32
    return %c0_i32, %c0_i32_0, %c0_i32_1 : i32, i32, i32
  }
  func.func @transform_5(%arg0: i32) -> (i32, i32, i32) {
    %c0_i32 = arith.constant 0 : i32
    %c0_i32_0 = arith.constant 0 : i32
    %c0_i32_1 = arith.constant 0 : i32
    %c0_i32_2 = arith.constant 0 : i32
    return %c0_i32, %c0_i32_0, %c0_i32_1 : i32, i32, i32
  }
  func.func @transform_6(%arg0: i32) -> (i32, i32, i32) {
    %c0_i32 = arith.constant 0 : i32
    %c0_i32_0 = arith.constant 0 : i32
    %c0_i32_1 = arith.constant 0 : i32
    %c0_i32_2 = arith.constant 0 : i32
    return %c0_i32, %c0_i32_0, %c0_i32_1 : i32, i32, i32
  }
  func.func @transform_7(%arg0: i32) -> (i32, i32, i32) {
    %c0_i32 = arith.constant 0 : i32
    %c0_i32_0 = arith.constant 0 : i32
    %c0_i32_1 = arith.constant 0 : i32
    %c0_i32_2 = arith.constant 0 : i32
    return %c0_i32, %c0_i32_0, %c0_i32_1 : i32, i32, i32
  }
  func.func @transform_8(%arg0: i32) -> (i32, i32, i32) {
    %c0_i32 = arith.constant 0 : i32
    %c0_i32_0 = arith.constant 0 : i32
    %c0_i32_1 = arith.constant 0 : i32
    %c0_i32_2 = arith.constant 0 : i32
    return %c0_i32, %c0_i32_0, %c0_i32_1 : i32, i32, i32
  }
  func.func @transform_9(%arg0: i32) -> (i32, i32, i32) {
    %c0_i32 = arith.constant 0 : i32
    %c0_i32_0 = arith.constant 0 : i32
    %c0_i32_1 = arith.constant 0 : i32
    %c0_i32_2 = arith.constant 0 : i32
    return %c0_i32, %c0_i32_0, %c0_i32_1 : i32, i32, i32
  }
  func.func @transform_10(%arg0: i32) -> (i32, i32, i32) {
    %c0_i32 = arith.constant 0 : i32
    %c0_i32_0 = arith.constant 0 : i32
    %c0_i32_1 = arith.constant 0 : i32
    %c0_i32_2 = arith.constant 0 : i32
    return %c0_i32, %c0_i32_0, %c0_i32_1 : i32, i32, i32
  }
  func.func @transform_11(%arg0: i32) -> (i32, i32, i32) {
    %c0_i32 = arith.constant 0 : i32
    %c0_i32_0 = arith.constant 0 : i32
    %c0_i32_1 = arith.constant 0 : i32
    %c0_i32_2 = arith.constant 0 : i32
    return %c0_i32, %c0_i32_0, %c0_i32_1 : i32, i32, i32
  }
  func.func @transform_12(%arg0: i32) -> (i32, i32, i32) {
    %c0_i32 = arith.constant 0 : i32
    %c0_i32_0 = arith.constant 0 : i32
    %c0_i32_1 = arith.constant 0 : i32
    %c0_i32_2 = arith.constant 0 : i32
    return %c0_i32, %c0_i32_0, %c0_i32_1 : i32, i32, i32
  }
  func.func @transform_13(%arg0: i32) -> (i32, i32) {
    %c0_i32 = arith.constant 0 : i32
    %c0_i32_0 = arith.constant 0 : i32
    %c0_i32_1 = arith.constant 0 : i32
    return %c0_i32, %c0_i32_0 : i32, i32
  }
  func.func @transform_14(%arg0: i32) -> (i32, i32) {
    %c0_i32 = arith.constant 0 : i32
    %c0_i32_0 = arith.constant 0 : i32
    return %arg0, %c0_i32 : i32, i32
  }
}

</mosaic_0001>

<llo_original>
// kernel: tpu_custom_call.1
$region0: #{tpu_custom_call.1}
  #allocation0 [shape = 'u32[]', space=smem, size = 0x4, offset = 0x4, fixed_abs, tag = 'smem constant byte address 0x4 - core index']
  #allocation1 [shape = 'u32[144,128]{1,0:T(1,128)}', space=vmem, size = 0x12000, scoped, tag = 'internal scratch']
  %s0 = inlined_call_operand.hbm [shape: f32[16,32], index: 0, kind: input, shape index: {}]
  %s1 = inlined_call_operand.hbm [shape: f32[2,1,32], index: 1, kind: input, shape index: {}]
  %s2 = inlined_call_operand.hbm [shape: f32[2,1,32], index: 2, kind: input, shape index: {}]
  %s3 = inlined_call_operand.vmem [shape: bf16[2,32,32], index: 3, kind: input, shape index: {}]
  %s4 = inlined_call_operand.vmem [shape: bf16[2,32,32], index: 4, kind: input, shape index: {}]
  %s5 = inlined_call_operand.vmem [shape: bf16[2,32,32], index: 5, kind: input, shape index: {}]
  %s6 = inlined_call_operand.vmem [shape: bf16[2,32,32], index: 6, kind: input, shape index: {}]
  %s7 = inlined_call_operand.hbm [shape: f32[2,1,32], index: 7, kind: input, shape index: {}]
  %s8 = inlined_call_operand.hbm [shape: f32[2,1,32], index: 8, kind: input, shape index: {}]
  %s9 = inlined_call_operand.vmem [shape: bf16[2,32,128], index: 9, kind: input, shape index: {}]
  %s10 = inlined_call_operand.hbm [shape: f32[2,1,128], index: 10, kind: input, shape index: {}]
  %s11 = inlined_call_operand.vmem [shape: bf16[2,128,32], index: 11, kind: input, shape index: {}]
  %s12 = inlined_call_operand.hbm [shape: f32[2,1,32], index: 12, kind: input, shape index: {}]
  %s13 = inlined_call_operand.vmem [shape: bf16[32,128], index: 13, kind: input, shape index: {}]
  %s14 = inlined_call_operand.hbm [shape: f32[16,128], index: 14, kind: output, shape index: {}]
  %s15 = sld [smem:[#allocation0]]
  $region117: #{tpu_custom_call.1} parent=0
    _
  %s17 = ssub.s32 1, %s15
  %s18 = scalar_select 0, %s17, %s15
  $region1: #{tpu_custom_call.1} parent=0
    #allocation2 [shape = 'u8[8192]{0}', space=vmem, size = 0x2000, scoped, tag = 'input window, operand 0']
    #allocation3 [shape = 's32[2]{0}', space=sflag, size = 0x8, scoped, tag = 'scoped memory for tpu_custom_call.1']
    #allocation4 [shape = 's32[2]{0}', space=sflag, size = 0x8, scoped, tag = 'scoped memory for tpu_custom_call.1']
    #allocation5 [shape = 'u8[1024]{0}', space=vmem, size = 0x400, scoped, tag = 'input window, operand 1, single buffered']
    #allocation6 [shape = 's32[1]{0}', space=sflag, size = 0x4, scoped, tag = 'scoped memory for tpu_custom_call.1']
    #allocation7 [shape = 'u8[1024]{0}', space=vmem, size = 0x400, scoped, tag = 'input window, operand 2, single buffered']
    #allocation8 [shape = 'u8[1024]{0}', space=vmem, size = 0x400, scoped, tag = 'input window, operand 7, single buffered']
    #allocation9 [shape = 's32[1]{0}', space=sflag, size = 0x4, scoped, tag = 'scoped memory for tpu_custom_call.1']
    #allocation10 [shape = 'u8[1024]{0}', space=vmem, size = 0x400, scoped, tag = 'input window, operand 8, single buffered']
    #allocation11 [shape = 'u8[1024]{0}', space=vmem, size = 0x400, scoped, tag = 'input window, operand 10, single buffered']
    #allocation12 [shape = 's32[1]{0}', space=sflag, size = 0x4, scoped, tag = 'scoped memory for tpu_custom_call.1']
    #allocation13 [shape = 'u8[1024]{0}', space=vmem, size = 0x400, scoped, tag = 'input window, operand 12, single buffered']
    #allocation14 [shape = 'u8[8192]{0}', space=vmem, size = 0x2000, scoped, tag = 'output window, operand 0']
    %19 = vsyncpa [#allocation3], 0
    %s20 = scalar_lea.sflag [#allocation3], 1
    %21 = vsyncpa %s20, 0
    %22 = vsyncpa [#allocation6], 0
    %23 = vsyncpa [#allocation9], 0
    %24 = vsyncpa [#allocation12], 0
    %25 = vsyncpa [#allocation4], 0
    %s26 = scalar_lea.sflag [#allocation4], 1
    %27 = vsyncpa %s26, 0
    loop: start=0, step=1, limit=4
    $region2: #{tpu_custom_call.1} parent=1 // loop_pre_header
      _
    $region3: #{tpu_custom_call.1} parent=1 // loop_header
      %s29 = sphi 0, %s33
      %p30 = scmp.ge.s32.totalorder %s29, 4
      %s39 = sphi 0, %s41
      %s42 = sphi 0, %s39
      %s43 = sphi 0, %s42
      %s59 = sphi 0, %s43
      %s63 = sphi 0, %s63
      %s65 = sphi 0, %s63
      %s66 = sphi 0, %s65
      %s80 = sphi 0, %s66
      %s84 = sphi 0, %s84
      %s86 = sphi 0, %s84
      %s87 = sphi 0, %s86
      %s101 = sphi 0, %s87
      %s105 = sphi 0, %s105
      %s107 = sphi 0, %s105
      %s108 = sphi 0, %s107
      %s122 = sphi 0, %s108
      %s126 = sphi 0, %s126
      %s128 = sphi 0, %s126
      %s129 = sphi 0, %s128
      %s143 = sphi 0, %s129
      %s147 = sphi 0, %s147
      %s149 = sphi 0, %s147
      %s150 = sphi 0, %s149
      %s164 = sphi 0, %s150
      %s168 = sphi 0, %s168
      %s170 = sphi 0, %s168
      %s171 = sphi 0, %s170
      %s185 = sphi 0, %s171
      %s189 = sphi 0, %s189
      %s191 = sphi 0, %s189
      %s192 = sphi 0, %s191
      %s206 = sphi 0, %s192
      %s210 = sphi 0, %s210
      %s212 = sphi 0, %s210
      %s213 = sphi 0, %s212
      %s227 = sphi 0, %s213
      %s231 = sphi 0, %s231
      %s233 = sphi 0, %s231
      %s234 = sphi 0, %s233
      %s248 = sphi 0, %s234
      %s252 = sphi 0, %s252
      %s254 = sphi 0, %s252
      %s255 = sphi 0, %s254
      %s269 = sphi 0, %s255
      %s273 = sphi 0, %s273
      %s275 = sphi 0, %s273
      %s276 = sphi 0, %s275
      %s290 = sphi 0, %s276
      %s294 = sphi 0, %s294
      %s296 = sphi 0, %s294
      %s297 = sphi 0, %s296
      %s311 = sphi 0, %s297
      %s315 = sphi 0, %s315
      %s317 = sphi 0, %s315
      %s318 = sphi 0, %s317
      %s332 = sphi 0, %s318
      %s338 = sphi 0, %s340
      %s341 = sphi 0, %s338
      %s342 = sphi 0, %s341
      %s358 = sphi 0, %s342
    $region4: #{tpu_custom_call.1} parent=1 // loop_header_branch
      %32 = sbr.rel (%p30) target = $region8
    $region5: #{tpu_custom_call.1} parent=1 // loop_body
      %s34 = ssub.s32 %s29, 1
      %s35 = ssub.s32 %s29, 2
      %s36 = sadd.s32 %s29, 1
      %s37 = ssub.s32 %s29, %s36
      %p38 = scmp.eq.s32.totalorder %s37, 0
      %s40 = sadd.s32 %s39, 1
      %s41 = scalar_select %p38, %s39, %s40
      %p44 = pneg %p38
      %p45 = scmp.eq.s32.totalorder %s29, 1
      %p46 = por %p44, %p45
      %p47 = scmp.ne.s32.totalorder %s39, %s42
      %p48 = scmp.eq.s32.totalorder %s29, 0
      %p49 = por %p47, %p48
      %p50 = scmp.ne.s32.totalorder %s39, %s42
      %p51 = scmp.eq.s32.totalorder %s34, 1
      %p52 = por %p50, %p51
      %p53 = scmp.ne.s32.totalorder %s42, %s43
      %p54 = scmp.eq.s32.totalorder %s34, 0
      %p55 = por %p53, %p54
      %p56 = scmp.ne.s32.totalorder %s42, %s43
      %p57 = scmp.eq.s32.totalorder %s35, 1
      %p58 = por %p56, %p57
      %p60 = scmp.ne.s32.totalorder %s43, %s59
      %p61 = scmp.eq.s32.totalorder %s35, 0
      %p62 = por %p60, %p61
      %s64 = sadd.s32 %s63, 1
      %p67 = scmp.eq.s32.totalorder %s29, 1
      %p68 = scmp.ne.s32.totalorder %s63, %s65
      %p69 = scmp.eq.s32.totalorder %s29, 0
      %p70 = por %p68, %p69
      %p71 = scmp.ne.s32.totalorder %s63, %s65
      %p72 = scmp.eq.s32.totalorder %s34, 1
      %p73 = por %p71, %p72
      %p74 = scmp.ne.s32.totalorder %s65, %s66
      %p75 = scmp.eq.s32.totalorder %s34, 0
      %p76 = por %p74, %p75
      %p77 = scmp.ne.s32.totalorder %s65, %s66
      %p78 = scmp.eq.s32.totalorder %s35, 1
      %p79 = por %p77, %p78
      %p81 = scmp.ne.s32.totalorder %s66, %s80
      %p82 = scmp.eq.s32.totalorder %s35, 0
      %p83 = por %p81, %p82
      %s85 = sadd.s32 %s84, 1
      %p88 = scmp.eq.s32.totalorder %s29, 1
      %p89 = scmp.ne.s32.totalorder %s84, %s86
      %p90 = scmp.eq.s32.totalorder %s29, 0
      %p91 = por %p89, %p90
      %p92 = scmp.ne.s32.totalorder %s84, %s86
      %p93 = scmp.eq.s32.totalorder %s34, 1
      %p94 = por %p92, %p93
      %p95 = scmp.ne.s32.totalorder %s86, %s87
      %p96 = scmp.eq.s32.totalorder %s34, 0
      %p97 = por %p95, %p96
      %p98 = scmp.ne.s32.totalorder %s86, %s87
      %p99 = scmp.eq.s32.totalorder %s35, 1
      %p100 = por %p98, %p99
      %p102 = scmp.ne.s32.totalorder %s87, %s101
      %p103 = scmp.eq.s32.totalorder %s35, 0
      %p104 = por %p102, %p103
      %s106 = sadd.s32 %s105, 1
      %p109 = scmp.eq.s32.totalorder %s29, 1
      %p110 = scmp.ne.s32.totalorder %s105, %s107
      %p111 = scmp.eq.s32.totalorder %s29, 0
      %p112 = por %p110, %p111
      %p113 = scmp.ne.s32.totalorder %s105, %s107
      %p114 = scmp.eq.s32.totalorder %s34, 1
      %p115 = por %p113, %p114
      %p116 = scmp.ne.s32.totalorder %s107, %s108
      %p117 = scmp.eq.s32.totalorder %s34, 0
      %p118 = por %p116, %p117
      %p119 = scmp.ne.s32.totalorder %s107, %s108
      %p120 = scmp.eq.s32.totalorder %s35, 1
      %p121 = por %p119, %p120
      %p123 = scmp.ne.s32.totalorder %s108, %s122
      %p124 = scmp.eq.s32.totalorder %s35, 0
      %p125 = por %p123, %p124
      %s127 = sadd.s32 %s126, 1
      %p130 = scmp.eq.s32.totalorder %s29, 1
      %p131 = scmp.ne.s32.totalorder %s126, %s128
      %p132 = scmp.eq.s32.totalorder %s29, 0
      %p133 = por %p131, %p132
      %p134 = scmp.ne.s32.totalorder %s126, %s128
      %p135 = scmp.eq.s32.totalorder %s34, 1
      %p136 = por %p134, %p135
      %p137 = scmp.ne.s32.totalorder %s128, %s129
      %p138 = scmp.eq.s32.totalorder %s34, 0
      %p139 = por %p137, %p138
      %p140 = scmp.ne.s32.totalorder %s128, %s129
      %p141 = scmp.eq.s32.totalorder %s35, 1
      %p142 = por %p140, %p141
      %p144 = scmp.ne.s32.totalorder %s129, %s143
      %p145 = scmp.eq.s32.totalorder %s35, 0
      %p146 = por %p144, %p145
      %s148 = sadd.s32 %s147, 1
      %p151 = scmp.eq.s32.totalorder %s29, 1
      %p152 = scmp.ne.s32.totalorder %s147, %s149
      %p153 = scmp.eq.s32.totalorder %s29, 0
      %p154 = por %p152, %p153
      %p155 = scmp.ne.s32.totalorder %s147, %s149
      %p156 = scmp.eq.s32.totalorder %s34, 1
      %p157 = por %p155, %p156
      %p158 = scmp.ne.s32.totalorder %s149, %s150
      %p159 = scmp.eq.s32.totalorder %s34, 0
      %p160 = por %p158, %p159
      %p161 = scmp.ne.s32.totalorder %s149, %s150
      %p162 = scmp.eq.s32.totalorder %s35, 1
      %p163 = por %p161, %p162
      %p165 = scmp.ne.s32.totalorder %s150, %s164
      %p166 = scmp.eq.s32.totalorder %s35, 0
      %p167 = por %p165, %p166
      %s169 = sadd.s32 %s168, 1
      %p172 = scmp.eq.s32.totalorder %s29, 1
      %p173 = scmp.ne.s32.totalorder %s168, %s170
      %p174 = scmp.eq.s32.totalorder %s29, 0
      %p175 = por %p173, %p174
      %p176 = scmp.ne.s32.totalorder %s168, %s170
      %p177 = scmp.eq.s32.totalorder %s34, 1
      %p178 = por %p176, %p177
      %p179 = scmp.ne.s32.totalorder %s170, %s171
      %p180 = scmp.eq.s32.totalorder %s34, 0
      %p181 = por %p179, %p180
      %p182 = scmp.ne.s32.totalorder %s170, %s171
      %p183 = scmp.eq.s32.totalorder %s35, 1
      %p184 = por %p182, %p183
      %p186 = scmp.ne.s32.totalorder %s171, %s185
      %p187 = scmp.eq.s32.totalorder %s35, 0
      %p188 = por %p186, %p187
      %s190 = sadd.s32 %s189, 1
      %p193 = scmp.eq.s32.totalorder %s29, 1
      %p194 = scmp.ne.s32.totalorder %s189, %s191
      %p195 = scmp.eq.s32.totalorder %s29, 0
      %p196 = por %p194, %p195
      %p197 = scmp.ne.s32.totalorder %s189, %s191
      %p198 = scmp.eq.s32.totalorder %s34, 1
      %p199 = por %p197, %p198
      %p200 = scmp.ne.s32.totalorder %s191, %s192
      %p201 = scmp.eq.s32.totalorder %s34, 0
      %p202 = por %p200, %p201
      %p203 = scmp.ne.s32.totalorder %s191, %s192
      %p204 = scmp.eq.s32.totalorder %s35, 1
      %p205 = por %p203, %p204
      %p207 = scmp.ne.s32.totalorder %s192, %s206
      %p208 = scmp.eq.s32.totalorder %s35, 0
      %p209 = por %p207, %p208
      %s211 = sadd.s32 %s210, 1
      %p214 = scmp.eq.s32.totalorder %s29, 1
      %p215 = scmp.ne.s32.totalorder %s210, %s212
      %p216 = scmp.eq.s32.totalorder %s29, 0
      %p217 = por %p215, %p216
      %p218 = scmp.ne.s32.totalorder %s210, %s212
      %p219 = scmp.eq.s32.totalorder %s34, 1
      %p220 = por %p218, %p219
      %p221 = scmp.ne.s32.totalorder %s212, %s213
      %p222 = scmp.eq.s32.totalorder %s34, 0
      %p223 = por %p221, %p222
      %p224 = scmp.ne.s32.totalorder %s212, %s213
      %p225 = scmp.eq.s32.totalorder %s35, 1
      %p226 = por %p224, %p225
      %p228 = scmp.ne.s32.totalorder %s213, %s227
      %p229 = scmp.eq.s32.totalorder %s35, 0
      %p230 = por %p228, %p229
      %s232 = sadd.s32 %s231, 1
      %p235 = scmp.eq.s32.totalorder %s29, 1
      %p236 = scmp.ne.s32.totalorder %s231, %s233
      %p237 = scmp.eq.s32.totalorder %s29, 0
      %p238 = por %p236, %p237
      %p239 = scmp.ne.s32.totalorder %s231, %s233
      %p240 = scmp.eq.s32.totalorder %s34, 1
      %p241 = por %p239, %p240
      %p242 = scmp.ne.s32.totalorder %s233, %s234
      %p243 = scmp.eq.s32.totalorder %s34, 0
      %p244 = por %p242, %p243
      %p245 = scmp.ne.s32.totalorder %s233, %s234
      %p246 = scmp.eq.s32.totalorder %s35, 1
      %p247 = por %p245, %p246
      %p249 = scmp.ne.s32.totalorder %s234, %s248
      %p250 = scmp.eq.s32.totalorder %s35, 0
      %p251 = por %p249, %p250
      %s253 = sadd.s32 %s252, 1
      %p256 = scmp.eq.s32.totalorder %s29, 1
      %p257 = scmp.ne.s32.totalorder %s252, %s254
      %p258 = scmp.eq.s32.totalorder %s29, 0
      %p259 = por %p257, %p258
      %p260 = scmp.ne.s32.totalorder %s252, %s254
      %p261 = scmp.eq.s32.totalorder %s34, 1
      %p262 = por %p260, %p261
      %p263 = scmp.ne.s32.totalorder %s254, %s255
      %p264 = scmp.eq.s32.totalorder %s34, 0
      %p265 = por %p263, %p264
      %p266 = scmp.ne.s32.totalorder %s254, %s255
      %p267 = scmp.eq.s32.totalorder %s35, 1
      %p268 = por %p266, %p267
      %p270 = scmp.ne.s32.totalorder %s255, %s269
      %p271 = scmp.eq.s32.totalorder %s35, 0
      %p272 = por %p270, %p271
      %s274 = sadd.s32 %s273, 1
      %p277 = scmp.eq.s32.totalorder %s29, 1
      %p278 = scmp.ne.s32.totalorder %s273, %s275
      %p279 = scmp.eq.s32.totalorder %s29, 0
      %p280 = por %p278, %p279
      %p281 = scmp.ne.s32.totalorder %s273, %s275
      %p282 = scmp.eq.s32.totalorder %s34, 1
      %p283 = por %p281, %p282
      %p284 = scmp.ne.s32.totalorder %s275, %s276
      %p285 = scmp.eq.s32.totalorder %s34, 0
      %p286 = por %p284, %p285
      %p287 = scmp.ne.s32.totalorder %s275, %s276
      %p288 = scmp.eq.s32.totalorder %s35, 1
      %p289 = por %p287, %p288
      %p291 = scmp.ne.s32.totalorder %s276, %s290
      %p292 = scmp.eq.s32.totalorder %s35, 0
      %p293 = por %p291, %p292
      %s295 = sadd.s32 %s294, 1
      %p298 = scmp.eq.s32.totalorder %s29, 1
      %p299 = scmp.ne.s32.totalorder %s294, %s296
      %p300 = scmp.eq.s32.totalorder %s29, 0
      %p301 = por %p299, %p300
      %p302 = scmp.ne.s32.totalorder %s294, %s296
      %p303 = scmp.eq.s32.totalorder %s34, 1
      %p304 = por %p302, %p303
      %p305 = scmp.ne.s32.totalorder %s296, %s297
      %p306 = scmp.eq.s32.totalorder %s34, 0
      %p307 = por %p305, %p306
      %p308 = scmp.ne.s32.totalorder %s296, %s297
      %p309 = scmp.eq.s32.totalorder %s35, 1
      %p310 = por %p308, %p309
      %p312 = scmp.ne.s32.totalorder %s297, %s311
      %p313 = scmp.eq.s32.totalorder %s35, 0
      %p314 = por %p312, %p313
      %s316 = sadd.s32 %s315, 1
      %p319 = scmp.eq.s32.totalorder %s29, 1
      %p320 = scmp.ne.s32.totalorder %s315, %s317
      %p321 = scmp.eq.s32.totalorder %s29, 0
      %p322 = por %p320, %p321
      %p323 = scmp.ne.s32.totalorder %s315, %s317
      %p324 = scmp.eq.s32.totalorder %s34, 1
      %p325 = por %p323, %p324
      %p326 = scmp.ne.s32.totalorder %s317, %s318
      %p327 = scmp.eq.s32.totalorder %s34, 0
      %p328 = por %p326, %p327
      %p329 = scmp.ne.s32.totalorder %s317, %s318
      %p330 = scmp.eq.s32.totalorder %s35, 1
      %p331 = por %p329, %p330
      %p333 = scmp.ne.s32.totalorder %s318, %s332
      %p334 = scmp.eq.s32.totalorder %s35, 0
      %p335 = por %p333, %p334
      %s336 = ssub.s32 %s29, %s36
      %p337 = scmp.eq.s32.totalorder %s336, 0
      %s339 = sadd.s32 %s338, 1
      %s340 = scalar_select %p337, %s338, %s339
      %p343 = pneg %p337
      %p344 = scmp.eq.s32.totalorder %s29, 1
      %p345 = por %p343, %p344
      %p346 = scmp.ne.s32.totalorder %s338, %s341
      %p347 = scmp.eq.s32.totalorder %s29, 0
      %p348 = por %p346, %p347
      %p349 = scmp.ne.s32.totalorder %s338, %s341
      %p350 = scmp.eq.s32.totalorder %s34, 1
      %p351 = por %p349, %p350
      %p352 = scmp.ne.s32.totalorder %s341, %s342
      %p353 = scmp.eq.s32.totalorder %s34, 0
      %p354 = por %p352, %p353
      %p355 = scmp.ne.s32.totalorder %s341, %s342
      %p356 = scmp.eq.s32.totalorder %s35, 1
      %p357 = por %p355, %p356
      %p359 = scmp.ne.s32.totalorder %s342, %s358
      %p360 = scmp.eq.s32.totalorder %s35, 0
      %p361 = por %p359, %p360
      %p362 = scmp.le.s32.totalorder 1, %s29
      %p363 = scmp.lt.s32.totalorder %s29, 3
      %p364 = pnand %p362, %p363
      %p365 = pneg %p364
      // Predicated region
      $region9: #{tpu_custom_call.1} parent=5 // pred_check
        _
      $region10: #{tpu_custom_call.1} parent=5 // pred_check_branch
        %367 = sbr.rel (%p364) target = $region12
      $region11: #{tpu_custom_call.1} parent=5 // pred_region
        %s368 = ssub.s32 %s29, 1
        // Predicated region
        $region13: #{tpu_custom_call.1} parent=11 // pred_check
          %p369 = pneg %p76
        $region14: #{tpu_custom_call.1} parent=11 // pred_check_branch
          %371 = sbr.rel (%p369) target = $region16
        $region15: #{tpu_custom_call.1} parent=11 // pred_region
          %s373 = ssub.s32 32, 32
          %374 = vsyncadd [#allocation6], %s373
          %s375 = sshll.u32 [#allocation5], 4
          %s376 = int_to_ptr.vmem [resolvable:$true] %s375
          %381 = dma.hbm_to_vmem [thread:$0]  %s1, 32, %s376, [#allocation6], 16, 16, 1
        $region16: #{tpu_custom_call.1} parent=11 // pred_fallthru
          _
        // Predicated region
        $region17: #{tpu_custom_call.1} parent=11 // pred_check
          %p382 = pneg %p97
        $region18: #{tpu_custom_call.1} parent=11 // pred_check_branch
          %384 = sbr.rel (%p382) target = $region20
        $region19: #{tpu_custom_call.1} parent=11 // pred_region
          %s386 = ssub.s32 32, 32
          %387 = vsyncadd [#allocation6], %s386
          %s388 = sshll.u32 [#allocation7], 4
          %s389 = int_to_ptr.vmem [resolvable:$true] %s388
          %394 = dma.hbm_to_vmem [thread:$0]  %s2, 32, %s389, [#allocation6], 16, 16, 1
        $region20: #{tpu_custom_call.1} parent=11 // pred_fallthru
          _
        // Predicated region
        $region21: #{tpu_custom_call.1} parent=11 // pred_check
          %p395 = pneg %p118
        $region22: #{tpu_custom_call.1} parent=11 // pred_check_branch
          %397 = sbr.rel (%p395) target = $region24
        $region23: #{tpu_custom_call.1} parent=11 // pred_region
          _
        $region24: #{tpu_custom_call.1} parent=11 // pred_fallthru
          _
        // Predicated region
        $region25: #{tpu_custom_call.1} parent=11 // pred_check
          %p398 = pneg %p139
        $region26: #{tpu_custom_call.1} parent=11 // pred_check_branch
          %400 = sbr.rel (%p398) target = $region28
        $region27: #{tpu_custom_call.1} parent=11 // pred_region
          _
        $region28: #{tpu_custom_call.1} parent=11 // pred_fallthru
          _
        // Predicated region
        $region29: #{tpu_custom_call.1} parent=11 // pred_check
          %p401 = pneg %p160
        $region30: #{tpu_custom_call.1} parent=11 // pred_check_branch
          %403 = sbr.rel (%p401) target = $region32
        $region31: #{tpu_custom_call.1} parent=11 // pred_region
          _
        $region32: #{tpu_custom_call.1} parent=11 // pred_fallthru
          _
        // Predicated region
        $region33: #{tpu_custom_call.1} parent=11 // pred_check
          %p404 = pneg %p181
        $region34: #{tpu_custom_call.1} parent=11 // pred_check_branch
          %406 = sbr.rel (%p404) target = $region36
        $region35: #{tpu_custom_call.1} parent=11 // pred_region
          _
        $region36: #{tpu_custom_call.1} parent=11 // pred_fallthru
          _
        // Predicated region
        $region37: #{tpu_custom_call.1} parent=11 // pred_check
          %p407 = pneg %p202
        $region38: #{tpu_custom_call.1} parent=11 // pred_check_branch
          %409 = sbr.rel (%p407) target = $region40
        $region39: #{tpu_custom_call.1} parent=11 // pred_region
          %s411 = ssub.s32 32, 32
          %412 = vsyncadd [#allocation9], %s411
          %s413 = sshll.u32 [#allocation8], 4
          %s414 = int_to_ptr.vmem [resolvable:$true] %s413
          %419 = dma.hbm_to_vmem [thread:$0]  %s7, 32, %s414, [#allocation9], 16, 16, 1
        $region40: #{tpu_custom_call.1} parent=11 // pred_fallthru
          _
        // Predicated region
        $region41: #{tpu_custom_call.1} parent=11 // pred_check
          %p420 = pneg %p223
        $region42: #{tpu_custom_call.1} parent=11 // pred_check_branch
          %422 = sbr.rel (%p420) target = $region44
        $region43: #{tpu_custom_call.1} parent=11 // pred_region
          %s424 = ssub.s32 32, 32
          %425 = vsyncadd [#allocation9], %s424
          %s426 = sshll.u32 [#allocation10], 4
          %s427 = int_to_ptr.vmem [resolvable:$true] %s426
          %432 = dma.hbm_to_vmem [thread:$0]  %s8, 32, %s427, [#allocation9], 16, 16, 1
        $region44: #{tpu_custom_call.1} parent=11 // pred_fallthru
          _
        // Predicated region
        $region45: #{tpu_custom_call.1} parent=11 // pred_check
          %p433 = pneg %p244
        $region46: #{tpu_custom_call.1} parent=11 // pred_check_branch
          %435 = sbr.rel (%p433) target = $region48
        $region47: #{tpu_custom_call.1} parent=11 // pred_region
          _
        $region48: #{tpu_custom_call.1} parent=11 // pred_fallthru
          _
        // Predicated region
        $region49: #{tpu_custom_call.1} parent=11 // pred_check
          %p436 = pneg %p265
        $region50: #{tpu_custom_call.1} parent=11 // pred_check_branch
          %438 = sbr.rel (%p436) target = $region52
        $region51: #{tpu_custom_call.1} parent=11 // pred_region
          %s440 = ssub.s32 32, 32
          %441 = vsyncadd [#allocation12], %s440
          %s442 = sshll.u32 [#allocation11], 4
          %s443 = int_to_ptr.vmem [resolvable:$true] %s442
          %448 = dma.hbm_to_vmem [thread:$0]  %s10, 32, %s443, [#allocation12], 16, 16, 1
        $region52: #{tpu_custom_call.1} parent=11 // pred_fallthru
          _
        // Predicated region
        $region53: #{tpu_custom_call.1} parent=11 // pred_check
          %p449 = pneg %p286
        $region54: #{tpu_custom_call.1} parent=11 // pred_check_branch
          %451 = sbr.rel (%p449) target = $region56
        $region55: #{tpu_custom_call.1} parent=11 // pred_region
          _
        $region56: #{tpu_custom_call.1} parent=11 // pred_fallthru
          _
        // Predicated region
        $region57: #{tpu_custom_call.1} parent=11 // pred_check
          %p452 = pneg %p307
        $region58: #{tpu_custom_call.1} parent=11 // pred_check_branch
          %454 = sbr.rel (%p452) target = $region60
        $region59: #{tpu_custom_call.1} parent=11 // pred_region
          %s456 = ssub.s32 32, 32
          %457 = vsyncadd [#allocation12], %s456
          %s458 = sshll.u32 [#allocation13], 4
          %s459 = int_to_ptr.vmem [resolvable:$true] %s458
          %464 = dma.hbm_to_vmem [thread:$0]  %s12, 32, %s459, [#allocation12], 16, 16, 1
        $region60: #{tpu_custom_call.1} parent=11 // pred_fallthru
          _
        // Predicated region
        $region61: #{tpu_custom_call.1} parent=11 // pred_check
          %p465 = pneg %p328
        $region62: #{tpu_custom_call.1} parent=11 // pred_check_branch
          %467 = sbr.rel (%p465) target = $region64
        $region63: #{tpu_custom_call.1} parent=11 // pred_region
          _
        $region64: #{tpu_custom_call.1} parent=11 // pred_fallthru
          _
      $region12: #{tpu_custom_call.1} parent=5 // pred_fallthru
        _
      %p468 = scmp.lt.s32.totalorder %s29, 2
      // Predicated region
      $region65: #{tpu_custom_call.1} parent=5 // pred_check
        %p469 = pneg %p468
      $region66: #{tpu_custom_call.1} parent=5 // pred_check_branch
        %471 = sbr.rel (%p469) target = $region68
      $region67: #{tpu_custom_call.1} parent=5 // pred_region
        // Predicated region
        $region69: #{tpu_custom_call.1} parent=67 // pred_check
          %p472 = pneg %p49
        $region70: #{tpu_custom_call.1} parent=67 // pred_check_branch
          %474 = sbr.rel (%p472) target = $region72
        $region71: #{tpu_custom_call.1} parent=67 // pred_region
          %s475 = sand.u32 %s39, 1
          %s476 = scalar_lea.sflag [#allocation3], %s475
          %s477 = sand.u32 %s39, 1
          %s478 = smul.addr %s477, 8
          %s479 = scalar_lea.vmem [#allocation2], %s478
          %s481 = ssub.s32 128, 128
          %482 = vsyncadd %s476, %s481
          %s483 = smul.addr %s29, 128
          %s484 = scalar_lea.hbm %s0, %s483
          %s486 = sshll.u32 %s479, 4
          %s487 = int_to_ptr.vmem [resolvable:$true] %s486
          %489 = dma.hbm_to_vmem [thread:$0]  %s484, 128, %s487, %s476
        $region72: #{tpu_custom_call.1} parent=67 // pred_fallthru
          _
      $region68: #{tpu_custom_call.1} parent=5 // pred_fallthru
        _
      %p490 = scmp.le.s32.totalorder 1, %s29
      %p491 = scmp.lt.s32.totalorder %s29, 3
      %p492 = pnand %p490, %p491
      %p493 = pneg %p492
      // Predicated region
      $region73: #{tpu_custom_call.1} parent=5 // pred_check
        _
      $region74: #{tpu_custom_call.1} parent=5 // pred_check_branch
        %495 = sbr.rel (%p492) target = $region76
      $region75: #{tpu_custom_call.1} parent=5 // pred_region
        %s496 = ssub.s32 %s29, 1
        %s497 = sand.u32 %s42, 1
        %s498 = scalar_lea.sflag [#allocation3], %s497
        %s499 = sand.u32 %s42, 1
        %s500 = smul.addr %s499, 8
        %s501 = scalar_lea.vmem [#allocation2], %s500
        // Predicated region
        $region77: #{tpu_custom_call.1} parent=75 // pred_check
          %p502 = pneg %p55
        $region78: #{tpu_custom_call.1} parent=75 // pred_check_branch
          %504 = sbr.rel (%p502) target = $region80
        $region79: #{tpu_custom_call.1} parent=75 // pred_region
          %505 = dma.done %s498, 128
        $region80: #{tpu_custom_call.1} parent=75 // pred_fallthru
          _
        // Predicated region
        $region81: #{tpu_custom_call.1} parent=75 // pred_check
          %p506 = pneg %p76
        $region82: #{tpu_custom_call.1} parent=75 // pred_check_branch
          %508 = sbr.rel (%p506) target = $region84
        $region83: #{tpu_custom_call.1} parent=75 // pred_region
          %509 = dma.done [#allocation6], 32
        $region84: #{tpu_custom_call.1} parent=75 // pred_fallthru
          _
        // Predicated region
        $region85: #{tpu_custom_call.1} parent=75 // pred_check
          %p510 = pneg %p97
        $region86: #{tpu_custom_call.1} parent=75 // pred_check_branch
          %512 = sbr.rel (%p510) target = $region88
        $region87: #{tpu_custom_call.1} parent=75 // pred_region
          %513 = dma.done [#allocation6], 32
        $region88: #{tpu_custom_call.1} parent=75 // pred_fallthru
          _
        // Predicated region
        $region89: #{tpu_custom_call.1} parent=75 // pred_check
          %p514 = pneg %p202
        $region90: #{tpu_custom_call.1} parent=75 // pred_check_branch
          %516 = sbr.rel (%p514) target = $region92
        $region91: #{tpu_custom_call.1} parent=75 // pred_region
          %517 = dma.done [#allocation9], 32
        $region92: #{tpu_custom_call.1} parent=75 // pred_fallthru
          _
        // Predicated region
        $region93: #{tpu_custom_call.1} parent=75 // pred_check
          %p518 = pneg %p223
        $region94: #{tpu_custom_call.1} parent=75 // pred_check_branch
          %520 = sbr.rel (%p518) target = $region96
        $region95: #{tpu_custom_call.1} parent=75 // pred_region
          %521 = dma.done [#allocation9], 32
        $region96: #{tpu_custom_call.1} parent=75 // pred_fallthru
          _
        // Predicated region
        $region97: #{tpu_custom_call.1} parent=75 // pred_check
          %p522 = pneg %p265
        $region98: #{tpu_custom_call.1} parent=75 // pred_check_branch
          %524 = sbr.rel (%p522) target = $region100
        $region99: #{tpu_custom_call.1} parent=75 // pred_region
          %525 = dma.done [#allocation12], 32
        $region100: #{tpu_custom_call.1} parent=75 // pred_fallthru
          _
        // Predicated region
        $region101: #{tpu_custom_call.1} parent=75 // pred_check
          %p526 = pneg %p307
        $region102: #{tpu_custom_call.1} parent=75 // pred_check_branch
          %528 = sbr.rel (%p526) target = $region104
        $region103: #{tpu_custom_call.1} parent=75 // pred_region
          %529 = dma.done [#allocation12], 32
        $region104: #{tpu_custom_call.1} parent=75 // pred_fallthru
          _
        %s530 = sand.u32 %s42, 1
        %s531 = scalar_lea.sflag [#allocation3], %s530
        %s532 = sand.u32 %s42, 1
        %s533 = smul.addr %s532, 8
        %s534 = scalar_lea.vmem [#allocation2], %s533
        %p535 = pneg %p55
        %p536 = pneg %p52
        %p537 = pneg %p76
        %p538 = pneg %p73
        %p539 = pneg %p97
        %p540 = pneg %p94
        %p541 = pneg %p118
        %p542 = pneg %p115
        %p543 = pneg %p139
        %p544 = pneg %p136
        %p545 = pneg %p160
        %p546 = pneg %p157
        %p547 = pneg %p181
        %p548 = pneg %p178
        %p549 = pneg %p202
        %p550 = pneg %p199
        %p551 = pneg %p223
        %p552 = pneg %p220
        %p553 = pneg %p244
        %p554 = pneg %p241
        %p555 = pneg %p265
        %p556 = pneg %p262
        %p557 = pneg %p286
        %p558 = pneg %p283
        %p559 = pneg %p307
        %p560 = pneg %p304
        %p561 = pneg %p328
        %p562 = pneg %p325
        %p563 = pneg %p354
        %p564 = pneg %p351
        %s565 = sand.u32 %s341, 1
        %s566 = scalar_lea.sflag [#allocation4], %s565
        %s567 = sand.u32 %s341, 1
        %s568 = smul.addr %s567, 8
        %s569 = scalar_lea.vmem [#allocation14], %s568
        %v571 = vld [vmem:[%s501] sm:$0xff]
        %v572 = vlaneseq
        %v573 = vshrl.u32 %v572, 7
        %v574 = vlaneseq
        %v575 = vand.u32 %v574, 127
        %vm576 = vcmp.ge.s32.totalorder %v573, %v575
        %v577 = vld [vmem:[#allocation5] sm:$0x1]
        %v578 = vld [vmem:[#allocation7] sm:$0x1]
        %vm579 = vcmask 261120
        %v580 = vsel %vm579, %v571, 0.0
        %581 = vadd.xlane.f32.xlu0 %v580
        %v582 = vpop.xlane.xlu0 %581
        %v583 = vrcp.pop 32.0
        %v584 = vmul.f32 %v582, %v583
        %v585 = vsub.f32 %v571, %v584
        %v586 = vmul.f32 %v585, %v585
        %v587 = vsel %vm579, %v586, 0.0
        %588 = vadd.xlane.f32.xlu0 %v587
        %v589 = vpop.xlane.xlu0 %588
        %v590 = vmul.f32 %v589, %v583
        %v591 = vadd.f32 %v590, 1e-05
        %v592 = vrsqrt.pop %v591
        %v593 = vmul.f32 %v585, %v592
        %v595 = vlaneseq
        %v596 = vshrl.u32 %v595, 7
        %v597 = vsub.s32 0, %v596
        %v598 = vrot.slane %v577, %v597
        %v600 = vmul.f32 %v593, %v598
        %v602 = vlaneseq
        %v603 = vshrl.u32 %v602, 7
        %v604 = vsub.s32 0, %v603
        %v605 = vrot.slane %v578, %v604
        %v607 = vadd.f32 %v600, %v605
        %v608 = vpack.c.bf16 %v607, %v607
        %v609 = vld [vmem:[%s3] sm:$0xf]
        %v610 = vld [vmem:[%s3 + $0x4] sm:$0xf]
        %v611 = vld [vmem:[%s3 + $0x8] sm:$0xf]
        %v612 = vld [vmem:[%s3 + $0xc] sm:$0xf]
        %v617 = vunpack.c.l.b16 %v609
        %v618 = vunpack.c.l.b16 %v610
        %v619 = vunpack.c.l.b16 %v611
        %v620 = vunpack.c.l.b16 %v612
        %v621 = vpack.c.b16 %v618, %v617
        %v622 = vpack.c.b16 %v620, %v619
        %v626 = vsel %vm579, %v608, 0
        %628 = vmatprep.subr.bf16.mxu0 0
        %629 = vmatpush1.bf16.msra.mxu0 %v621
        %630 = vmatprep.subr.bf16.mxu0 0
        %631 = vmatpush1.bf16.msra.mxu0 %v622
        %632 = vmatprep.subr.bf16.mxu0 0
        %633 = vmatpush1.bf16.msra.mxu0 0
        %634 = vmatprep.subr.bf16.mxu0 0
        %635 = vmatpush1.bf16.msra.mxu0 0
        %636 = vmatprep.subr.bf16.mxu0 0
        %637 = vmatpush1.bf16.msra.mxu0 0
        %638 = vmatprep.subr.bf16.mxu0 0
        %639 = vmatpush1.bf16.msra.mxu0 0
        %640 = vmatprep.subr.bf16.mxu0 0
        %641 = vmatpush1.bf16.msra.mxu0 0
        %642 = vmatprep.subr.bf16.mxu0 0
        %643 = vmatpush1.bf16.msra.mxu0 0
        %644 = vmatprep.subr.bf16.mxu0 0
        %645 = vmatpush1.bf16.msra.mxu0 0
        %646 = vmatprep.subr.bf16.mxu0 0
        %647 = vmatpush1.bf16.msra.mxu0 0
        %648 = vmatprep.subr.bf16.mxu0 0
        %649 = vmatpush1.bf16.msra.mxu0 0
        %650 = vmatprep.subr.bf16.mxu0 0
        %651 = vmatpush1.bf16.msra.mxu0 0
        %652 = vmatprep.subr.bf16.mxu0 0
        %653 = vmatpush1.bf16.msra.mxu0 0
        %654 = vmatprep.subr.bf16.mxu0 0
        %655 = vmatpush1.bf16.msra.mxu0 0
        %656 = vmatprep.subr.bf16.mxu0 0
        %657 = vmatpush1.bf16.msra.mxu0 0
        %658 = vmatprep.subr.bf16.mxu0 0
        %659 = vmatpush1.bf16.msra.mxu0 0
        %660 = vmatprep.mubr.bf16.mxu0 0
        %661 = vmatmul.mubr.bf16.gmra.mrb[0].mxu0 %v626
        %v662 = vpop.f32.mrb[0].mxu0
        %v663 = vadd.f32 0.0, %v662
        %v664 = vpop.f32.mrb[0].mxu0
        %v665 = vpop.f32.mrb[0].mxu0
        %v666 = vpop.f32.mrb[0].mxu0
        %667 = vdwg.mxu0
        %v668 = vld [vmem:[%s4] sm:$0xf]
        %v669 = vld [vmem:[%s4 + $0x4] sm:$0xf]
        %v670 = vld [vmem:[%s4 + $0x8] sm:$0xf]
        %v671 = vld [vmem:[%s4 + $0xc] sm:$0xf]
        %v676 = vunpack.c.l.b16 %v668
        %v677 = vunpack.c.l.b16 %v669
        %v678 = vunpack.c.l.b16 %v670
        %v679 = vunpack.c.l.b16 %v671
        %v680 = vpack.c.b16 %v677, %v676
        %v681 = vpack.c.b16 %v679, %v678
        %684 = vmatprep.subr.bf16.mxu0 0
        %685 = vmatpush1.bf16.msra.mxu0 %v680
        %686 = vmatprep.subr.bf16.mxu0 0
        %687 = vmatpush1.bf16.msra.mxu0 %v681
        %688 = vmatprep.subr.bf16.mxu0 0
        %689 = vmatpush1.bf16.msra.mxu0 0
        %690 = vmatprep.subr.bf16.mxu0 0
        %691 = vmatpush1.bf16.msra.mxu0 0
        %692 = vmatprep.subr.bf16.mxu0 0
        %693 = vmatpush1.bf16.msra.mxu0 0
        %694 = vmatprep.subr.bf16.mxu0 0
        %695 = vmatpush1.bf16.msra.mxu0 0
        %696 = vmatprep.subr.bf16.mxu0 0
        %697 = vmatpush1.bf16.msra.mxu0 0
        %698 = vmatprep.subr.bf16.mxu0 0
        %699 = vmatpush1.bf16.msra.mxu0 0
        %700 = vmatprep.subr.bf16.mxu0 0
        %701 = vmatpush1.bf16.msra.mxu0 0
        %702 = vmatprep.subr.bf16.mxu0 0
        %703 = vmatpush1.bf16.msra.mxu0 0
        %704 = vmatprep.subr.bf16.mxu0 0
        %705 = vmatpush1.bf16.msra.mxu0 0
        %706 = vmatprep.subr.bf16.mxu0 0
        %707 = vmatpush1.bf16.msra.mxu0 0
        %708 = vmatprep.subr.bf16.mxu0 0
        %709 = vmatpush1.bf16.msra.mxu0 0
        %710 = vmatprep.subr.bf16.mxu0 0
        %711 = vmatpush1.bf16.msra.mxu0 0
        %712 = vmatprep.subr.bf16.mxu0 0
        %713 = vmatpush1.bf16.msra.mxu0 0
        %714 = vmatprep.subr.bf16.mxu0 0
        %715 = vmatpush1.bf16.msra.mxu0 0
        %716 = vmatprep.mubr.bf16.mxu0 0
        %717 = vmatmul.mubr.bf16.gmra.mrb[0].mxu0 %v626
        %v718 = vpop.f32.mrb[0].mxu0
        %v719 = vadd.f32 0.0, %v718
        %v720 = vpop.f32.mrb[0].mxu0
        %v721 = vpop.f32.mrb[0].mxu0
        %v722 = vpop.f32.mrb[0].mxu0
        %723 = vdwg.mxu0
        %v724 = vld [vmem:[%s5] sm:$0xf]
        %v725 = vld [vmem:[%s5 + $0x4] sm:$0xf]
        %v726 = vld [vmem:[%s5 + $0x8] sm:$0xf]
        %v727 = vld [vmem:[%s5 + $0xc] sm:$0xf]
        %v732 = vunpack.c.l.b16 %v724
        %v733 = vunpack.c.l.b16 %v725
        %v734 = vunpack.c.l.b16 %v726
        %v735 = vunpack.c.l.b16 %v727
        %v736 = vpack.c.b16 %v733, %v732
        %v737 = vpack.c.b16 %v735, %v734
        %740 = vmatprep.subr.bf16.mxu0 0
        %741 = vmatpush1.bf16.msra.mxu0 %v736
        %742 = vmatprep.subr.bf16.mxu0 0
        %743 = vmatpush1.bf16.msra.mxu0 %v737
        %744 = vmatprep.subr.bf16.mxu0 0
        %745 = vmatpush1.bf16.msra.mxu0 0
        %746 = vmatprep.subr.bf16.mxu0 0
        %747 = vmatpush1.bf16.msra.mxu0 0
        %748 = vmatprep.subr.bf16.mxu0 0
        %749 = vmatpush1.bf16.msra.mxu0 0
        %750 = vmatprep.subr.bf16.mxu0 0
        %751 = vmatpush1.bf16.msra.mxu0 0
        %752 = vmatprep.subr.bf16.mxu0 0
        %753 = vmatpush1.bf16.msra.mxu0 0
        %754 = vmatprep.subr.bf16.mxu0 0
        %755 = vmatpush1.bf16.msra.mxu0 0
        %756 = vmatprep.subr.bf16.mxu0 0
        %757 = vmatpush1.bf16.msra.mxu0 0
        %758 = vmatprep.subr.bf16.mxu0 0
        %759 = vmatpush1.bf16.msra.mxu0 0
        %760 = vmatprep.subr.bf16.mxu0 0
        %761 = vmatpush1.bf16.msra.mxu0 0
        %762 = vmatprep.subr.bf16.mxu0 0
        %763 = vmatpush1.bf16.msra.mxu0 0
        %764 = vmatprep.subr.bf16.mxu0 0
        %765 = vmatpush1.bf16.msra.mxu0 0
        %766 = vmatprep.subr.bf16.mxu0 0
        %767 = vmatpush1.bf16.msra.mxu0 0
        %768 = vmatprep.subr.bf16.mxu0 0
        %769 = vmatpush1.bf16.msra.mxu0 0
        %770 = vmatprep.subr.bf16.mxu0 0
        %771 = vmatpush1.bf16.msra.mxu0 0
        %772 = vmatprep.mubr.bf16.mxu0 0
        %773 = vmatmul.mubr.bf16.gmra.mrb[0].mxu0 %v626
        %v774 = vpop.f32.mrb[0].mxu0
        %v775 = vadd.f32 0.0, %v774
        %v776 = vpop.f32.mrb[0].mxu0
        %v777 = vpop.f32.mrb[0].mxu0
        %v778 = vpop.f32.mrb[0].mxu0
        %779 = vdwg.mxu0
        %781 = vrot.lane.b32.xlu0 %v663, 120
        %v782 = vpop.permute.xlu0 %781
        %784 = vrot.lane.b32.xlu0 %v663, 112
        %v785 = vpop.permute.xlu0 %784
        %787 = vrot.lane.b32.xlu0 %v663, 104
        %v788 = vpop.permute.xlu0 %787
        %v790 = vcombine.low %v663, %v785
        %v791 = vcombine.high %v663, %v785
        %v793 = vunpack.c.l.s4 1983009808
        %v794 = vunpack.c.0.s8 %v793
        %v795 = vlaneseq
        %v796 = vshrl.u32 %v795, 7
        %v797 = vsub.s32 %v794, %v796
        %v798 = vrot.slane %v790, %v797
        %v800 = vunpack.c.l.s4 1983009808
        %v801 = vunpack.c.0.s8 %v800
        %v802 = vlaneseq
        %v803 = vshrl.u32 %v802, 7
        %v804 = vsub.s32 %v801, %v803
        %v805 = vrot.slane %v791, %v804
        %v806 = vcombine.low %v782, %v788
        %v807 = vcombine.high %v782, %v788
        %v809 = vunpack.c.l.s4 1983009808
        %v810 = vunpack.c.0.s8 %v809
        %v811 = vlaneseq
        %v812 = vshrl.u32 %v811, 7
        %v813 = vsub.s32 %v810, %v812
        %v814 = vrot.slane %v806, %v813
        %v816 = vunpack.c.l.s4 1983009808
        %v817 = vunpack.c.0.s8 %v816
        %v818 = vlaneseq
        %v819 = vshrl.u32 %v818, 7
        %v820 = vsub.s32 %v817, %v819
        %v821 = vrot.slane %v807, %v820
        %v822 = vcombine.low %v798, %v814
        %v823 = vcombine.high %v798, %v814
        %v825 = vunpack.c.l.s4 1934713408
        %v826 = vunpack.c.0.s8 %v825
        %v827 = vlaneseq
        %v828 = vshrl.u32 %v827, 7
        %v829 = vsub.s32 %v826, %v828
        %v830 = vrot.slane %v822, %v829
        %v832 = vunpack.c.l.s4 1934713408
        %v833 = vunpack.c.0.s8 %v832
        %v834 = vlaneseq
        %v835 = vshrl.u32 %v834, 7
        %v836 = vsub.s32 %v833, %v835
        %v837 = vrot.slane %v823, %v836
        %v838 = vcombine.low %v805, %v821
        %v839 = vcombine.high %v805, %v821
        %v841 = vunpack.c.l.s4 1934713408
        %v842 = vunpack.c.0.s8 %v841
        %v843 = vlaneseq
        %v844 = vshrl.u32 %v843, 7
        %v845 = vsub.s32 %v842, %v844
        %v846 = vrot.slane %v838, %v845
        %v848 = vunpack.c.l.s4 1934713408
        %v849 = vunpack.c.0.s8 %v848
        %v850 = vlaneseq
        %v851 = vshrl.u32 %v850, 7
        %v852 = vsub.s32 %v849, %v851
        %v853 = vrot.slane %v839, %v852
        %v854 = vcombine.high %v830, 0.0
        %v855 = vcombine.high %v837, 0.0
        %v856 = vcombine.high %v846, 0.0
        %v857 = vcombine.high %v853, 0.0
        %v858 = vcombine.low %v830, %v837
        %v860 = vunpack.c.l.s4 1983009808
        %v861 = vunpack.c.0.s8 %v860
        %v862 = vlaneseq
        %v863 = vshrl.u32 %v862, 7
        %v864 = vsub.s32 %v861, %v863
        %v865 = vrot.slane %v858, %v864
        %v866 = vcombine.low %v854, %v855
        %v868 = vunpack.c.l.s4 1983009808
        %v869 = vunpack.c.0.s8 %v868
        %v870 = vlaneseq
        %v871 = vshrl.u32 %v870, 7
        %v872 = vsub.s32 %v869, %v871
        %v873 = vrot.slane %v866, %v872
        %v874 = vcombine.low %v846, %v853
        %v876 = vunpack.c.l.s4 1983009808
        %v877 = vunpack.c.0.s8 %v876
        %v878 = vlaneseq
        %v879 = vshrl.u32 %v878, 7
        %v880 = vsub.s32 %v877, %v879
        %v881 = vrot.slane %v874, %v880
        %v882 = vcombine.low %v856, %v857
        %v884 = vunpack.c.l.s4 1983009808
        %v885 = vunpack.c.0.s8 %v884
        %v886 = vlaneseq
        %v887 = vshrl.u32 %v886, 7
        %v888 = vsub.s32 %v885, %v887
        %v889 = vrot.slane %v882, %v888
        %v890 = vcombine.low %v865, %v873
        %v891 = vcombine.high %v865, %v873
        %v893 = vunpack.c.l.s4 1934713408
        %v894 = vunpack.c.0.s8 %v893
        %v895 = vlaneseq
        %v896 = vshrl.u32 %v895, 7
        %v897 = vsub.s32 %v894, %v896
        %v898 = vrot.slane %v890, %v897
        %v900 = vunpack.c.l.s4 1934713408
        %v901 = vunpack.c.0.s8 %v900
        %v902 = vlaneseq
        %v903 = vshrl.u32 %v902, 7
        %v904 = vsub.s32 %v901, %v903
        %v905 = vrot.slane %v891, %v904
        %v906 = vcombine.low %v881, %v889
        %v907 = vcombine.high %v881, %v889
        %v909 = vunpack.c.l.s4 1934713408
        %v910 = vunpack.c.0.s8 %v909
        %v911 = vlaneseq
        %v912 = vshrl.u32 %v911, 7
        %v913 = vsub.s32 %v910, %v912
        %v914 = vrot.slane %v906, %v913
        %v916 = vunpack.c.l.s4 1934713408
        %v917 = vunpack.c.0.s8 %v916
        %v918 = vlaneseq
        %v919 = vshrl.u32 %v918, 7
        %v920 = vsub.s32 %v917, %v919
        %v921 = vrot.slane %v907, %v920
        %v922 = vcombine.low %v898, %v914
        %v923 = vcombine.high %v898, %v914
        %v924 = vcombine.low %v905, %v921
        %v925 = vcombine.high %v905, %v921
        %v926 = vpack.c.bf16 %v922, %v922
        %v927 = vpack.c.bf16 %v923, %v923
        %v928 = vpack.c.bf16 %v924, %v924
        %v929 = vpack.c.bf16 %v925, %v925
        %931 = vrot.lane.b32.xlu0 %v719, 120
        %v932 = vpop.permute.xlu0 %931
        %934 = vrot.lane.b32.xlu0 %v719, 112
        %v935 = vpop.permute.xlu0 %934
        %937 = vrot.lane.b32.xlu0 %v719, 104
        %v938 = vpop.permute.xlu0 %937
        %v940 = vcombine.low %v719, %v935
        %v941 = vcombine.high %v719, %v935
        %v943 = vunpack.c.l.s4 1983009808
        %v944 = vunpack.c.0.s8 %v943
        %v945 = vlaneseq
        %v946 = vshrl.u32 %v945, 7
        %v947 = vsub.s32 %v944, %v946
        %v948 = vrot.slane %v940, %v947
        %v950 = vunpack.c.l.s4 1983009808
        %v951 = vunpack.c.0.s8 %v950
        %v952 = vlaneseq
        %v953 = vshrl.u32 %v952, 7
        %v954 = vsub.s32 %v951, %v953
        %v955 = vrot.slane %v941, %v954
        %v956 = vcombine.low %v932, %v938
        %v957 = vcombine.high %v932, %v938
        %v959 = vunpack.c.l.s4 1983009808
        %v960 = vunpack.c.0.s8 %v959
        %v961 = vlaneseq
        %v962 = vshrl.u32 %v961, 7
        %v963 = vsub.s32 %v960, %v962
        %v964 = vrot.slane %v956, %v963
        %v966 = vunpack.c.l.s4 1983009808
        %v967 = vunpack.c.0.s8 %v966
        %v968 = vlaneseq
        %v969 = vshrl.u32 %v968, 7
        %v970 = vsub.s32 %v967, %v969
        %v971 = vrot.slane %v957, %v970
        %v972 = vcombine.low %v948, %v964
        %v973 = vcombine.high %v948, %v964
        %v975 = vunpack.c.l.s4 1934713408
        %v976 = vunpack.c.0.s8 %v975
        %v977 = vlaneseq
        %v978 = vshrl.u32 %v977, 7
        %v979 = vsub.s32 %v976, %v978
        %v980 = vrot.slane %v972, %v979
        %v982 = vunpack.c.l.s4 1934713408
        %v983 = vunpack.c.0.s8 %v982
        %v984 = vlaneseq
        %v985 = vshrl.u32 %v984, 7
        %v986 = vsub.s32 %v983, %v985
        %v987 = vrot.slane %v973, %v986
        %v988 = vcombine.low %v955, %v971
        %v989 = vcombine.high %v955, %v971
        %v991 = vunpack.c.l.s4 1934713408
        %v992 = vunpack.c.0.s8 %v991
        %v993 = vlaneseq
        %v994 = vshrl.u32 %v993, 7
        %v995 = vsub.s32 %v992, %v994
        %v996 = vrot.slane %v988, %v995
        %v998 = vunpack.c.l.s4 1934713408
        %v999 = vunpack.c.0.s8 %v998
        %v1000 = vlaneseq
        %v1001 = vshrl.u32 %v1000, 7
        %v1002 = vsub.s32 %v999, %v1001
        %v1003 = vrot.slane %v989, %v1002
        %v1004 = vcombine.high %v980, 0.0
        %v1005 = vcombine.high %v987, 0.0
        %v1006 = vcombine.high %v996, 0.0
        %v1007 = vcombine.high %v1003, 0.0
        %v1008 = vcombine.low %v980, %v987
        %v1010 = vunpack.c.l.s4 1983009808
        %v1011 = vunpack.c.0.s8 %v1010
        %v1012 = vlaneseq
        %v1013 = vshrl.u32 %v1012, 7
        %v1014 = vsub.s32 %v1011, %v1013
        %v1015 = vrot.slane %v1008, %v1014
        %v1016 = vcombine.low %v1004, %v1005
        %v1018 = vunpack.c.l.s4 1983009808
        %v1019 = vunpack.c.0.s8 %v1018
        %v1020 = vlaneseq
        %v1021 = vshrl.u32 %v1020, 7
        %v1022 = vsub.s32 %v1019, %v1021
        %v1023 = vrot.slane %v1016, %v1022
        %v1024 = vcombine.low %v996, %v1003
        %v1026 = vunpack.c.l.s4 1983009808
        %v1027 = vunpack.c.0.s8 %v1026
        %v1028 = vlaneseq
        %v1029 = vshrl.u32 %v1028, 7
        %v1030 = vsub.s32 %v1027, %v1029
        %v1031 = vrot.slane %v1024, %v1030
        %v1032 = vcombine.low %v1006, %v1007
        %v1034 = vunpack.c.l.s4 1983009808
        %v1035 = vunpack.c.0.s8 %v1034
        %v1036 = vlaneseq
        %v1037 = vshrl.u32 %v1036, 7
        %v1038 = vsub.s32 %v1035, %v1037
        %v1039 = vrot.slane %v1032, %v1038
        %v1040 = vcombine.low %v1015, %v1023
        %v1041 = vcombine.high %v1015, %v1023
        %v1043 = vunpack.c.l.s4 1934713408
        %v1044 = vunpack.c.0.s8 %v1043
        %v1045 = vlaneseq
        %v1046 = vshrl.u32 %v1045, 7
        %v1047 = vsub.s32 %v1044, %v1046
        %v1048 = vrot.slane %v1040, %v1047
        %v1050 = vunpack.c.l.s4 1934713408
        %v1051 = vunpack.c.0.s8 %v1050
        %v1052 = vlaneseq
        %v1053 = vshrl.u32 %v1052, 7
        %v1054 = vsub.s32 %v1051, %v1053
        %v1055 = vrot.slane %v1041, %v1054
        %v1056 = vcombine.low %v1031, %v1039
        %v1057 = vcombine.high %v1031, %v1039
        %v1059 = vunpack.c.l.s4 1934713408
        %v1060 = vunpack.c.0.s8 %v1059
        %v1061 = vlaneseq
        %v1062 = vshrl.u32 %v1061, 7
        %v1063 = vsub.s32 %v1060, %v1062
        %v1064 = vrot.slane %v1056, %v1063
        %v1066 = vunpack.c.l.s4 1934713408
        %v1067 = vunpack.c.0.s8 %v1066
        %v1068 = vlaneseq
        %v1069 = vshrl.u32 %v1068, 7
        %v1070 = vsub.s32 %v1067, %v1069
        %v1071 = vrot.slane %v1057, %v1070
        %v1072 = vcombine.low %v1048, %v1064
        %v1073 = vcombine.high %v1048, %v1064
        %v1074 = vcombine.low %v1055, %v1071
        %v1075 = vcombine.high %v1055, %v1071
        %v1076 = vpack.c.bf16 %v1072, %v1072
        %v1077 = vpack.c.bf16 %v1073, %v1073
        %v1078 = vpack.c.bf16 %v1074, %v1074
        %v1079 = vpack.c.bf16 %v1075, %v1075
        %1081 = vrot.lane.b32.xlu0 %v775, 120
        %v1082 = vpop.permute.xlu0 %1081
        %1084 = vrot.lane.b32.xlu0 %v775, 112
        %v1085 = vpop.permute.xlu0 %1084
        %1087 = vrot.lane.b32.xlu0 %v775, 104
        %v1088 = vpop.permute.xlu0 %1087
        %v1090 = vcombine.low %v775, %v1085
        %v1091 = vcombine.high %v775, %v1085
        %v1093 = vunpack.c.l.s4 1983009808
        %v1094 = vunpack.c.0.s8 %v1093
        %v1095 = vlaneseq
        %v1096 = vshrl.u32 %v1095, 7
        %v1097 = vsub.s32 %v1094, %v1096
        %v1098 = vrot.slane %v1090, %v1097
        %v1100 = vunpack.c.l.s4 1983009808
        %v1101 = vunpack.c.0.s8 %v1100
        %v1102 = vlaneseq
        %v1103 = vshrl.u32 %v1102, 7
        %v1104 = vsub.s32 %v1101, %v1103
        %v1105 = vrot.slane %v1091, %v1104
        %v1106 = vcombine.low %v1082, %v1088
        %v1107 = vcombine.high %v1082, %v1088
        %v1109 = vunpack.c.l.s4 1983009808
        %v1110 = vunpack.c.0.s8 %v1109
        %v1111 = vlaneseq
        %v1112 = vshrl.u32 %v1111, 7
        %v1113 = vsub.s32 %v1110, %v1112
        %v1114 = vrot.slane %v1106, %v1113
        %v1116 = vunpack.c.l.s4 1983009808
        %v1117 = vunpack.c.0.s8 %v1116
        %v1118 = vlaneseq
        %v1119 = vshrl.u32 %v1118, 7
        %v1120 = vsub.s32 %v1117, %v1119
        %v1121 = vrot.slane %v1107, %v1120
        %v1122 = vcombine.low %v1098, %v1114
        %v1123 = vcombine.high %v1098, %v1114
        %v1125 = vunpack.c.l.s4 1934713408
        %v1126 = vunpack.c.0.s8 %v1125
        %v1127 = vlaneseq
        %v1128 = vshrl.u32 %v1127, 7
        %v1129 = vsub.s32 %v1126, %v1128
        %v1130 = vrot.slane %v1122, %v1129
        %v1132 = vunpack.c.l.s4 1934713408
        %v1133 = vunpack.c.0.s8 %v1132
        %v1134 = vlaneseq
        %v1135 = vshrl.u32 %v1134, 7
        %v1136 = vsub.s32 %v1133, %v1135
        %v1137 = vrot.slane %v1123, %v1136
        %v1138 = vcombine.low %v1105, %v1121
        %v1139 = vcombine.high %v1105, %v1121
        %v1141 = vunpack.c.l.s4 1934713408
        %v1142 = vunpack.c.0.s8 %v1141
        %v1143 = vlaneseq
        %v1144 = vshrl.u32 %v1143, 7
        %v1145 = vsub.s32 %v1142, %v1144
        %v1146 = vrot.slane %v1138, %v1145
        %v1148 = vunpack.c.l.s4 1934713408
        %v1149 = vunpack.c.0.s8 %v1148
        %v1150 = vlaneseq
        %v1151 = vshrl.u32 %v1150, 7
        %v1152 = vsub.s32 %v1149, %v1151
        %v1153 = vrot.slane %v1139, %v1152
        %v1154 = vcombine.high %v1130, 0.0
        %v1155 = vcombine.high %v1137, 0.0
        %v1156 = vcombine.high %v1146, 0.0
        %v1157 = vcombine.high %v1153, 0.0
        %v1158 = vcombine.low %v1130, %v1137
        %v1160 = vunpack.c.l.s4 1983009808
        %v1161 = vunpack.c.0.s8 %v1160
        %v1162 = vlaneseq
        %v1163 = vshrl.u32 %v1162, 7
        %v1164 = vsub.s32 %v1161, %v1163
        %v1165 = vrot.slane %v1158, %v1164
        %v1166 = vcombine.low %v1154, %v1155
        %v1168 = vunpack.c.l.s4 1983009808
        %v1169 = vunpack.c.0.s8 %v1168
        %v1170 = vlaneseq
        %v1171 = vshrl.u32 %v1170, 7
        %v1172 = vsub.s32 %v1169, %v1171
        %v1173 = vrot.slane %v1166, %v1172
        %v1174 = vcombine.low %v1146, %v1153
        %v1176 = vunpack.c.l.s4 1983009808
        %v1177 = vunpack.c.0.s8 %v1176
        %v1178 = vlaneseq
        %v1179 = vshrl.u32 %v1178, 7
        %v1180 = vsub.s32 %v1177, %v1179
        %v1181 = vrot.slane %v1174, %v1180
        %v1182 = vcombine.low %v1156, %v1157
        %v1184 = vunpack.c.l.s4 1983009808
        %v1185 = vunpack.c.0.s8 %v1184
        %v1186 = vlaneseq
        %v1187 = vshrl.u32 %v1186, 7
        %v1188 = vsub.s32 %v1185, %v1187
        %v1189 = vrot.slane %v1182, %v1188
        %v1190 = vcombine.low %v1165, %v1173
        %v1191 = vcombine.high %v1165, %v1173
        %v1193 = vunpack.c.l.s4 1934713408
        %v1194 = vunpack.c.0.s8 %v1193
        %v1195 = vlaneseq
        %v1196 = vshrl.u32 %v1195, 7
        %v1197 = vsub.s32 %v1194, %v1196
        %v1198 = vrot.slane %v1190, %v1197
        %v1200 = vunpack.c.l.s4 1934713408
        %v1201 = vunpack.c.0.s8 %v1200
        %v1202 = vlaneseq
        %v1203 = vshrl.u32 %v1202, 7
        %v1204 = vsub.s32 %v1201, %v1203
        %v1205 = vrot.slane %v1191, %v1204
        %v1206 = vcombine.low %v1181, %v1189
        %v1207 = vcombine.high %v1181, %v1189
        %v1209 = vunpack.c.l.s4 1934713408
        %v1210 = vunpack.c.0.s8 %v1209
        %v1211 = vlaneseq
        %v1212 = vshrl.u32 %v1211, 7
        %v1213 = vsub.s32 %v1210, %v1212
        %v1214 = vrot.slane %v1206, %v1213
        %v1216 = vunpack.c.l.s4 1934713408
        %v1217 = vunpack.c.0.s8 %v1216
        %v1218 = vlaneseq
        %v1219 = vshrl.u32 %v1218, 7
        %v1220 = vsub.s32 %v1217, %v1219
        %v1221 = vrot.slane %v1207, %v1220
        %v1222 = vcombine.low %v1198, %v1214
        %v1223 = vcombine.high %v1198, %v1214
        %v1224 = vcombine.low %v1205, %v1221
        %v1225 = vcombine.high %v1205, %v1221
        %v1226 = vpack.c.bf16 %v1222, %v1222
        %v1227 = vpack.c.bf16 %v1223, %v1223
        %v1228 = vpack.c.bf16 %v1224, %v1224
        %v1229 = vpack.c.bf16 %v1225, %v1225
        %vm1230 = vcmask 64512
        %v1232 = vsel %vm1230, %v926, 0
        %v1235 = vsel %vm1230, %v1076, 0
        %1237 = vmatprep.subr.bf16.mxu0 0
        %1238 = vmatpush1.bf16.xpose.msra.mxu0 %v1235
        %1239 = vmatprep.subr.bf16.mxu0 0
        %1240 = vmatpush1.bf16.xpose.msra.mxu0 0
        %1241 = vmatprep.subr.bf16.mxu0 0
        %1242 = vmatpush1.bf16.xpose.msra.mxu0 0
        %1243 = vmatprep.subr.bf16.mxu0 0
        %1244 = vmatpush1.bf16.xpose.msra.mxu0 0
        %1245 = vmatprep.subr.bf16.mxu0 0
        %1246 = vmatpush1.bf16.xpose.msra.mxu0 0
        %1247 = vmatprep.subr.bf16.mxu0 0
        %1248 = vmatpush1.bf16.xpose.msra.mxu0 0
        %1249 = vmatprep.subr.bf16.mxu0 0
        %1250 = vmatpush1.bf16.xpose.msra.mxu0 0
        %1251 = vmatprep.subr.bf16.mxu0 0
        %1252 = vmatpush1.bf16.xpose.msra.mxu0 0
        %1253 = vmatprep.subr.bf16.mxu0 0
        %1254 = vmatpush1.bf16.xpose.msra.mxu0 0
        %1255 = vmatprep.subr.bf16.mxu0 0
        %1256 = vmatpush1.bf16.xpose.msra.mxu0 0
        %1257 = vmatprep.subr.bf16.mxu0 0
        %1258 = vmatpush1.bf16.xpose.msra.mxu0 0
        %1259 = vmatprep.subr.bf16.mxu0 0
        %1260 = vmatpush1.bf16.xpose.msra.mxu0 0
        %1261 = vmatprep.subr.bf16.mxu0 0
        %1262 = vmatpush1.bf16.xpose.msra.mxu0 0
        %1263 = vmatprep.subr.bf16.mxu0 0
        %1264 = vmatpush1.bf16.xpose.msra.mxu0 0
        %1265 = vmatprep.subr.bf16.mxu0 0
        %1266 = vmatpush1.bf16.xpose.msra.mxu0 0
        %1267 = vmatprep.subr.bf16.mxu0 0
        %1268 = vmatpush1.bf16.xpose.msra.mxu0 0
        %1269 = vmatprep.mubr.bf16.mxu0 0
        %1270 = vmatmul.mubr.bf16.gmra.mrb[0].mxu0 %v1232
        %v1271 = vpop.f32.mrb[0].mxu0
        %v1272 = vadd.f32 0.0, %v1271
        %v1273 = vpop.f32.mrb[0].mxu0
        %v1274 = vpop.f32.mrb[0].mxu0
        %v1275 = vpop.f32.mrb[0].mxu0
        %1276 = vdwg.mxu0
        %v1278 = vsel %vm1230, %v927, 0
        %v1281 = vsel %vm1230, %v1077, 0
        %1283 = vmatprep.subr.bf16.mxu0 0
        %1284 = vmatpush1.bf16.xpose.msra.mxu0 %v1281
        %1285 = vmatprep.subr.bf16.mxu0 0
        %1286 = vmatpush1.bf16.xpose.msra.mxu0 0
        %1287 = vmatprep.subr.bf16.mxu0 0
        %1288 = vmatpush1.bf16.xpose.msra.mxu0 0
        %1289 = vmatprep.subr.bf16.mxu0 0
        %1290 = vmatpush1.bf16.xpose.msra.mxu0 0
        %1291 = vmatprep.subr.bf16.mxu0 0
        %1292 = vmatpush1.bf16.xpose.msra.mxu0 0
        %1293 = vmatprep.subr.bf16.mxu0 0
        %1294 = vmatpush1.bf16.xpose.msra.mxu0 0
        %1295 = vmatprep.subr.bf16.mxu0 0
        %1296 = vmatpush1.bf16.xpose.msra.mxu0 0
        %1297 = vmatprep.subr.bf16.mxu0 0
        %1298 = vmatpush1.bf16.xpose.msra.mxu0 0
        %1299 = vmatprep.subr.bf16.mxu0 0
        %1300 = vmatpush1.bf16.xpose.msra.mxu0 0
        %1301 = vmatprep.subr.bf16.mxu0 0
        %1302 = vmatpush1.bf16.xpose.msra.mxu0 0
        %1303 = vmatprep.subr.bf16.mxu0 0
        %1304 = vmatpush1.bf16.xpose.msra.mxu0 0
        %1305 = vmatprep.subr.bf16.mxu0 0
        %1306 = vmatpush1.bf16.xpose.msra.mxu0 0
        %1307 = vmatprep.subr.bf16.mxu0 0
        %1308 = vmatpush1.bf16.xpose.msra.mxu0 0
        %1309 = vmatprep.subr.bf16.mxu0 0
        %1310 = vmatpush1.bf16.xpose.msra.mxu0 0
        %1311 = vmatprep.subr.bf16.mxu0 0
        %1312 = vmatpush1.bf16.xpose.msra.mxu0 0
        %1313 = vmatprep.subr.bf16.mxu0 0
        %1314 = vmatpush1.bf16.xpose.msra.mxu0 0
        %1315 = vmatprep.mubr.bf16.mxu0 0
        %1316 = vmatmul.mubr.bf16.gmra.mrb[0].mxu0 %v1278
        %v1317 = vpop.f32.mrb[0].mxu0
        %v1318 = vadd.f32 0.0, %v1317
        %v1319 = vpop.f32.mrb[0].mxu0
        %v1320 = vpop.f32.mrb[0].mxu0
        %v1321 = vpop.f32.mrb[0].mxu0
        %1322 = vdwg.mxu0
        %v1324 = vsel %vm1230, %v928, 0
        %v1327 = vsel %vm1230, %v1078, 0
        %1329 = vmatprep.subr.bf16.mxu0 0
        %1330 = vmatpush1.bf16.xpose.msra.mxu0 %v1327
        %1331 = vmatprep.subr.bf16.mxu0 0
        %1332 = vmatpush1.bf16.xpose.msra.mxu0 0
        %1333 = vmatprep.subr.bf16.mxu0 0
        %1334 = vmatpush1.bf16.xpose.msra.mxu0 0
        %1335 = vmatprep.subr.bf16.mxu0 0
        %1336 = vmatpush1.bf16.xpose.msra.mxu0 0
        %1337 = vmatprep.subr.bf16.mxu0 0
        %1338 = vmatpush1.bf16.xpose.msra.mxu0 0
        %1339 = vmatprep.subr.bf16.mxu0 0
        %1340 = vmatpush1.bf16.xpose.msra.mxu0 0
        %1341 = vmatprep.subr.bf16.mxu0 0
        %1342 = vmatpush1.bf16.xpose.msra.mxu0 0
        %1343 = vmatprep.subr.bf16.mxu0 0
        %1344 = vmatpush1.bf16.xpose.msra.mxu0 0
        %1345 = vmatprep.subr.bf16.mxu0 0
        %1346 = vmatpush1.bf16.xpose.msra.mxu0 0
        %1347 = vmatprep.subr.bf16.mxu0 0
        %1348 = vmatpush1.bf16.xpose.msra.mxu0 0
        %1349 = vmatprep.subr.bf16.mxu0 0
        %1350 = vmatpush1.bf16.xpose.msra.mxu0 0
        %1351 = vmatprep.subr.bf16.mxu0 0
        %1352 = vmatpush1.bf16.xpose.msra.mxu0 0
        %1353 = vmatprep.subr.bf16.mxu0 0
        %1354 = vmatpush1.bf16.xpose.msra.mxu0 0
        %1355 = vmatprep.subr.bf16.mxu0 0
        %1356 = vmatpush1.bf16.xpose.msra.mxu0 0
        %1357 = vmatprep.subr.bf16.mxu0 0
        %1358 = vmatpush1.bf16.xpose.msra.mxu0 0
        %1359 = vmatprep.subr.bf16.mxu0 0
        %1360 = vmatpush1.bf16.xpose.msra.mxu0 0
        %1361 = vmatprep.mubr.bf16.mxu0 0
        %1362 = vmatmul.mubr.bf16.gmra.mrb[0].mxu0 %v1324
        %v1363 = vpop.f32.mrb[0].mxu0
        %v1364 = vadd.f32 0.0, %v1363
        %v1365 = vpop.f32.mrb[0].mxu0
        %v1366 = vpop.f32.mrb[0].mxu0
        %v1367 = vpop.f32.mrb[0].mxu0
        %1368 = vdwg.mxu0
        %v1370 = vsel %vm1230, %v929, 0
        %v1373 = vsel %vm1230, %v1079, 0
        %1375 = vmatprep.subr.bf16.mxu0 0
        %1376 = vmatpush1.bf16.xpose.msra.mxu0 %v1373
        %1377 = vmatprep.subr.bf16.mxu0 0
        %1378 = vmatpush1.bf16.xpose.msra.mxu0 0
        %1379 = vmatprep.subr.bf16.mxu0 0
        %1380 = vmatpush1.bf16.xpose.msra.mxu0 0
        %1381 = vmatprep.subr.bf16.mxu0 0
        %1382 = vmatpush1.bf16.xpose.msra.mxu0 0
        %1383 = vmatprep.subr.bf16.mxu0 0
        %1384 = vmatpush1.bf16.xpose.msra.mxu0 0
        %1385 = vmatprep.subr.bf16.mxu0 0
        %1386 = vmatpush1.bf16.xpose.msra.mxu0 0
        %1387 = vmatprep.subr.bf16.mxu0 0
        %1388 = vmatpush1.bf16.xpose.msra.mxu0 0
        %1389 = vmatprep.subr.bf16.mxu0 0
        %1390 = vmatpush1.bf16.xpose.msra.mxu0 0
        %1391 = vmatprep.subr.bf16.mxu0 0
        %1392 = vmatpush1.bf16.xpose.msra.mxu0 0
        %1393 = vmatprep.subr.bf16.mxu0 0
        %1394 = vmatpush1.bf16.xpose.msra.mxu0 0
        %1395 = vmatprep.subr.bf16.mxu0 0
        %1396 = vmatpush1.bf16.xpose.msra.mxu0 0
        %1397 = vmatprep.subr.bf16.mxu0 0
        %1398 = vmatpush1.bf16.xpose.msra.mxu0 0
        %1399 = vmatprep.subr.bf16.mxu0 0
        %1400 = vmatpush1.bf16.xpose.msra.mxu0 0
        %1401 = vmatprep.subr.bf16.mxu0 0
        %1402 = vmatpush1.bf16.xpose.msra.mxu0 0
        %1403 = vmatprep.subr.bf16.mxu0 0
        %1404 = vmatpush1.bf16.xpose.msra.mxu0 0
        %1405 = vmatprep.subr.bf16.mxu0 0
        %1406 = vmatpush1.bf16.xpose.msra.mxu0 0
        %1407 = vmatprep.mubr.bf16.mxu0 0
        %1408 = vmatmul.mubr.bf16.gmra.mrb[0].mxu0 %v1370
        %v1409 = vpop.f32.mrb[0].mxu0
        %v1410 = vadd.f32 0.0, %v1409
        %v1411 = vpop.f32.mrb[0].mxu0
        %v1412 = vpop.f32.mrb[0].mxu0
        %v1413 = vpop.f32.mrb[0].mxu0
        %1414 = vdwg.mxu0
        %v1415 = vsel %vm576, 1, 0
        %vm1416 = vcmp.eq.s32.totalorder %v1415, 1
        %v1417 = vsel %vm1416, %v1272, -1e+30
        %v1418 = vsel %vm1416, %v1318, -1e+30
        %v1419 = vsel %vm1416, %v1364, -1e+30
        %v1420 = vsel %vm1416, %v1410, -1e+30
        %v1421 = vsel %vm1230, %v1417, -inf
        %1422 = vmax.xlane.f32.xlu0 %v1421
        %v1423 = vpop.xlane.xlu0 %1422
        %v1424 = vsel %vm1230, %v1418, -inf
        %1425 = vmax.xlane.f32.xlu0 %v1424
        %v1426 = vpop.xlane.xlu0 %1425
        %v1427 = vsel %vm1230, %v1419, -inf
        %1428 = vmax.xlane.f32.xlu0 %v1427
        %v1429 = vpop.xlane.xlu0 %1428
        %v1430 = vsel %vm1230, %v1420, -inf
        %1431 = vmax.xlane.f32.xlu0 %v1430
        %v1432 = vpop.xlane.xlu0 %1431
        %v1433 = vsub.f32 %v1417, %v1423
        %v1434 = vsub.f32 %v1418, %v1426
        %v1435 = vsub.f32 %v1419, %v1429
        %v1436 = vsub.f32 %v1420, %v1432
        %v1437 = vmul.f32 %v1433, 1.442695
        %v1438 = vpow.pop %v1437
        %v1439 = vmul.f32 %v1434, 1.442695
        %v1440 = vpow.pop %v1439
        %v1441 = vmul.f32 %v1435, 1.442695
        %v1442 = vpow.pop %v1441
        %v1443 = vmul.f32 %v1436, 1.442695
        %v1444 = vpow.pop %v1443
        %v1445 = vsel %vm1230, %v1438, 0.0
        %1446 = vadd.xlane.f32.xlu0 %v1445
        %v1447 = vpop.xlane.xlu0 %1446
        %v1448 = vsel %vm1230, %v1440, 0.0
        %1449 = vadd.xlane.f32.xlu0 %v1448
        %v1450 = vpop.xlane.xlu0 %1449
        %v1451 = vsel %vm1230, %v1442, 0.0
        %1452 = vadd.xlane.f32.xlu0 %v1451
        %v1453 = vpop.xlane.xlu0 %1452
        %v1454 = vsel %vm1230, %v1444, 0.0
        %1455 = vadd.xlane.f32.xlu0 %v1454
        %v1456 = vpop.xlane.xlu0 %1455
        %v1457 = vrcp.pop %v1447
        %v1458 = vrcp.pop %v1450
        %v1459 = vrcp.pop %v1453
        %v1460 = vrcp.pop %v1456
        %v1461 = vmul.f32 %v1438, %v1457
        %v1462 = vmul.f32 %v1440, %v1458
        %v1463 = vmul.f32 %v1442, %v1459
        %v1464 = vmul.f32 %v1444, %v1460
        %v1465 = vpack.c.bf16 %v1461, %v1461
        %v1466 = vpack.c.bf16 %v1462, %v1462
        %v1467 = vpack.c.bf16 %v1463, %v1463
        %v1468 = vpack.c.bf16 %v1464, %v1464
        %v1470 = vsel %vm1230, %v1465, 0
        %vm1472 = vcmask 1043456
        %v1474 = vsel %vm1472, %v1226, 0
        %1476 = vmatprep.subr.bf16.mxu0 0
        %1477 = vmatpush1.bf16.msra.mxu0 %v1474
        %1478 = vmatprep.subr.bf16.mxu0 0
        %1479 = vmatpush1.bf16.msra.mxu0 0
        %1480 = vmatprep.subr.bf16.mxu0 0
        %1481 = vmatpush1.bf16.msra.mxu0 0
        %1482 = vmatprep.subr.bf16.mxu0 0
        %1483 = vmatpush1.bf16.msra.mxu0 0
        %1484 = vmatprep.subr.bf16.mxu0 0
        %1485 = vmatpush1.bf16.msra.mxu0 0
        %1486 = vmatprep.subr.bf16.mxu0 0
        %1487 = vmatpush1.bf16.msra.mxu0 0
        %1488 = vmatprep.subr.bf16.mxu0 0
        %1489 = vmatpush1.bf16.msra.mxu0 0
        %1490 = vmatprep.subr.bf16.mxu0 0
        %1491 = vmatpush1.bf16.msra.mxu0 0
        %1492 = vmatprep.subr.bf16.mxu0 0
        %1493 = vmatpush1.bf16.msra.mxu0 0
        %1494 = vmatprep.subr.bf16.mxu0 0
        %1495 = vmatpush1.bf16.msra.mxu0 0
        %1496 = vmatprep.subr.bf16.mxu0 0
        %1497 = vmatpush1.bf16.msra.mxu0 0
        %1498 = vmatprep.subr.bf16.mxu0 0
        %1499 = vmatpush1.bf16.msra.mxu0 0
        %1500 = vmatprep.subr.bf16.mxu0 0
        %1501 = vmatpush1.bf16.msra.mxu0 0
        %1502 = vmatprep.subr.bf16.mxu0 0
        %1503 = vmatpush1.bf16.msra.mxu0 0
        %1504 = vmatprep.subr.bf16.mxu0 0
        %1505 = vmatpush1.bf16.msra.mxu0 0
        %1506 = vmatprep.subr.bf16.mxu0 0
        %1507 = vmatpush1.bf16.msra.mxu0 0
        %1508 = vmatprep.mubr.bf16.mxu0 0
        %1509 = vmatmul.mubr.bf16.gmra.mrb[0].mxu0 %v1470
        %v1510 = vpop.f32.mrb[0].mxu0
        %v1511 = vadd.f32 0.0, %v1510
        %v1512 = vpop.f32.mrb[0].mxu0
        %v1513 = vpop.f32.mrb[0].mxu0
        %v1514 = vpop.f32.mrb[0].mxu0
        %1515 = vdwg.mxu0
        %v1517 = vsel %vm1230, %v1466, 0
        %v1520 = vsel %vm1472, %v1227, 0
        %1522 = vmatprep.subr.bf16.mxu0 0
        %1523 = vmatpush1.bf16.msra.mxu0 %v1520
        %1524 = vmatprep.subr.bf16.mxu0 0
        %1525 = vmatpush1.bf16.msra.mxu0 0
        %1526 = vmatprep.subr.bf16.mxu0 0
        %1527 = vmatpush1.bf16.msra.mxu0 0
        %1528 = vmatprep.subr.bf16.mxu0 0
        %1529 = vmatpush1.bf16.msra.mxu0 0
        %1530 = vmatprep.subr.bf16.mxu0 0
        %1531 = vmatpush1.bf16.msra.mxu0 0
        %1532 = vmatprep.subr.bf16.mxu0 0
        %1533 = vmatpush1.bf16.msra.mxu0 0
        %1534 = vmatprep.subr.bf16.mxu0 0
        %1535 = vmatpush1.bf16.msra.mxu0 0
        %1536 = vmatprep.subr.bf16.mxu0 0
        %1537 = vmatpush1.bf16.msra.mxu0 0
        %1538 = vmatprep.subr.bf16.mxu0 0
        %1539 = vmatpush1.bf16.msra.mxu0 0
        %1540 = vmatprep.subr.bf16.mxu0 0
        %1541 = vmatpush1.bf16.msra.mxu0 0
        %1542 = vmatprep.subr.bf16.mxu0 0
        %1543 = vmatpush1.bf16.msra.mxu0 0
        %1544 = vmatprep.subr.bf16.mxu0 0
        %1545 = vmatpush1.bf16.msra.mxu0 0
        %1546 = vmatprep.subr.bf16.mxu0 0
        %1547 = vmatpush1.bf16.msra.mxu0 0
        %1548 = vmatprep.subr.bf16.mxu0 0
        %1549 = vmatpush1.bf16.msra.mxu0 0
        %1550 = vmatprep.subr.bf16.mxu0 0
        %1551 = vmatpush1.bf16.msra.mxu0 0
        %1552 = vmatprep.subr.bf16.mxu0 0
        %1553 = vmatpush1.bf16.msra.mxu0 0
        %1554 = vmatprep.mubr.bf16.mxu0 0
        %1555 = vmatmul.mubr.bf16.gmra.mrb[0].mxu0 %v1517
        %v1556 = vpop.f32.mrb[0].mxu0
        %v1557 = vadd.f32 0.0, %v1556
        %v1558 = vpop.f32.mrb[0].mxu0
        %v1559 = vpop.f32.mrb[0].mxu0
        %v1560 = vpop.f32.mrb[0].mxu0
        %1561 = vdwg.mxu0
        %v1563 = vsel %vm1230, %v1467, 0
        %v1566 = vsel %vm1472, %v1228, 0
        %1568 = vmatprep.subr.bf16.mxu0 0
        %1569 = vmatpush1.bf16.msra.mxu0 %v1566
        %1570 = vmatprep.subr.bf16.mxu0 0
        %1571 = vmatpush1.bf16.msra.mxu0 0
        %1572 = vmatprep.subr.bf16.mxu0 0
        %1573 = vmatpush1.bf16.msra.mxu0 0
        %1574 = vmatprep.subr.bf16.mxu0 0
        %1575 = vmatpush1.bf16.msra.mxu0 0
        %1576 = vmatprep.subr.bf16.mxu0 0
        %1577 = vmatpush1.bf16.msra.mxu0 0
        %1578 = vmatprep.subr.bf16.mxu0 0
        %1579 = vmatpush1.bf16.msra.mxu0 0
        %1580 = vmatprep.subr.bf16.mxu0 0
        %1581 = vmatpush1.bf16.msra.mxu0 0
        %1582 = vmatprep.subr.bf16.mxu0 0
        %1583 = vmatpush1.bf16.msra.mxu0 0
        %1584 = vmatprep.subr.bf16.mxu0 0
        %1585 = vmatpush1.bf16.msra.mxu0 0
        %1586 = vmatprep.subr.bf16.mxu0 0
        %1587 = vmatpush1.bf16.msra.mxu0 0
        %1588 = vmatprep.subr.bf16.mxu0 0
        %1589 = vmatpush1.bf16.msra.mxu0 0
        %1590 = vmatprep.subr.bf16.mxu0 0
        %1591 = vmatpush1.bf16.msra.mxu0 0
        %1592 = vmatprep.subr.bf16.mxu0 0
        %1593 = vmatpush1.bf16.msra.mxu0 0
        %1594 = vmatprep.subr.bf16.mxu0 0
        %1595 = vmatpush1.bf16.msra.mxu0 0
        %1596 = vmatprep.subr.bf16.mxu0 0
        %1597 = vmatpush1.bf16.msra.mxu0 0
        %1598 = vmatprep.subr.bf16.mxu0 0
        %1599 = vmatpush1.bf16.msra.mxu0 0
        %1600 = vmatprep.mubr.bf16.mxu0 0
        %1601 = vmatmul.mubr.bf16.gmra.mrb[0].mxu0 %v1563
        %v1602 = vpop.f32.mrb[0].mxu0
        %v1603 = vadd.f32 0.0, %v1602
        %v1604 = vpop.f32.mrb[0].mxu0
        %v1605 = vpop.f32.mrb[0].mxu0
        %v1606 = vpop.f32.mrb[0].mxu0
        %1607 = vdwg.mxu0
        %v1609 = vsel %vm1230, %v1468, 0
        %v1612 = vsel %vm1472, %v1229, 0
        %1614 = vmatprep.subr.bf16.mxu0 0
        %1615 = vmatpush1.bf16.msra.mxu0 %v1612
        %1616 = vmatprep.subr.bf16.mxu0 0
        %1617 = vmatpush1.bf16.msra.mxu0 0
        %1618 = vmatprep.subr.bf16.mxu0 0
        %1619 = vmatpush1.bf16.msra.mxu0 0
        %1620 = vmatprep.subr.bf16.mxu0 0
        %1621 = vmatpush1.bf16.msra.mxu0 0
        %1622 = vmatprep.subr.bf16.mxu0 0
        %1623 = vmatpush1.bf16.msra.mxu0 0
        %1624 = vmatprep.subr.bf16.mxu0 0
        %1625 = vmatpush1.bf16.msra.mxu0 0
        %1626 = vmatprep.subr.bf16.mxu0 0
        %1627 = vmatpush1.bf16.msra.mxu0 0
        %1628 = vmatprep.subr.bf16.mxu0 0
        %1629 = vmatpush1.bf16.msra.mxu0 0
        %1630 = vmatprep.subr.bf16.mxu0 0
        %1631 = vmatpush1.bf16.msra.mxu0 0
        %1632 = vmatprep.subr.bf16.mxu0 0
        %1633 = vmatpush1.bf16.msra.mxu0 0
        %1634 = vmatprep.subr.bf16.mxu0 0
        %1635 = vmatpush1.bf16.msra.mxu0 0
        %1636 = vmatprep.subr.bf16.mxu0 0
        %1637 = vmatpush1.bf16.msra.mxu0 0
        %1638 = vmatprep.subr.bf16.mxu0 0
        %1639 = vmatpush1.bf16.msra.mxu0 0
        %1640 = vmatprep.subr.bf16.mxu0 0
        %1641 = vmatpush1.bf16.msra.mxu0 0
        %1642 = vmatprep.subr.bf16.mxu0 0
        %1643 = vmatpush1.bf16.msra.mxu0 0
        %1644 = vmatprep.subr.bf16.mxu0 0
        %1645 = vmatpush1.bf16.msra.mxu0 0
        %1646 = vmatprep.mubr.bf16.mxu0 0
        %1647 = vmatmul.mubr.bf16.gmra.mrb[0].mxu0 %v1609
        %v1648 = vpop.f32.mrb[0].mxu0
        %v1649 = vadd.f32 0.0, %v1648
        %v1650 = vpop.f32.mrb[0].mxu0
        %v1651 = vpop.f32.mrb[0].mxu0
        %v1652 = vpop.f32.mrb[0].mxu0
        %1653 = vdwg.mxu0
        %v1654 = vcombine.low %v1511, %v1603
        %v1655 = vcombine.high %v1511, %v1603
        %v1657 = vunpack.c.l.s4 1983009808
        %v1658 = vunpack.c.0.s8 %v1657
        %v1659 = vlaneseq
        %v1660 = vshrl.u32 %v1659, 7
        %v1661 = vsub.s32 %v1658, %v1660
        %v1662 = vrot.slane %v1654, %v1661
        %v1664 = vunpack.c.l.s4 1983009808
        %v1665 = vunpack.c.0.s8 %v1664
        %v1666 = vlaneseq
        %v1667 = vshrl.u32 %v1666, 7
        %v1668 = vsub.s32 %v1665, %v1667
        %v1669 = vrot.slane %v1655, %v1668
        %v1670 = vcombine.low %v1557, %v1649
        %v1671 = vcombine.high %v1557, %v1649
        %v1673 = vunpack.c.l.s4 1983009808
        %v1674 = vunpack.c.0.s8 %v1673
        %v1675 = vlaneseq
        %v1676 = vshrl.u32 %v1675, 7
        %v1677 = vsub.s32 %v1674, %v1676
        %v1678 = vrot.slane %v1670, %v1677
        %v1680 = vunpack.c.l.s4 1983009808
        %v1681 = vunpack.c.0.s8 %v1680
        %v1682 = vlaneseq
        %v1683 = vshrl.u32 %v1682, 7
        %v1684 = vsub.s32 %v1681, %v1683
        %v1685 = vrot.slane %v1671, %v1684
        %v1686 = vcombine.low %v1662, %v1678
        %v1687 = vcombine.high %v1662, %v1678
        %v1689 = vunpack.c.l.s4 1934713408
        %v1690 = vunpack.c.0.s8 %v1689
        %v1691 = vlaneseq
        %v1692 = vshrl.u32 %v1691, 7
        %v1693 = vsub.s32 %v1690, %v1692
        %v1694 = vrot.slane %v1686, %v1693
        %v1696 = vunpack.c.l.s4 1934713408
        %v1697 = vunpack.c.0.s8 %v1696
        %v1698 = vlaneseq
        %v1699 = vshrl.u32 %v1698, 7
        %v1700 = vsub.s32 %v1697, %v1699
        %v1701 = vrot.slane %v1687, %v1700
        %v1702 = vcombine.low %v1669, %v1685
        %v1703 = vcombine.high %v1669, %v1685
        %v1705 = vunpack.c.l.s4 1934713408
        %v1706 = vunpack.c.0.s8 %v1705
        %v1707 = vlaneseq
        %v1708 = vshrl.u32 %v1707, 7
        %v1709 = vsub.s32 %v1706, %v1708
        %v1710 = vrot.slane %v1702, %v1709
        %v1712 = vunpack.c.l.s4 1934713408
        %v1713 = vunpack.c.0.s8 %v1712
        %v1714 = vlaneseq
        %v1715 = vshrl.u32 %v1714, 7
        %v1716 = vsub.s32 %v1713, %v1715
        %v1717 = vrot.slane %v1703, %v1716
        %v1718 = vcombine.high %v1694, 0.0
        %v1719 = vcombine.high %v1701, 0.0
        %v1720 = vcombine.high %v1710, 0.0
        %v1721 = vcombine.high %v1717, 0.0
        %v1722 = vcombine.low %v1694, %v1701
        %v1724 = vunpack.c.l.s4 1983009808
        %v1725 = vunpack.c.0.s8 %v1724
        %v1726 = vlaneseq
        %v1727 = vshrl.u32 %v1726, 7
        %v1728 = vsub.s32 %v1725, %v1727
        %v1729 = vrot.slane %v1722, %v1728
        %v1730 = vcombine.low %v1718, %v1719
        %v1732 = vunpack.c.l.s4 1983009808
        %v1733 = vunpack.c.0.s8 %v1732
        %v1734 = vlaneseq
        %v1735 = vshrl.u32 %v1734, 7
        %v1736 = vsub.s32 %v1733, %v1735
        %v1737 = vrot.slane %v1730, %v1736
        %v1738 = vcombine.low %v1710, %v1717
        %v1740 = vunpack.c.l.s4 1983009808
        %v1741 = vunpack.c.0.s8 %v1740
        %v1742 = vlaneseq
        %v1743 = vshrl.u32 %v1742, 7
        %v1744 = vsub.s32 %v1741, %v1743
        %v1745 = vrot.slane %v1738, %v1744
        %v1746 = vcombine.low %v1720, %v1721
        %v1748 = vunpack.c.l.s4 1983009808
        %v1749 = vunpack.c.0.s8 %v1748
        %v1750 = vlaneseq
        %v1751 = vshrl.u32 %v1750, 7
        %v1752 = vsub.s32 %v1749, %v1751
        %v1753 = vrot.slane %v1746, %v1752
        %v1754 = vcombine.low %v1729, %v1737
        %v1755 = vcombine.high %v1729, %v1737
        %v1757 = vunpack.c.l.s4 1934713408
        %v1758 = vunpack.c.0.s8 %v1757
        %v1759 = vlaneseq
        %v1760 = vshrl.u32 %v1759, 7
        %v1761 = vsub.s32 %v1758, %v1760
        %v1762 = vrot.slane %v1754, %v1761
        %v1764 = vunpack.c.l.s4 1934713408
        %v1765 = vunpack.c.0.s8 %v1764
        %v1766 = vlaneseq
        %v1767 = vshrl.u32 %v1766, 7
        %v1768 = vsub.s32 %v1765, %v1767
        %v1769 = vrot.slane %v1755, %v1768
        %v1770 = vcombine.low %v1745, %v1753
        %v1771 = vcombine.high %v1745, %v1753
        %v1773 = vunpack.c.l.s4 1934713408
        %v1774 = vunpack.c.0.s8 %v1773
        %v1775 = vlaneseq
        %v1776 = vshrl.u32 %v1775, 7
        %v1777 = vsub.s32 %v1774, %v1776
        %v1778 = vrot.slane %v1770, %v1777
        %v1780 = vunpack.c.l.s4 1934713408
        %v1781 = vunpack.c.0.s8 %v1780
        %v1782 = vlaneseq
        %v1783 = vshrl.u32 %v1782, 7
        %v1784 = vsub.s32 %v1781, %v1783
        %v1785 = vrot.slane %v1771, %v1784
        %v1786 = vcombine.low %v1762, %v1778
        %v1787 = vcombine.high %v1762, %v1778
        %v1788 = vcombine.low %v1769, %v1785
        %v1789 = vcombine.high %v1769, %v1785
        %1791 = vrot.lane.b32.xlu0 %v1787, 8
        %v1792 = vpop.permute.xlu0 %1791
        %1795 = vrot.lane.b32.xlu0 %v1788, 16
        %v1796 = vpop.permute.xlu0 %1795
        %1799 = vrot.lane.b32.xlu0 %v1789, 24
        %v1800 = vpop.permute.xlu0 %1799
        %v1802 = vsel %vm1230, %v1786, %v1792
        %vm1803 = vcmask 130048
        %v1804 = vsel %vm1803, %v1802, %v1796
        %vm1805 = vcmask 195584
        %v1806 = vsel %vm1805, %v1804, %v1800
        %v1807 = vpack.c.bf16 %v1806, %v1806
        %v1808 = vld [vmem:[%s6] sm:$0xf]
        %v1809 = vld [vmem:[%s6 + $0x4] sm:$0xf]
        %v1810 = vld [vmem:[%s6 + $0x8] sm:$0xf]
        %v1811 = vld [vmem:[%s6 + $0xc] sm:$0xf]
        %v1816 = vunpack.c.l.b16 %v1808
        %v1817 = vunpack.c.l.b16 %v1809
        %v1818 = vunpack.c.l.b16 %v1810
        %v1819 = vunpack.c.l.b16 %v1811
        %v1820 = vpack.c.b16 %v1817, %v1816
        %v1821 = vpack.c.b16 %v1819, %v1818
        %v1825 = vsel %vm579, %v1807, 0
        %1827 = vmatprep.subr.bf16.mxu0 0
        %1828 = vmatpush1.bf16.msra.mxu0 %v1820
        %1829 = vmatprep.subr.bf16.mxu0 0
        %1830 = vmatpush1.bf16.msra.mxu0 %v1821
        %1831 = vmatprep.subr.bf16.mxu0 0
        %1832 = vmatpush1.bf16.msra.mxu0 0
        %1833 = vmatprep.subr.bf16.mxu0 0
        %1834 = vmatpush1.bf16.msra.mxu0 0
        %1835 = vmatprep.subr.bf16.mxu0 0
        %1836 = vmatpush1.bf16.msra.mxu0 0
        %1837 = vmatprep.subr.bf16.mxu0 0
        %1838 = vmatpush1.bf16.msra.mxu0 0
        %1839 = vmatprep.subr.bf16.mxu0 0
        %1840 = vmatpush1.bf16.msra.mxu0 0
        %1841 = vmatprep.subr.bf16.mxu0 0
        %1842 = vmatpush1.bf16.msra.mxu0 0
        %1843 = vmatprep.subr.bf16.mxu0 0
        %1844 = vmatpush1.bf16.msra.mxu0 0
        %1845 = vmatprep.subr.bf16.mxu0 0
        %1846 = vmatpush1.bf16.msra.mxu0 0
        %1847 = vmatprep.subr.bf16.mxu0 0
        %1848 = vmatpush1.bf16.msra.mxu0 0
        %1849 = vmatprep.subr.bf16.mxu0 0
        %1850 = vmatpush1.bf16.msra.mxu0 0
        %1851 = vmatprep.subr.bf16.mxu0 0
        %1852 = vmatpush1.bf16.msra.mxu0 0
        %1853 = vmatprep.subr.bf16.mxu0 0
        %1854 = vmatpush1.bf16.msra.mxu0 0
        %1855 = vmatprep.subr.bf16.mxu0 0
        %1856 = vmatpush1.bf16.msra.mxu0 0
        %1857 = vmatprep.subr.bf16.mxu0 0
        %1858 = vmatpush1.bf16.msra.mxu0 0
        %1859 = vmatprep.mubr.bf16.mxu0 0
        %1860 = vmatmul.mubr.bf16.gmra.mrb[0].mxu0 %v1825
        %v1861 = vpop.f32.mrb[0].mxu0
        %v1862 = vadd.f32 0.0, %v1861
        %v1863 = vpop.f32.mrb[0].mxu0
        %v1864 = vpop.f32.mrb[0].mxu0
        %v1865 = vpop.f32.mrb[0].mxu0
        %1866 = vdwg.mxu0
        %v1867 = vadd.f32 %v571, %v1862
        %v1868 = vld [vmem:[#allocation8] sm:$0x1]
        %v1869 = vld [vmem:[#allocation10] sm:$0x1]
        %v1870 = vsel %vm579, %v1867, 0.0
        %1871 = vadd.xlane.f32.xlu0 %v1870
        %v1872 = vpop.xlane.xlu0 %1871
        %v1873 = vmul.f32 %v1872, %v583
        %v1874 = vsub.f32 %v1867, %v1873
        %v1875 = vmul.f32 %v1874, %v1874
        %v1876 = vsel %vm579, %v1875, 0.0
        %1877 = vadd.xlane.f32.xlu0 %v1876
        %v1878 = vpop.xlane.xlu0 %1877
        %v1879 = vmul.f32 %v1878, %v583
        %v1880 = vadd.f32 %v1879, 1e-05
        %v1881 = vrsqrt.pop %v1880
        %v1882 = vmul.f32 %v1874, %v1881
        %v1884 = vlaneseq
        %v1885 = vshrl.u32 %v1884, 7
        %v1886 = vsub.s32 0, %v1885
        %v1887 = vrot.slane %v1868, %v1886
        %v1889 = vmul.f32 %v1882, %v1887
        %v1891 = vlaneseq
        %v1892 = vshrl.u32 %v1891, 7
        %v1893 = vsub.s32 0, %v1892
        %v1894 = vrot.slane %v1869, %v1893
        %v1896 = vadd.f32 %v1889, %v1894
        %v1897 = vpack.c.bf16 %v1896, %v1896
        %v1898 = vld [vmem:[%s9] sm:$0xf]
        %v1899 = vld [vmem:[%s9 + $0x4] sm:$0xf]
        %v1900 = vld [vmem:[%s9 + $0x8] sm:$0xf]
        %v1901 = vld [vmem:[%s9 + $0xc] sm:$0xf]
        %v1902 = vld [vmem:[#allocation11] sm:$0x1]
        %v1904 = vlaneseq
        %v1905 = vshrl.u32 %v1904, 7
        %v1906 = vsub.s32 0, %v1905
        %v1907 = vrot.slane %v1902, %v1906
        %v1913 = vunpack.c.l.b16 %v1898
        %v1914 = vunpack.c.l.b16 %v1899
        %v1915 = vunpack.c.l.b16 %v1900
        %v1916 = vunpack.c.l.b16 %v1901
        %v1917 = vpack.c.b16 %v1914, %v1913
        %v1918 = vpack.c.b16 %v1916, %v1915
        %v1922 = vsel %vm579, %v1897, 0
        %1924 = vmatprep.subr.bf16.mxu0 0
        %1925 = vmatpush1.bf16.msra.mxu0 %v1917
        %1926 = vmatprep.subr.bf16.mxu0 0
        %1927 = vmatpush1.bf16.msra.mxu0 %v1918
        %1928 = vmatprep.subr.bf16.mxu0 0
        %1929 = vmatpush1.bf16.msra.mxu0 0
        %1930 = vmatprep.subr.bf16.mxu0 0
        %1931 = vmatpush1.bf16.msra.mxu0 0
        %1932 = vmatprep.subr.bf16.mxu0 0
        %1933 = vmatpush1.bf16.msra.mxu0 0
        %1934 = vmatprep.subr.bf16.mxu0 0
        %1935 = vmatpush1.bf16.msra.mxu0 0
        %1936 = vmatprep.subr.bf16.mxu0 0
        %1937 = vmatpush1.bf16.msra.mxu0 0
        %1938 = vmatprep.subr.bf16.mxu0 0
        %1939 = vmatpush1.bf16.msra.mxu0 0
        %1940 = vmatprep.subr.bf16.mxu0 0
        %1941 = vmatpush1.bf16.msra.mxu0 0
        %1942 = vmatprep.subr.bf16.mxu0 0
        %1943 = vmatpush1.bf16.msra.mxu0 0
        %1944 = vmatprep.subr.bf16.mxu0 0
        %1945 = vmatpush1.bf16.msra.mxu0 0
        %1946 = vmatprep.subr.bf16.mxu0 0
        %1947 = vmatpush1.bf16.msra.mxu0 0
        %1948 = vmatprep.subr.bf16.mxu0 0
        %1949 = vmatpush1.bf16.msra.mxu0 0
        %1950 = vmatprep.subr.bf16.mxu0 0
        %1951 = vmatpush1.bf16.msra.mxu0 0
        %1952 = vmatprep.subr.bf16.mxu0 0
        %1953 = vmatpush1.bf16.msra.mxu0 0
        %1954 = vmatprep.subr.bf16.mxu0 0
        %1955 = vmatpush1.bf16.msra.mxu0 0
        %1956 = vmatprep.mubr.bf16.mxu0 0
        %1957 = vmatmul.mubr.bf16.gmra.mrb[0].mxu0 %v1922
        %v1958 = vpop.f32.mrb[0].mxu0
        %v1959 = vadd.f32 %v1907, %v1958
        %v1960 = vpop.f32.mrb[0].mxu0
        %v1961 = vpop.f32.mrb[0].mxu0
        %v1962 = vpop.f32.mrb[0].mxu0
        %1963 = vdwg.mxu0
        %v1964 = vmax.f32 %v1959, 0.0
        %v1965 = vpack.c.bf16 %v1964, %v1964
        %v1966 = vld [vmem:[%s11] sm:$0xf]
        %v1967 = vld [vmem:[%s11 + $0x4] sm:$0xf]
        %v1968 = vld [vmem:[%s11 + $0x8] sm:$0xf]
        %v1969 = vld [vmem:[%s11 + $0xc] sm:$0xf]
        %v1970 = vld [vmem:[%s11 + $0x10] sm:$0xf]
        %v1971 = vld [vmem:[%s11 + $0x14] sm:$0xf]
        %v1972 = vld [vmem:[%s11 + $0x18] sm:$0xf]
        %v1973 = vld [vmem:[%s11 + $0x1c] sm:$0xf]
        %v1974 = vld [vmem:[%s11 + $0x20] sm:$0xf]
        %v1975 = vld [vmem:[%s11 + $0x24] sm:$0xf]
        %v1976 = vld [vmem:[%s11 + $0x28] sm:$0xf]
        %v1977 = vld [vmem:[%s11 + $0x2c] sm:$0xf]
        %v1978 = vld [vmem:[%s11 + $0x30] sm:$0xf]
        %v1979 = vld [vmem:[%s11 + $0x34] sm:$0xf]
        %v1980 = vld [vmem:[%s11 + $0x38] sm:$0xf]
        %v1981 = vld [vmem:[%s11 + $0x3c] sm:$0xf]
        %v1998 = vunpack.c.l.b16 %v1966
        %v1999 = vunpack.c.l.b16 %v1967
        %v2000 = vunpack.c.l.b16 %v1968
        %v2001 = vunpack.c.l.b16 %v1969
        %v2002 = vunpack.c.l.b16 %v1970
        %v2003 = vunpack.c.l.b16 %v1971
        %v2004 = vunpack.c.l.b16 %v1972
        %v2005 = vunpack.c.l.b16 %v1973
        %v2006 = vunpack.c.l.b16 %v1974
        %v2007 = vunpack.c.l.b16 %v1975
        %v2008 = vunpack.c.l.b16 %v1976
        %v2009 = vunpack.c.l.b16 %v1977
        %v2010 = vunpack.c.l.b16 %v1978
        %v2011 = vunpack.c.l.b16 %v1979
        %v2012 = vunpack.c.l.b16 %v1980
        %v2013 = vunpack.c.l.b16 %v1981
        %v2014 = vpack.c.b16 %v1999, %v1998
        %v2015 = vpack.c.b16 %v2001, %v2000
        %v2016 = vpack.c.b16 %v2003, %v2002
        %v2017 = vpack.c.b16 %v2005, %v2004
        %v2018 = vpack.c.b16 %v2007, %v2006
        %v2019 = vpack.c.b16 %v2009, %v2008
        %v2020 = vpack.c.b16 %v2011, %v2010
        %v2021 = vpack.c.b16 %v2013, %v2012
        %2030 = vmatprep.subr.bf16.mxu0 0
        %2031 = vmatpush1.bf16.msra.mxu0 %v2014
        %2032 = vmatprep.subr.bf16.mxu0 0
        %2033 = vmatpush1.bf16.msra.mxu0 %v2015
        %2034 = vmatprep.subr.bf16.mxu0 0
        %2035 = vmatpush1.bf16.msra.mxu0 %v2016
        %2036 = vmatprep.subr.bf16.mxu0 0
        %2037 = vmatpush1.bf16.msra.mxu0 %v2017
        %2038 = vmatprep.subr.bf16.mxu0 0
        %2039 = vmatpush1.bf16.msra.mxu0 %v2018
        %2040 = vmatprep.subr.bf16.mxu0 0
        %2041 = vmatpush1.bf16.msra.mxu0 %v2019
        %2042 = vmatprep.subr.bf16.mxu0 0
        %2043 = vmatpush1.bf16.msra.mxu0 %v2020
        %2044 = vmatprep.subr.bf16.mxu0 0
        %2045 = vmatpush1.bf16.msra.mxu0 %v2021
        %2046 = vmatprep.subr.bf16.mxu0 0
        %2047 = vmatpush1.bf16.msra.mxu0 0
        %2048 = vmatprep.subr.bf16.mxu0 0
        %2049 = vmatpush1.bf16.msra.mxu0 0
        %2050 = vmatprep.subr.bf16.mxu0 0
        %2051 = vmatpush1.bf16.msra.mxu0 0
        %2052 = vmatprep.subr.bf16.mxu0 0
        %2053 = vmatpush1.bf16.msra.mxu0 0
        %2054 = vmatprep.subr.bf16.mxu0 0
        %2055 = vmatpush1.bf16.msra.mxu0 0
        %2056 = vmatprep.subr.bf16.mxu0 0
        %2057 = vmatpush1.bf16.msra.mxu0 0
        %2058 = vmatprep.subr.bf16.mxu0 0
        %2059 = vmatpush1.bf16.msra.mxu0 0
        %2060 = vmatprep.subr.bf16.mxu0 0
        %2061 = vmatpush1.bf16.msra.mxu0 0
        %2062 = vmatprep.mubr.bf16.mxu0 0
        %2063 = vmatmul.mubr.bf16.gmra.mrb[0].mxu0 %v1965
        %v2064 = vpop.f32.mrb[0].mxu0
        %v2065 = vadd.f32 0.0, %v2064
        %v2066 = vpop.f32.mrb[0].mxu0
        %v2067 = vpop.f32.mrb[0].mxu0
        %v2068 = vpop.f32.mrb[0].mxu0
        %2069 = vdwg.mxu0
        %v2070 = vadd.f32 %v1867, %v2065
        %v2071 = vld [vmem:[#allocation13] sm:$0x1]
        %v2073 = vlaneseq
        %v2074 = vshrl.u32 %v2073, 7
        %v2075 = vsub.s32 0, %v2074
        %v2076 = vrot.slane %v2071, %v2075
        %v2078 = vadd.f32 %v2070, %v2076
        %s2079 = scalar_lea.vmem [#allocation5], 1
        %v2080 = vld [vmem:[%s2079] sm:$0x1]
        %s2081 = scalar_lea.vmem [#allocation7], 1
        %v2082 = vld [vmem:[%s2081] sm:$0x1]
        %v2083 = vsel %vm579, %v2078, 0.0
        %2084 = vadd.xlane.f32.xlu0 %v2083
        %v2085 = vpop.xlane.xlu0 %2084
        %v2086 = vmul.f32 %v2085, %v583
        %v2087 = vsub.f32 %v2078, %v2086
        %v2088 = vmul.f32 %v2087, %v2087
        %v2089 = vsel %vm579, %v2088, 0.0
        %2090 = vadd.xlane.f32.xlu0 %v2089
        %v2091 = vpop.xlane.xlu0 %2090
        %v2092 = vmul.f32 %v2091, %v583
        %v2093 = vadd.f32 %v2092, 1e-05
        %v2094 = vrsqrt.pop %v2093
        %v2095 = vmul.f32 %v2087, %v2094
        %v2097 = vlaneseq
        %v2098 = vshrl.u32 %v2097, 7
        %v2099 = vsub.s32 0, %v2098
        %v2100 = vrot.slane %v2080, %v2099
        %v2102 = vmul.f32 %v2095, %v2100
        %v2104 = vlaneseq
        %v2105 = vshrl.u32 %v2104, 7
        %v2106 = vsub.s32 0, %v2105
        %v2107 = vrot.slane %v2082, %v2106
        %v2109 = vadd.f32 %v2102, %v2107
        %v2110 = vpack.c.bf16 %v2109, %v2109
        %s2111 = scalar_lea.vmem %s3, 16
        %v2112 = vld [vmem:[%s2111] sm:$0xf]
        %v2113 = vld [vmem:[%s2111 + $0x4] sm:$0xf]
        %v2114 = vld [vmem:[%s2111 + $0x8] sm:$0xf]
        %v2115 = vld [vmem:[%s2111 + $0xc] sm:$0xf]
        %v2120 = vunpack.c.l.b16 %v2112
        %v2121 = vunpack.c.l.b16 %v2113
        %v2122 = vunpack.c.l.b16 %v2114
        %v2123 = vunpack.c.l.b16 %v2115
        %v2124 = vpack.c.b16 %v2121, %v2120
        %v2125 = vpack.c.b16 %v2123, %v2122
        %v2129 = vsel %vm579, %v2110, 0
        %2131 = vmatprep.subr.bf16.mxu0 0
        %2132 = vmatpush1.bf16.msra.mxu0 %v2124
        %2133 = vmatprep.subr.bf16.mxu0 0
        %2134 = vmatpush1.bf16.msra.mxu0 %v2125
        %2135 = vmatprep.subr.bf16.mxu0 0
        %2136 = vmatpush1.bf16.msra.mxu0 0
        %2137 = vmatprep.subr.bf16.mxu0 0
        %2138 = vmatpush1.bf16.msra.mxu0 0
        %2139 = vmatprep.subr.bf16.mxu0 0
        %2140 = vmatpush1.bf16.msra.mxu0 0
        %2141 = vmatprep.subr.bf16.mxu0 0
        %2142 = vmatpush1.bf16.msra.mxu0 0
        %2143 = vmatprep.subr.bf16.mxu0 0
        %2144 = vmatpush1.bf16.msra.mxu0 0
        %2145 = vmatprep.subr.bf16.mxu0 0
        %2146 = vmatpush1.bf16.msra.mxu0 0
        %2147 = vmatprep.subr.bf16.mxu0 0
        %2148 = vmatpush1.bf16.msra.mxu0 0
        %2149 = vmatprep.subr.bf16.mxu0 0
        %2150 = vmatpush1.bf16.msra.mxu0 0
        %2151 = vmatprep.subr.bf16.mxu0 0
        %2152 = vmatpush1.bf16.msra.mxu0 0
        %2153 = vmatprep.subr.bf16.mxu0 0
        %2154 = vmatpush1.bf16.msra.mxu0 0
        %2155 = vmatprep.subr.bf16.mxu0 0
        %2156 = vmatpush1.bf16.msra.mxu0 0
        %2157 = vmatprep.subr.bf16.mxu0 0
        %2158 = vmatpush1.bf16.msra.mxu0 0
        %2159 = vmatprep.subr.bf16.mxu0 0
        %2160 = vmatpush1.bf16.msra.mxu0 0
        %2161 = vmatprep.subr.bf16.mxu0 0
        %2162 = vmatpush1.bf16.msra.mxu0 0
        %2163 = vmatprep.mubr.bf16.mxu0 0
        %2164 = vmatmul.mubr.bf16.gmra.mrb[0].mxu0 %v2129
        %v2165 = vpop.f32.mrb[0].mxu0
        %v2166 = vadd.f32 0.0, %v2165
        %v2167 = vpop.f32.mrb[0].mxu0
        %v2168 = vpop.f32.mrb[0].mxu0
        %v2169 = vpop.f32.mrb[0].mxu0
        %2170 = vdwg.mxu0
        %s2171 = scalar_lea.vmem %s4, 16
        %v2172 = vld [vmem:[%s2171] sm:$0xf]
        %v2173 = vld [vmem:[%s2171 + $0x4] sm:$0xf]
        %v2174 = vld [vmem:[%s2171 + $0x8] sm:$0xf]
        %v2175 = vld [vmem:[%s2171 + $0xc] sm:$0xf]
        %v2180 = vunpack.c.l.b16 %v2172
        %v2181 = vunpack.c.l.b16 %v2173
        %v2182 = vunpack.c.l.b16 %v2174
        %v2183 = vunpack.c.l.b16 %v2175
        %v2184 = vpack.c.b16 %v2181, %v2180
        %v2185 = vpack.c.b16 %v2183, %v2182
        %2188 = vmatprep.subr.bf16.mxu0 0
        %2189 = vmatpush1.bf16.msra.mxu0 %v2184
        %2190 = vmatprep.subr.bf16.mxu0 0
        %2191 = vmatpush1.bf16.msra.mxu0 %v2185
        %2192 = vmatprep.subr.bf16.mxu0 0
        %2193 = vmatpush1.bf16.msra.mxu0 0
        %2194 = vmatprep.subr.bf16.mxu0 0
        %2195 = vmatpush1.bf16.msra.mxu0 0
        %2196 = vmatprep.subr.bf16.mxu0 0
        %2197 = vmatpush1.bf16.msra.mxu0 0
        %2198 = vmatprep.subr.bf16.mxu0 0
        %2199 = vmatpush1.bf16.msra.mxu0 0
        %2200 = vmatprep.subr.bf16.mxu0 0
        %2201 = vmatpush1.bf16.msra.mxu0 0
        %2202 = vmatprep.subr.bf16.mxu0 0
        %2203 = vmatpush1.bf16.msra.mxu0 0
        %2204 = vmatprep.subr.bf16.mxu0 0
        %2205 = vmatpush1.bf16.msra.mxu0 0
        %2206 = vmatprep.subr.bf16.mxu0 0
        %2207 = vmatpush1.bf16.msra.mxu0 0
        %2208 = vmatprep.subr.bf16.mxu0 0
        %2209 = vmatpush1.bf16.msra.mxu0 0
        %2210 = vmatprep.subr.bf16.mxu0 0
        %2211 = vmatpush1.bf16.msra.mxu0 0
        %2212 = vmatprep.subr.bf16.mxu0 0
        %2213 = vmatpush1.bf16.msra.mxu0 0
        %2214 = vmatprep.subr.bf16.mxu0 0
        %2215 = vmatpush1.bf16.msra.mxu0 0
        %2216 = vmatprep.subr.bf16.mxu0 0
        %2217 = vmatpush1.bf16.msra.mxu0 0
        %2218 = vmatprep.subr.bf16.mxu0 0
        %2219 = vmatpush1.bf16.msra.mxu0 0
        %2220 = vmatprep.mubr.bf16.mxu0 0
        %2221 = vmatmul.mubr.bf16.gmra.mrb[0].mxu0 %v2129
        %v2222 = vpop.f32.mrb[0].mxu0
        %v2223 = vadd.f32 0.0, %v2222
        %v2224 = vpop.f32.mrb[0].mxu0
        %v2225 = vpop.f32.mrb[0].mxu0
        %v2226 = vpop.f32.mrb[0].mxu0
        %2227 = vdwg.mxu0
        %s2228 = scalar_lea.vmem %s5, 16
        %v2229 = vld [vmem:[%s2228] sm:$0xf]
        %v2230 = vld [vmem:[%s2228 + $0x4] sm:$0xf]
        %v2231 = vld [vmem:[%s2228 + $0x8] sm:$0xf]
        %v2232 = vld [vmem:[%s2228 + $0xc] sm:$0xf]
        %v2237 = vunpack.c.l.b16 %v2229
        %v2238 = vunpack.c.l.b16 %v2230
        %v2239 = vunpack.c.l.b16 %v2231
        %v2240 = vunpack.c.l.b16 %v2232
        %v2241 = vpack.c.b16 %v2238, %v2237
        %v2242 = vpack.c.b16 %v2240, %v2239
        %2245 = vmatprep.subr.bf16.mxu0 0
        %2246 = vmatpush1.bf16.msra.mxu0 %v2241
        %2247 = vmatprep.subr.bf16.mxu0 0
        %2248 = vmatpush1.bf16.msra.mxu0 %v2242
        %2249 = vmatprep.subr.bf16.mxu0 0
        %2250 = vmatpush1.bf16.msra.mxu0 0
        %2251 = vmatprep.subr.bf16.mxu0 0
        %2252 = vmatpush1.bf16.msra.mxu0 0
        %2253 = vmatprep.subr.bf16.mxu0 0
        %2254 = vmatpush1.bf16.msra.mxu0 0
        %2255 = vmatprep.subr.bf16.mxu0 0
        %2256 = vmatpush1.bf16.msra.mxu0 0
        %2257 = vmatprep.subr.bf16.mxu0 0
        %2258 = vmatpush1.bf16.msra.mxu0 0
        %2259 = vmatprep.subr.bf16.mxu0 0
        %2260 = vmatpush1.bf16.msra.mxu0 0
        %2261 = vmatprep.subr.bf16.mxu0 0
        %2262 = vmatpush1.bf16.msra.mxu0 0
        %2263 = vmatprep.subr.bf16.mxu0 0
        %2264 = vmatpush1.bf16.msra.mxu0 0
        %2265 = vmatprep.subr.bf16.mxu0 0
        %2266 = vmatpush1.bf16.msra.mxu0 0
        %2267 = vmatprep.subr.bf16.mxu0 0
        %2268 = vmatpush1.bf16.msra.mxu0 0
        %2269 = vmatprep.subr.bf16.mxu0 0
        %2270 = vmatpush1.bf16.msra.mxu0 0
        %2271 = vmatprep.subr.bf16.mxu0 0
        %2272 = vmatpush1.bf16.msra.mxu0 0
        %2273 = vmatprep.subr.bf16.mxu0 0
        %2274 = vmatpush1.bf16.msra.mxu0 0
        %2275 = vmatprep.subr.bf16.mxu0 0
        %2276 = vmatpush1.bf16.msra.mxu0 0
        %2277 = vmatprep.mubr.bf16.mxu0 0
        %2278 = vmatmul.mubr.bf16.gmra.mrb[0].mxu0 %v2129
        %v2279 = vpop.f32.mrb[0].mxu0
        %v2280 = vadd.f32 0.0, %v2279
        %v2281 = vpop.f32.mrb[0].mxu0
        %v2282 = vpop.f32.mrb[0].mxu0
        %v2283 = vpop.f32.mrb[0].mxu0
        %2284 = vdwg.mxu0
        %2286 = vrot.lane.b32.xlu0 %v2166, 120
        %v2287 = vpop.permute.xlu0 %2286
        %2289 = vrot.lane.b32.xlu0 %v2166, 112
        %v2290 = vpop.permute.xlu0 %2289
        %2292 = vrot.lane.b32.xlu0 %v2166, 104
        %v2293 = vpop.permute.xlu0 %2292
        %v2295 = vcombine.low %v2166, %v2290
        %v2296 = vcombine.high %v2166, %v2290
        %v2298 = vunpack.c.l.s4 1983009808
        %v2299 = vunpack.c.0.s8 %v2298
        %v2300 = vlaneseq
        %v2301 = vshrl.u32 %v2300, 7
        %v2302 = vsub.s32 %v2299, %v2301
        %v2303 = vrot.slane %v2295, %v2302
        %v2305 = vunpack.c.l.s4 1983009808
        %v2306 = vunpack.c.0.s8 %v2305
        %v2307 = vlaneseq
        %v2308 = vshrl.u32 %v2307, 7
        %v2309 = vsub.s32 %v2306, %v2308
        %v2310 = vrot.slane %v2296, %v2309
        %v2311 = vcombine.low %v2287, %v2293
        %v2312 = vcombine.high %v2287, %v2293
        %v2314 = vunpack.c.l.s4 1983009808
        %v2315 = vunpack.c.0.s8 %v2314
        %v2316 = vlaneseq
        %v2317 = vshrl.u32 %v2316, 7
        %v2318 = vsub.s32 %v2315, %v2317
        %v2319 = vrot.slane %v2311, %v2318
        %v2321 = vunpack.c.l.s4 1983009808
        %v2322 = vunpack.c.0.s8 %v2321
        %v2323 = vlaneseq
        %v2324 = vshrl.u32 %v2323, 7
        %v2325 = vsub.s32 %v2322, %v2324
        %v2326 = vrot.slane %v2312, %v2325
        %v2327 = vcombine.low %v2303, %v2319
        %v2328 = vcombine.high %v2303, %v2319
        %v2330 = vunpack.c.l.s4 1934713408
        %v2331 = vunpack.c.0.s8 %v2330
        %v2332 = vlaneseq
        %v2333 = vshrl.u32 %v2332, 7
        %v2334 = vsub.s32 %v2331, %v2333
        %v2335 = vrot.slane %v2327, %v2334
        %v2337 = vunpack.c.l.s4 1934713408
        %v2338 = vunpack.c.0.s8 %v2337
        %v2339 = vlaneseq
        %v2340 = vshrl.u32 %v2339, 7
        %v2341 = vsub.s32 %v2338, %v2340
        %v2342 = vrot.slane %v2328, %v2341
        %v2343 = vcombine.low %v2310, %v2326
        %v2344 = vcombine.high %v2310, %v2326
        %v2346 = vunpack.c.l.s4 1934713408
        %v2347 = vunpack.c.0.s8 %v2346
        %v2348 = vlaneseq
        %v2349 = vshrl.u32 %v2348, 7
        %v2350 = vsub.s32 %v2347, %v2349
        %v2351 = vrot.slane %v2343, %v2350
        %v2353 = vunpack.c.l.s4 1934713408
        %v2354 = vunpack.c.0.s8 %v2353
        %v2355 = vlaneseq
        %v2356 = vshrl.u32 %v2355, 7
        %v2357 = vsub.s32 %v2354, %v2356
        %v2358 = vrot.slane %v2344, %v2357
        %v2359 = vcombine.high %v2335, 0.0
        %v2360 = vcombine.high %v2342, 0.0
        %v2361 = vcombine.high %v2351, 0.0
        %v2362 = vcombine.high %v2358, 0.0
        %v2363 = vcombine.low %v2335, %v2342
        %v2365 = vunpack.c.l.s4 1983009808
        %v2366 = vunpack.c.0.s8 %v2365
        %v2367 = vlaneseq
        %v2368 = vshrl.u32 %v2367, 7
        %v2369 = vsub.s32 %v2366, %v2368
        %v2370 = vrot.slane %v2363, %v2369
        %v2371 = vcombine.low %v2359, %v2360
        %v2373 = vunpack.c.l.s4 1983009808
        %v2374 = vunpack.c.0.s8 %v2373
        %v2375 = vlaneseq
        %v2376 = vshrl.u32 %v2375, 7
        %v2377 = vsub.s32 %v2374, %v2376
        %v2378 = vrot.slane %v2371, %v2377
        %v2379 = vcombine.low %v2351, %v2358
        %v2381 = vunpack.c.l.s4 1983009808
        %v2382 = vunpack.c.0.s8 %v2381
        %v2383 = vlaneseq
        %v2384 = vshrl.u32 %v2383, 7
        %v2385 = vsub.s32 %v2382, %v2384
        %v2386 = vrot.slane %v2379, %v2385
        %v2387 = vcombine.low %v2361, %v2362
        %v2389 = vunpack.c.l.s4 1983009808
        %v2390 = vunpack.c.0.s8 %v2389
        %v2391 = vlaneseq
        %v2392 = vshrl.u32 %v2391, 7
        %v2393 = vsub.s32 %v2390, %v2392
        %v2394 = vrot.slane %v2387, %v2393
        %v2395 = vcombine.low %v2370, %v2378
        %v2396 = vcombine.high %v2370, %v2378
        %v2398 = vunpack.c.l.s4 1934713408
        %v2399 = vunpack.c.0.s8 %v2398
        %v2400 = vlaneseq
        %v2401 = vshrl.u32 %v2400, 7
        %v2402 = vsub.s32 %v2399, %v2401
        %v2403 = vrot.slane %v2395, %v2402
        %v2405 = vunpack.c.l.s4 1934713408
        %v2406 = vunpack.c.0.s8 %v2405
        %v2407 = vlaneseq
        %v2408 = vshrl.u32 %v2407, 7
        %v2409 = vsub.s32 %v2406, %v2408
        %v2410 = vrot.slane %v2396, %v2409
        %v2411 = vcombine.low %v2386, %v2394
        %v2412 = vcombine.high %v2386, %v2394
        %v2414 = vunpack.c.l.s4 1934713408
        %v2415 = vunpack.c.0.s8 %v2414
        %v2416 = vlaneseq
        %v2417 = vshrl.u32 %v2416, 7
        %v2418 = vsub.s32 %v2415, %v2417
        %v2419 = vrot.slane %v2411, %v2418
        %v2421 = vunpack.c.l.s4 1934713408
        %v2422 = vunpack.c.0.s8 %v2421
        %v2423 = vlaneseq
        %v2424 = vshrl.u32 %v2423, 7
        %v2425 = vsub.s32 %v2422, %v2424
        %v2426 = vrot.slane %v2412, %v2425
        %v2427 = vcombine.low %v2403, %v2419
        %v2428 = vcombine.high %v2403, %v2419
        %v2429 = vcombine.low %v2410, %v2426
        %v2430 = vcombine.high %v2410, %v2426
        %v2431 = vpack.c.bf16 %v2427, %v2427
        %v2432 = vpack.c.bf16 %v2428, %v2428
        %v2433 = vpack.c.bf16 %v2429, %v2429
        %v2434 = vpack.c.bf16 %v2430, %v2430
        %2436 = vrot.lane.b32.xlu0 %v2223, 120
        %v2437 = vpop.permute.xlu0 %2436
        %2439 = vrot.lane.b32.xlu0 %v2223, 112
        %v2440 = vpop.permute.xlu0 %2439
        %2442 = vrot.lane.b32.xlu0 %v2223, 104
        %v2443 = vpop.permute.xlu0 %2442
        %v2445 = vcombine.low %v2223, %v2440
        %v2446 = vcombine.high %v2223, %v2440
        %v2448 = vunpack.c.l.s4 1983009808
        %v2449 = vunpack.c.0.s8 %v2448
        %v2450 = vlaneseq
        %v2451 = vshrl.u32 %v2450, 7
        %v2452 = vsub.s32 %v2449, %v2451
        %v2453 = vrot.slane %v2445, %v2452
        %v2455 = vunpack.c.l.s4 1983009808
        %v2456 = vunpack.c.0.s8 %v2455
        %v2457 = vlaneseq
        %v2458 = vshrl.u32 %v2457, 7
        %v2459 = vsub.s32 %v2456, %v2458
        %v2460 = vrot.slane %v2446, %v2459
        %v2461 = vcombine.low %v2437, %v2443
        %v2462 = vcombine.high %v2437, %v2443
        %v2464 = vunpack.c.l.s4 1983009808
        %v2465 = vunpack.c.0.s8 %v2464
        %v2466 = vlaneseq
        %v2467 = vshrl.u32 %v2466, 7
        %v2468 = vsub.s32 %v2465, %v2467
        %v2469 = vrot.slane %v2461, %v2468
        %v2471 = vunpack.c.l.s4 1983009808
        %v2472 = vunpack.c.0.s8 %v2471
        %v2473 = vlaneseq
        %v2474 = vshrl.u32 %v2473, 7
        %v2475 = vsub.s32 %v2472, %v2474
        %v2476 = vrot.slane %v2462, %v2475
        %v2477 = vcombine.low %v2453, %v2469
        %v2478 = vcombine.high %v2453, %v2469
        %v2480 = vunpack.c.l.s4 1934713408
        %v2481 = vunpack.c.0.s8 %v2480
        %v2482 = vlaneseq
        %v2483 = vshrl.u32 %v2482, 7
        %v2484 = vsub.s32 %v2481, %v2483
        %v2485 = vrot.slane %v2477, %v2484
        %v2487 = vunpack.c.l.s4 1934713408
        %v2488 = vunpack.c.0.s8 %v2487
        %v2489 = vlaneseq
        %v2490 = vshrl.u32 %v2489, 7
        %v2491 = vsub.s32 %v2488, %v2490
        %v2492 = vrot.slane %v2478, %v2491
        %v2493 = vcombine.low %v2460, %v2476
        %v2494 = vcombine.high %v2460, %v2476
        %v2496 = vunpack.c.l.s4 1934713408
        %v2497 = vunpack.c.0.s8 %v2496
        %v2498 = vlaneseq
        %v2499 = vshrl.u32 %v2498, 7
        %v2500 = vsub.s32 %v2497, %v2499
        %v2501 = vrot.slane %v2493, %v2500
        %v2503 = vunpack.c.l.s4 1934713408
        %v2504 = vunpack.c.0.s8 %v2503
        %v2505 = vlaneseq
        %v2506 = vshrl.u32 %v2505, 7
        %v2507 = vsub.s32 %v2504, %v2506
        %v2508 = vrot.slane %v2494, %v2507
        %v2509 = vcombine.high %v2485, 0.0
        %v2510 = vcombine.high %v2492, 0.0
        %v2511 = vcombine.high %v2501, 0.0
        %v2512 = vcombine.high %v2508, 0.0
        %v2513 = vcombine.low %v2485, %v2492
        %v2515 = vunpack.c.l.s4 1983009808
        %v2516 = vunpack.c.0.s8 %v2515
        %v2517 = vlaneseq
        %v2518 = vshrl.u32 %v2517, 7
        %v2519 = vsub.s32 %v2516, %v2518
        %v2520 = vrot.slane %v2513, %v2519
        %v2521 = vcombine.low %v2509, %v2510
        %v2523 = vunpack.c.l.s4 1983009808
        %v2524 = vunpack.c.0.s8 %v2523
        %v2525 = vlaneseq
        %v2526 = vshrl.u32 %v2525, 7
        %v2527 = vsub.s32 %v2524, %v2526
        %v2528 = vrot.slane %v2521, %v2527
        %v2529 = vcombine.low %v2501, %v2508
        %v2531 = vunpack.c.l.s4 1983009808
        %v2532 = vunpack.c.0.s8 %v2531
        %v2533 = vlaneseq
        %v2534 = vshrl.u32 %v2533, 7
        %v2535 = vsub.s32 %v2532, %v2534
        %v2536 = vrot.slane %v2529, %v2535
        %v2537 = vcombine.low %v2511, %v2512
        %v2539 = vunpack.c.l.s4 1983009808
        %v2540 = vunpack.c.0.s8 %v2539
        %v2541 = vlaneseq
        %v2542 = vshrl.u32 %v2541, 7
        %v2543 = vsub.s32 %v2540, %v2542
        %v2544 = vrot.slane %v2537, %v2543
        %v2545 = vcombine.low %v2520, %v2528
        %v2546 = vcombine.high %v2520, %v2528
        %v2548 = vunpack.c.l.s4 1934713408
        %v2549 = vunpack.c.0.s8 %v2548
        %v2550 = vlaneseq
        %v2551 = vshrl.u32 %v2550, 7
        %v2552 = vsub.s32 %v2549, %v2551
        %v2553 = vrot.slane %v2545, %v2552
        %v2555 = vunpack.c.l.s4 1934713408
        %v2556 = vunpack.c.0.s8 %v2555
        %v2557 = vlaneseq
        %v2558 = vshrl.u32 %v2557, 7
        %v2559 = vsub.s32 %v2556, %v2558
        %v2560 = vrot.slane %v2546, %v2559
        %v2561 = vcombine.low %v2536, %v2544
        %v2562 = vcombine.high %v2536, %v2544
        %v2564 = vunpack.c.l.s4 1934713408
        %v2565 = vunpack.c.0.s8 %v2564
        %v2566 = vlaneseq
        %v2567 = vshrl.u32 %v2566, 7
        %v2568 = vsub.s32 %v2565, %v2567
        %v2569 = vrot.slane %v2561, %v2568
        %v2571 = vunpack.c.l.s4 1934713408
        %v2572 = vunpack.c.0.s8 %v2571
        %v2573 = vlaneseq
        %v2574 = vshrl.u32 %v2573, 7
        %v2575 = vsub.s32 %v2572, %v2574
        %v2576 = vrot.slane %v2562, %v2575
        %v2577 = vcombine.low %v2553, %v2569
        %v2578 = vcombine.high %v2553, %v2569
        %v2579 = vcombine.low %v2560, %v2576
        %v2580 = vcombine.high %v2560, %v2576
        %v2581 = vpack.c.bf16 %v2577, %v2577
        %v2582 = vpack.c.bf16 %v2578, %v2578
        %v2583 = vpack.c.bf16 %v2579, %v2579
        %v2584 = vpack.c.bf16 %v2580, %v2580
        %2586 = vrot.lane.b32.xlu0 %v2280, 120
        %v2587 = vpop.permute.xlu0 %2586
        %2589 = vrot.lane.b32.xlu0 %v2280, 112
        %v2590 = vpop.permute.xlu0 %2589
        %2592 = vrot.lane.b32.xlu0 %v2280, 104
        %v2593 = vpop.permute.xlu0 %2592
        %v2595 = vcombine.low %v2280, %v2590
        %v2596 = vcombine.high %v2280, %v2590
        %v2598 = vunpack.c.l.s4 1983009808
        %v2599 = vunpack.c.0.s8 %v2598
        %v2600 = vlaneseq
        %v2601 = vshrl.u32 %v2600, 7
        %v2602 = vsub.s32 %v2599, %v2601
        %v2603 = vrot.slane %v2595, %v2602
        %v2605 = vunpack.c.l.s4 1983009808
        %v2606 = vunpack.c.0.s8 %v2605
        %v2607 = vlaneseq
        %v2608 = vshrl.u32 %v2607, 7
        %v2609 = vsub.s32 %v2606, %v2608
        %v2610 = vrot.slane %v2596, %v2609
        %v2611 = vcombine.low %v2587, %v2593
        %v2612 = vcombine.high %v2587, %v2593
        %v2614 = vunpack.c.l.s4 1983009808
        %v2615 = vunpack.c.0.s8 %v2614
        %v2616 = vlaneseq
        %v2617 = vshrl.u32 %v2616, 7
        %v2618 = vsub.s32 %v2615, %v2617
        %v2619 = vrot.slane %v2611, %v2618
        %v2621 = vunpack.c.l.s4 1983009808
        %v2622 = vunpack.c.0.s8 %v2621
        %v2623 = vlaneseq
        %v2624 = vshrl.u32 %v2623, 7
        %v2625 = vsub.s32 %v2622, %v2624
        %v2626 = vrot.slane %v2612, %v2625
        %v2627 = vcombine.low %v2603, %v2619
        %v2628 = vcombine.high %v2603, %v2619
        %v2630 = vunpack.c.l.s4 1934713408
        %v2631 = vunpack.c.0.s8 %v2630
        %v2632 = vlaneseq
        %v2633 = vshrl.u32 %v2632, 7
        %v2634 = vsub.s32 %v2631, %v2633
        %v2635 = vrot.slane %v2627, %v2634
        %v2637 = vunpack.c.l.s4 1934713408
        %v2638 = vunpack.c.0.s8 %v2637
        %v2639 = vlaneseq
        %v2640 = vshrl.u32 %v2639, 7
        %v2641 = vsub.s32 %v2638, %v2640
        %v2642 = vrot.slane %v2628, %v2641
        %v2643 = vcombine.low %v2610, %v2626
        %v2644 = vcombine.high %v2610, %v2626
        %v2646 = vunpack.c.l.s4 1934713408
        %v2647 = vunpack.c.0.s8 %v2646
        %v2648 = vlaneseq
        %v2649 = vshrl.u32 %v2648, 7
        %v2650 = vsub.s32 %v2647, %v2649
        %v2651 = vrot.slane %v2643, %v2650
        %v2653 = vunpack.c.l.s4 1934713408
        %v2654 = vunpack.c.0.s8 %v2653
        %v2655 = vlaneseq
        %v2656 = vshrl.u32 %v2655, 7
        %v2657 = vsub.s32 %v2654, %v2656
        %v2658 = vrot.slane %v2644, %v2657
        %v2659 = vcombine.high %v2635, 0.0
        %v2660 = vcombine.high %v2642, 0.0
        %v2661 = vcombine.high %v2651, 0.0
        %v2662 = vcombine.high %v2658, 0.0
        %v2663 = vcombine.low %v2635, %v2642
        %v2665 = vunpack.c.l.s4 1983009808
        %v2666 = vunpack.c.0.s8 %v2665
        %v2667 = vlaneseq
        %v2668 = vshrl.u32 %v2667, 7
        %v2669 = vsub.s32 %v2666, %v2668
        %v2670 = vrot.slane %v2663, %v2669
        %v2671 = vcombine.low %v2659, %v2660
        %v2673 = vunpack.c.l.s4 1983009808
        %v2674 = vunpack.c.0.s8 %v2673
        %v2675 = vlaneseq
        %v2676 = vshrl.u32 %v2675, 7
        %v2677 = vsub.s32 %v2674, %v2676
        %v2678 = vrot.slane %v2671, %v2677
        %v2679 = vcombine.low %v2651, %v2658
        %v2681 = vunpack.c.l.s4 1983009808
        %v2682 = vunpack.c.0.s8 %v2681
        %v2683 = vlaneseq
        %v2684 = vshrl.u32 %v2683, 7
        %v2685 = vsub.s32 %v2682, %v2684
        %v2686 = vrot.slane %v2679, %v2685
        %v2687 = vcombine.low %v2661, %v2662
        %v2689 = vunpack.c.l.s4 1983009808
        %v2690 = vunpack.c.0.s8 %v2689
        %v2691 = vlaneseq
        %v2692 = vshrl.u32 %v2691, 7
        %v2693 = vsub.s32 %v2690, %v2692
        %v2694 = vrot.slane %v2687, %v2693
        %v2695 = vcombine.low %v2670, %v2678
        %v2696 = vcombine.high %v2670, %v2678
        %v2698 = vunpack.c.l.s4 1934713408
        %v2699 = vunpack.c.0.s8 %v2698
        %v2700 = vlaneseq
        %v2701 = vshrl.u32 %v2700, 7
        %v2702 = vsub.s32 %v2699, %v2701
        %v2703 = vrot.slane %v2695, %v2702
        %v2705 = vunpack.c.l.s4 1934713408
        %v2706 = vunpack.c.0.s8 %v2705
        %v2707 = vlaneseq
        %v2708 = vshrl.u32 %v2707, 7
        %v2709 = vsub.s32 %v2706, %v2708
        %v2710 = vrot.slane %v2696, %v2709
        %v2711 = vcombine.low %v2686, %v2694
        %v2712 = vcombine.high %v2686, %v2694
        %v2714 = vunpack.c.l.s4 1934713408
        %v2715 = vunpack.c.0.s8 %v2714
        %v2716 = vlaneseq
        %v2717 = vshrl.u32 %v2716, 7
        %v2718 = vsub.s32 %v2715, %v2717
        %v2719 = vrot.slane %v2711, %v2718
        %v2721 = vunpack.c.l.s4 1934713408
        %v2722 = vunpack.c.0.s8 %v2721
        %v2723 = vlaneseq
        %v2724 = vshrl.u32 %v2723, 7
        %v2725 = vsub.s32 %v2722, %v2724
        %v2726 = vrot.slane %v2712, %v2725
        %v2727 = vcombine.low %v2703, %v2719
        %v2728 = vcombine.high %v2703, %v2719
        %v2729 = vcombine.low %v2710, %v2726
        %v2730 = vcombine.high %v2710, %v2726
        %v2731 = vpack.c.bf16 %v2727, %v2727
        %v2732 = vpack.c.bf16 %v2728, %v2728
        %v2733 = vpack.c.bf16 %v2729, %v2729
        %v2734 = vpack.c.bf16 %v2730, %v2730
        %v2736 = vsel %vm1230, %v2431, 0
        %v2739 = vsel %vm1230, %v2581, 0
        %2741 = vmatprep.subr.bf16.mxu0 0
        %2742 = vmatpush1.bf16.xpose.msra.mxu0 %v2739
        %2743 = vmatprep.subr.bf16.mxu0 0
        %2744 = vmatpush1.bf16.xpose.msra.mxu0 0
        %2745 = vmatprep.subr.bf16.mxu0 0
        %2746 = vmatpush1.bf16.xpose.msra.mxu0 0
        %2747 = vmatprep.subr.bf16.mxu0 0
        %2748 = vmatpush1.bf16.xpose.msra.mxu0 0
        %2749 = vmatprep.subr.bf16.mxu0 0
        %2750 = vmatpush1.bf16.xpose.msra.mxu0 0
        %2751 = vmatprep.subr.bf16.mxu0 0
        %2752 = vmatpush1.bf16.xpose.msra.mxu0 0
        %2753 = vmatprep.subr.bf16.mxu0 0
        %2754 = vmatpush1.bf16.xpose.msra.mxu0 0
        %2755 = vmatprep.subr.bf16.mxu0 0
        %2756 = vmatpush1.bf16.xpose.msra.mxu0 0
        %2757 = vmatprep.subr.bf16.mxu0 0
        %2758 = vmatpush1.bf16.xpose.msra.mxu0 0
        %2759 = vmatprep.subr.bf16.mxu0 0
        %2760 = vmatpush1.bf16.xpose.msra.mxu0 0
        %2761 = vmatprep.subr.bf16.mxu0 0
        %2762 = vmatpush1.bf16.xpose.msra.mxu0 0
        %2763 = vmatprep.subr.bf16.mxu0 0
        %2764 = vmatpush1.bf16.xpose.msra.mxu0 0
        %2765 = vmatprep.subr.bf16.mxu0 0
        %2766 = vmatpush1.bf16.xpose.msra.mxu0 0
        %2767 = vmatprep.subr.bf16.mxu0 0
        %2768 = vmatpush1.bf16.xpose.msra.mxu0 0
        %2769 = vmatprep.subr.bf16.mxu0 0
        %2770 = vmatpush1.bf16.xpose.msra.mxu0 0
        %2771 = vmatprep.subr.bf16.mxu0 0
        %2772 = vmatpush1.bf16.xpose.msra.mxu0 0
        %2773 = vmatprep.mubr.bf16.mxu0 0
        %2774 = vmatmul.mubr.bf16.gmra.mrb[0].mxu0 %v2736
        %v2775 = vpop.f32.mrb[0].mxu0
        %v2776 = vadd.f32 0.0, %v2775
        %v2777 = vpop.f32.mrb[0].mxu0
        %v2778 = vpop.f32.mrb[0].mxu0
        %v2779 = vpop.f32.mrb[0].mxu0
        %2780 = vdwg.mxu0
        %v2782 = vsel %vm1230, %v2432, 0
        %v2785 = vsel %vm1230, %v2582, 0
        %2787 = vmatprep.subr.bf16.mxu0 0
        %2788 = vmatpush1.bf16.xpose.msra.mxu0 %v2785
        %2789 = vmatprep.subr.bf16.mxu0 0
        %2790 = vmatpush1.bf16.xpose.msra.mxu0 0
        %2791 = vmatprep.subr.bf16.mxu0 0
        %2792 = vmatpush1.bf16.xpose.msra.mxu0 0
        %2793 = vmatprep.subr.bf16.mxu0 0
        %2794 = vmatpush1.bf16.xpose.msra.mxu0 0
        %2795 = vmatprep.subr.bf16.mxu0 0
        %2796 = vmatpush1.bf16.xpose.msra.mxu0 0
        %2797 = vmatprep.subr.bf16.mxu0 0
        %2798 = vmatpush1.bf16.xpose.msra.mxu0 0
        %2799 = vmatprep.subr.bf16.mxu0 0
        %2800 = vmatpush1.bf16.xpose.msra.mxu0 0
        %2801 = vmatprep.subr.bf16.mxu0 0
        %2802 = vmatpush1.bf16.xpose.msra.mxu0 0
        %2803 = vmatprep.subr.bf16.mxu0 0
        %2804 = vmatpush1.bf16.xpose.msra.mxu0 0
        %2805 = vmatprep.subr.bf16.mxu0 0
        %2806 = vmatpush1.bf16.xpose.msra.mxu0 0
        %2807 = vmatprep.subr.bf16.mxu0 0
        %2808 = vmatpush1.bf16.xpose.msra.mxu0 0
        %2809 = vmatprep.subr.bf16.mxu0 0
        %2810 = vmatpush1.bf16.xpose.msra.mxu0 0
        %2811 = vmatprep.subr.bf16.mxu0 0
        %2812 = vmatpush1.bf16.xpose.msra.mxu0 0
        %2813 = vmatprep.subr.bf16.mxu0 0
        %2814 = vmatpush1.bf16.xpose.msra.mxu0 0
        %2815 = vmatprep.subr.bf16.mxu0 0
        %2816 = vmatpush1.bf16.xpose.msra.mxu0 0
        %2817 = vmatprep.subr.bf16.mxu0 0
        %2818 = vmatpush1.bf16.xpose.msra.mxu0 0
        %2819 = vmatprep.mubr.bf16.mxu0 0
        %2820 = vmatmul.mubr.bf16.gmra.mrb[0].mxu0 %v2782
        %v2821 = vpop.f32.mrb[0].mxu0
        %v2822 = vadd.f32 0.0, %v2821
        %v2823 = vpop.f32.mrb[0].mxu0
        %v2824 = vpop.f32.mrb[0].mxu0
        %v2825 = vpop.f32.mrb[0].mxu0
        %2826 = vdwg.mxu0
        %v2828 = vsel %vm1230, %v2433, 0
        %v2831 = vsel %vm1230, %v2583, 0
        %2833 = vmatprep.subr.bf16.mxu0 0
        %2834 = vmatpush1.bf16.xpose.msra.mxu0 %v2831
        %2835 = vmatprep.subr.bf16.mxu0 0
        %2836 = vmatpush1.bf16.xpose.msra.mxu0 0
        %2837 = vmatprep.subr.bf16.mxu0 0
        %2838 = vmatpush1.bf16.xpose.msra.mxu0 0
        %2839 = vmatprep.subr.bf16.mxu0 0
        %2840 = vmatpush1.bf16.xpose.msra.mxu0 0
        %2841 = vmatprep.subr.bf16.mxu0 0
        %2842 = vmatpush1.bf16.xpose.msra.mxu0 0
        %2843 = vmatprep.subr.bf16.mxu0 0
        %2844 = vmatpush1.bf16.xpose.msra.mxu0 0
        %2845 = vmatprep.subr.bf16.mxu0 0
        %2846 = vmatpush1.bf16.xpose.msra.mxu0 0
        %2847 = vmatprep.subr.bf16.mxu0 0
        %2848 = vmatpush1.bf16.xpose.msra.mxu0 0
        %2849 = vmatprep.subr.bf16.mxu0 0
        %2850 = vmatpush1.bf16.xpose.msra.mxu0 0
        %2851 = vmatprep.subr.bf16.mxu0 0
        %2852 = vmatpush1.bf16.xpose.msra.mxu0 0
        %2853 = vmatprep.subr.bf16.mxu0 0
        %2854 = vmatpush1.bf16.xpose.msra.mxu0 0
        %2855 = vmatprep.subr.bf16.mxu0 0
        %2856 = vmatpush1.bf16.xpose.msra.mxu0 0
        %2857 = vmatprep.subr.bf16.mxu0 0
        %2858 = vmatpush1.bf16.xpose.msra.mxu0 0
        %2859 = vmatprep.subr.bf16.mxu0 0
        %2860 = vmatpush1.bf16.xpose.msra.mxu0 0
        %2861 = vmatprep.subr.bf16.mxu0 0
        %2862 = vmatpush1.bf16.xpose.msra.mxu0 0
        %2863 = vmatprep.subr.bf16.mxu0 0
        %2864 = vmatpush1.bf16.xpose.msra.mxu0 0
        %2865 = vmatprep.mubr.bf16.mxu0 0
        %2866 = vmatmul.mubr.bf16.gmra.mrb[0].mxu0 %v2828
        %v2867 = vpop.f32.mrb[0].mxu0
        %v2868 = vadd.f32 0.0, %v2867
        %v2869 = vpop.f32.mrb[0].mxu0
        %v2870 = vpop.f32.mrb[0].mxu0
        %v2871 = vpop.f32.mrb[0].mxu0
        %2872 = vdwg.mxu0
        %v2874 = vsel %vm1230, %v2434, 0
        %v2877 = vsel %vm1230, %v2584, 0
        %2879 = vmatprep.subr.bf16.mxu0 0
        %2880 = vmatpush1.bf16.xpose.msra.mxu0 %v2877
        %2881 = vmatprep.subr.bf16.mxu0 0
        %2882 = vmatpush1.bf16.xpose.msra.mxu0 0
        %2883 = vmatprep.subr.bf16.mxu0 0
        %2884 = vmatpush1.bf16.xpose.msra.mxu0 0
        %2885 = vmatprep.subr.bf16.mxu0 0
        %2886 = vmatpush1.bf16.xpose.msra.mxu0 0
        %2887 = vmatprep.subr.bf16.mxu0 0
        %2888 = vmatpush1.bf16.xpose.msra.mxu0 0
        %2889 = vmatprep.subr.bf16.mxu0 0
        %2890 = vmatpush1.bf16.xpose.msra.mxu0 0
        %2891 = vmatprep.subr.bf16.mxu0 0
        %2892 = vmatpush1.bf16.xpose.msra.mxu0 0
        %2893 = vmatprep.subr.bf16.mxu0 0
        %2894 = vmatpush1.bf16.xpose.msra.mxu0 0
        %2895 = vmatprep.subr.bf16.mxu0 0
        %2896 = vmatpush1.bf16.xpose.msra.mxu0 0
        %2897 = vmatprep.subr.bf16.mxu0 0
        %2898 = vmatpush1.bf16.xpose.msra.mxu0 0
        %2899 = vmatprep.subr.bf16.mxu0 0
        %2900 = vmatpush1.bf16.xpose.msra.mxu0 0
        %2901 = vmatprep.subr.bf16.mxu0 0
        %2902 = vmatpush1.bf16.xpose.msra.mxu0 0
        %2903 = vmatprep.subr.bf16.mxu0 0
        %2904 = vmatpush1.bf16.xpose.msra.mxu0 0
        %2905 = vmatprep.subr.bf16.mxu0 0
        %2906 = vmatpush1.bf16.xpose.msra.mxu0 0
        %2907 = vmatprep.subr.bf16.mxu0 0
        %2908 = vmatpush1.bf16.xpose.msra.mxu0 0
        %2909 = vmatprep.subr.bf16.mxu0 0
        %2910 = vmatpush1.bf16.xpose.msra.mxu0 0
        %2911 = vmatprep.mubr.bf16.mxu0 0
        %2912 = vmatmul.mubr.bf16.gmra.mrb[0].mxu0 %v2874
        %v2913 = vpop.f32.mrb[0].mxu0
        %v2914 = vadd.f32 0.0, %v2913
        %v2915 = vpop.f32.mrb[0].mxu0
        %v2916 = vpop.f32.mrb[0].mxu0
        %v2917 = vpop.f32.mrb[0].mxu0
        %2918 = vdwg.mxu0
        %v2919 = vsel %vm1416, %v2776, -1e+30
        %v2920 = vsel %vm1416, %v2822, -1e+30
        %v2921 = vsel %vm1416, %v2868, -1e+30
        %v2922 = vsel %vm1416, %v2914, -1e+30
        %v2923 = vsel %vm1230, %v2919, -inf
        %2924 = vmax.xlane.f32.xlu0 %v2923
        %v2925 = vpop.xlane.xlu0 %2924
        %v2926 = vsel %vm1230, %v2920, -inf
        %2927 = vmax.xlane.f32.xlu0 %v2926
        %v2928 = vpop.xlane.xlu0 %2927
        %v2929 = vsel %vm1230, %v2921, -inf
        %2930 = vmax.xlane.f32.xlu0 %v2929
        %v2931 = vpop.xlane.xlu0 %2930
        %v2932 = vsel %vm1230, %v2922, -inf
        %2933 = vmax.xlane.f32.xlu0 %v2932
        %v2934 = vpop.xlane.xlu0 %2933
        %v2935 = vsub.f32 %v2919, %v2925
        %v2936 = vsub.f32 %v2920, %v2928
        %v2937 = vsub.f32 %v2921, %v2931
        %v2938 = vsub.f32 %v2922, %v2934
        %v2939 = vmul.f32 %v2935, 1.442695
        %v2940 = vpow.pop %v2939
        %v2941 = vmul.f32 %v2936, 1.442695
        %v2942 = vpow.pop %v2941
        %v2943 = vmul.f32 %v2937, 1.442695
        %v2944 = vpow.pop %v2943
        %v2945 = vmul.f32 %v2938, 1.442695
        %v2946 = vpow.pop %v2945
        %v2947 = vsel %vm1230, %v2940, 0.0
        %2948 = vadd.xlane.f32.xlu0 %v2947
        %v2949 = vpop.xlane.xlu0 %2948
        %v2950 = vsel %vm1230, %v2942, 0.0
        %2951 = vadd.xlane.f32.xlu0 %v2950
        %v2952 = vpop.xlane.xlu0 %2951
        %v2953 = vsel %vm1230, %v2944, 0.0
        %2954 = vadd.xlane.f32.xlu0 %v2953
        %v2955 = vpop.xlane.xlu0 %2954
        %v2956 = vsel %vm1230, %v2946, 0.0
        %2957 = vadd.xlane.f32.xlu0 %v2956
        %v2958 = vpop.xlane.xlu0 %2957
        %v2959 = vrcp.pop %v2949
        %v2960 = vrcp.pop %v2952
        %v2961 = vrcp.pop %v2955
        %v2962 = vrcp.pop %v2958
        %v2963 = vmul.f32 %v2940, %v2959
        %v2964 = vmul.f32 %v2942, %v2960
        %v2965 = vmul.f32 %v2944, %v2961
        %v2966 = vmul.f32 %v2946, %v2962
        %v2967 = vpack.c.bf16 %v2963, %v2963
        %v2968 = vpack.c.bf16 %v2964, %v2964
        %v2969 = vpack.c.bf16 %v2965, %v2965
        %v2970 = vpack.c.bf16 %v2966, %v2966
        %v2972 = vsel %vm1230, %v2967, 0
        %v2975 = vsel %vm1472, %v2731, 0
        %2977 = vmatprep.subr.bf16.mxu0 0
        %2978 = vmatpush1.bf16.msra.mxu0 %v2975
        %2979 = vmatprep.subr.bf16.mxu0 0
        %2980 = vmatpush1.bf16.msra.mxu0 0
        %2981 = vmatprep.subr.bf16.mxu0 0
        %2982 = vmatpush1.bf16.msra.mxu0 0
        %2983 = vmatprep.subr.bf16.mxu0 0
        %2984 = vmatpush1.bf16.msra.mxu0 0
        %2985 = vmatprep.subr.bf16.mxu0 0
        %2986 = vmatpush1.bf16.msra.mxu0 0
        %2987 = vmatprep.subr.bf16.mxu0 0
        %2988 = vmatpush1.bf16.msra.mxu0 0
        %2989 = vmatprep.subr.bf16.mxu0 0
        %2990 = vmatpush1.bf16.msra.mxu0 0
        %2991 = vmatprep.subr.bf16.mxu0 0
        %2992 = vmatpush1.bf16.msra.mxu0 0
        %2993 = vmatprep.subr.bf16.mxu0 0
        %2994 = vmatpush1.bf16.msra.mxu0 0
        %2995 = vmatprep.subr.bf16.mxu0 0
        %2996 = vmatpush1.bf16.msra.mxu0 0
        %2997 = vmatprep.subr.bf16.mxu0 0
        %2998 = vmatpush1.bf16.msra.mxu0 0
        %2999 = vmatprep.subr.bf16.mxu0 0
        %3000 = vmatpush1.bf16.msra.mxu0 0
        %3001 = vmatprep.subr.bf16.mxu0 0
        %3002 = vmatpush1.bf16.msra.mxu0 0
        %3003 = vmatprep.subr.bf16.mxu0 0
        %3004 = vmatpush1.bf16.msra.mxu0 0
        %3005 = vmatprep.subr.bf16.mxu0 0
        %3006 = vmatpush1.bf16.msra.mxu0 0
        %3007 = vmatprep.subr.bf16.mxu0 0
        %3008 = vmatpush1.bf16.msra.mxu0 0
        %3009 = vmatprep.mubr.bf16.mxu0 0
        %3010 = vmatmul.mubr.bf16.gmra.mrb[0].mxu0 %v2972
        %v3011 = vpop.f32.mrb[0].mxu0
        %v3012 = vadd.f32 0.0, %v3011
        %v3013 = vpop.f32.mrb[0].mxu0
        %v3014 = vpop.f32.mrb[0].mxu0
        %v3015 = vpop.f32.mrb[0].mxu0
        %3016 = vdwg.mxu0
        %v3018 = vsel %vm1230, %v2968, 0
        %v3021 = vsel %vm1472, %v2732, 0
        %3023 = vmatprep.subr.bf16.mxu0 0
        %3024 = vmatpush1.bf16.msra.mxu0 %v3021
        %3025 = vmatprep.subr.bf16.mxu0 0
        %3026 = vmatpush1.bf16.msra.mxu0 0
        %3027 = vmatprep.subr.bf16.mxu0 0
        %3028 = vmatpush1.bf16.msra.mxu0 0
        %3029 = vmatprep.subr.bf16.mxu0 0
        %3030 = vmatpush1.bf16.msra.mxu0 0
        %3031 = vmatprep.subr.bf16.mxu0 0
        %3032 = vmatpush1.bf16.msra.mxu0 0
        %3033 = vmatprep.subr.bf16.mxu0 0
        %3034 = vmatpush1.bf16.msra.mxu0 0
        %3035 = vmatprep.subr.bf16.mxu0 0
        %3036 = vmatpush1.bf16.msra.mxu0 0
        %3037 = vmatprep.subr.bf16.mxu0 0
        %3038 = vmatpush1.bf16.msra.mxu0 0
        %3039 = vmatprep.subr.bf16.mxu0 0
        %3040 = vmatpush1.bf16.msra.mxu0 0
        %3041 = vmatprep.subr.bf16.mxu0 0
        %3042 = vmatpush1.bf16.msra.mxu0 0
        %3043 = vmatprep.subr.bf16.mxu0 0
        %3044 = vmatpush1.bf16.msra.mxu0 0
        %3045 = vmatprep.subr.bf16.mxu0 0
        %3046 = vmatpush1.bf16.msra.mxu0 0
        %3047 = vmatprep.subr.bf16.mxu0 0
        %3048 = vmatpush1.bf16.msra.mxu0 0
        %3049 = vmatprep.subr.bf16.mxu0 0
        %3050 = vmatpush1.bf16.msra.mxu0 0
        %3051 = vmatprep.subr.bf16.mxu0 0
        %3052 = vmatpush1.bf16.msra.mxu0 0
        %3053 = vmatprep.subr.bf16.mxu0 0
        %3054 = vmatpush1.bf16.msra.mxu0 0
        %3055 = vmatprep.mubr.bf16.mxu0 0
        %3056 = vmatmul.mubr.bf16.gmra.mrb[0].mxu0 %v3018
        %v3057 = vpop.f32.mrb[0].mxu0
        %v3058 = vadd.f32 0.0, %v3057
        %v3059 = vpop.f32.mrb[0].mxu0
        %v3060 = vpop.f32.mrb[0].mxu0
        %v3061 = vpop.f32.mrb[0].mxu0
        %3062 = vdwg.mxu0
        %v3064 = vsel %vm1230, %v2969, 0
        %v3067 = vsel %vm1472, %v2733, 0
        %3069 = vmatprep.subr.bf16.mxu0 0
        %3070 = vmatpush1.bf16.msra.mxu0 %v3067
        %3071 = vmatprep.subr.bf16.mxu0 0
        %3072 = vmatpush1.bf16.msra.mxu0 0
        %3073 = vmatprep.subr.bf16.mxu0 0
        %3074 = vmatpush1.bf16.msra.mxu0 0
        %3075 = vmatprep.subr.bf16.mxu0 0
        %3076 = vmatpush1.bf16.msra.mxu0 0
        %3077 = vmatprep.subr.bf16.mxu0 0
        %3078 = vmatpush1.bf16.msra.mxu0 0
        %3079 = vmatprep.subr.bf16.mxu0 0
        %3080 = vmatpush1.bf16.msra.mxu0 0
        %3081 = vmatprep.subr.bf16.mxu0 0
        %3082 = vmatpush1.bf16.msra.mxu0 0
        %3083 = vmatprep.subr.bf16.mxu0 0
        %3084 = vmatpush1.bf16.msra.mxu0 0
        %3085 = vmatprep.subr.bf16.mxu0 0
        %3086 = vmatpush1.bf16.msra.mxu0 0
        %3087 = vmatprep.subr.bf16.mxu0 0
        %3088 = vmatpush1.bf16.msra.mxu0 0
        %3089 = vmatprep.subr.bf16.mxu0 0
        %3090 = vmatpush1.bf16.msra.mxu0 0
        %3091 = vmatprep.subr.bf16.mxu0 0
        %3092 = vmatpush1.bf16.msra.mxu0 0
        %3093 = vmatprep.subr.bf16.mxu0 0
        %3094 = vmatpush1.bf16.msra.mxu0 0
        %3095 = vmatprep.subr.bf16.mxu0 0
        %3096 = vmatpush1.bf16.msra.mxu0 0
        %3097 = vmatprep.subr.bf16.mxu0 0
        %3098 = vmatpush1.bf16.msra.mxu0 0
        %3099 = vmatprep.subr.bf16.mxu0 0
        %3100 = vmatpush1.bf16.msra.mxu0 0
        %3101 = vmatprep.mubr.bf16.mxu0 0
        %3102 = vmatmul.mubr.bf16.gmra.mrb[0].mxu0 %v3064
        %v3103 = vpop.f32.mrb[0].mxu0
        %v3104 = vadd.f32 0.0, %v3103
        %v3105 = vpop.f32.mrb[0].mxu0
        %v3106 = vpop.f32.mrb[0].mxu0
        %v3107 = vpop.f32.mrb[0].mxu0
        %3108 = vdwg.mxu0
        %v3110 = vsel %vm1230, %v2970, 0
        %v3113 = vsel %vm1472, %v2734, 0
        %3115 = vmatprep.subr.bf16.mxu0 0
        %3116 = vmatpush1.bf16.msra.mxu0 %v3113
        %3117 = vmatprep.subr.bf16.mxu0 0
        %3118 = vmatpush1.bf16.msra.mxu0 0
        %3119 = vmatprep.subr.bf16.mxu0 0
        %3120 = vmatpush1.bf16.msra.mxu0 0
        %3121 = vmatprep.subr.bf16.mxu0 0
        %3122 = vmatpush1.bf16.msra.mxu0 0
        %3123 = vmatprep.subr.bf16.mxu0 0
        %3124 = vmatpush1.bf16.msra.mxu0 0
        %3125 = vmatprep.subr.bf16.mxu0 0
        %3126 = vmatpush1.bf16.msra.mxu0 0
        %3127 = vmatprep.subr.bf16.mxu0 0
        %3128 = vmatpush1.bf16.msra.mxu0 0
        %3129 = vmatprep.subr.bf16.mxu0 0
        %3130 = vmatpush1.bf16.msra.mxu0 0
        %3131 = vmatprep.subr.bf16.mxu0 0
        %3132 = vmatpush1.bf16.msra.mxu0 0
        %3133 = vmatprep.subr.bf16.mxu0 0
        %3134 = vmatpush1.bf16.msra.mxu0 0
        %3135 = vmatprep.subr.bf16.mxu0 0
        %3136 = vmatpush1.bf16.msra.mxu0 0
        %3137 = vmatprep.subr.bf16.mxu0 0
        %3138 = vmatpush1.bf16.msra.mxu0 0
        %3139 = vmatprep.subr.bf16.mxu0 0
        %3140 = vmatpush1.bf16.msra.mxu0 0
        %3141 = vmatprep.subr.bf16.mxu0 0
        %3142 = vmatpush1.bf16.msra.mxu0 0
        %3143 = vmatprep.subr.bf16.mxu0 0
        %3144 = vmatpush1.bf16.msra.mxu0 0
        %3145 = vmatprep.subr.bf16.mxu0 0
        %3146 = vmatpush1.bf16.msra.mxu0 0
        %3147 = vmatprep.mubr.bf16.mxu0 0
        %3148 = vmatmul.mubr.bf16.gmra.mrb[0].mxu0 %v3110
        %v3149 = vpop.f32.mrb[0].mxu0
        %v3150 = vadd.f32 0.0, %v3149
        %v3151 = vpop.f32.mrb[0].mxu0
        %v3152 = vpop.f32.mrb[0].mxu0
        %v3153 = vpop.f32.mrb[0].mxu0
        %3154 = vdwg.mxu0
        %v3155 = vcombine.low %v3012, %v3104
        %v3156 = vcombine.high %v3012, %v3104
        %v3158 = vunpack.c.l.s4 1983009808
        %v3159 = vunpack.c.0.s8 %v3158
        %v3160 = vlaneseq
        %v3161 = vshrl.u32 %v3160, 7
        %v3162 = vsub.s32 %v3159, %v3161
        %v3163 = vrot.slane %v3155, %v3162
        %v3165 = vunpack.c.l.s4 1983009808
        %v3166 = vunpack.c.0.s8 %v3165
        %v3167 = vlaneseq
        %v3168 = vshrl.u32 %v3167, 7
        %v3169 = vsub.s32 %v3166, %v3168
        %v3170 = vrot.slane %v3156, %v3169
        %v3171 = vcombine.low %v3058, %v3150
        %v3172 = vcombine.high %v3058, %v3150
        %v3174 = vunpack.c.l.s4 1983009808
        %v3175 = vunpack.c.0.s8 %v3174
        %v3176 = vlaneseq
        %v3177 = vshrl.u32 %v3176, 7
        %v3178 = vsub.s32 %v3175, %v3177
        %v3179 = vrot.slane %v3171, %v3178
        %v3181 = vunpack.c.l.s4 1983009808
        %v3182 = vunpack.c.0.s8 %v3181
        %v3183 = vlaneseq
        %v3184 = vshrl.u32 %v3183, 7
        %v3185 = vsub.s32 %v3182, %v3184
        %v3186 = vrot.slane %v3172, %v3185
        %v3187 = vcombine.low %v3163, %v3179
        %v3188 = vcombine.high %v3163, %v3179
        %v3190 = vunpack.c.l.s4 1934713408
        %v3191 = vunpack.c.0.s8 %v3190
        %v3192 = vlaneseq
        %v3193 = vshrl.u32 %v3192, 7
        %v3194 = vsub.s32 %v3191, %v3193
        %v3195 = vrot.slane %v3187, %v3194
        %v3197 = vunpack.c.l.s4 1934713408
        %v3198 = vunpack.c.0.s8 %v3197
        %v3199 = vlaneseq
        %v3200 = vshrl.u32 %v3199, 7
        %v3201 = vsub.s32 %v3198, %v3200
        %v3202 = vrot.slane %v3188, %v3201
        %v3203 = vcombine.low %v3170, %v3186
        %v3204 = vcombine.high %v3170, %v3186
        %v3206 = vunpack.c.l.s4 1934713408
        %v3207 = vunpack.c.0.s8 %v3206
        %v3208 = vlaneseq
        %v3209 = vshrl.u32 %v3208, 7
        %v3210 = vsub.s32 %v3207, %v3209
        %v3211 = vrot.slane %v3203, %v3210
        %v3213 = vunpack.c.l.s4 1934713408
        %v3214 = vunpack.c.0.s8 %v3213
        %v3215 = vlaneseq
        %v3216 = vshrl.u32 %v3215, 7
        %v3217 = vsub.s32 %v3214, %v3216
        %v3218 = vrot.slane %v3204, %v3217
        %v3219 = vcombine.high %v3195, 0.0
        %v3220 = vcombine.high %v3202, 0.0
        %v3221 = vcombine.high %v3211, 0.0
        %v3222 = vcombine.high %v3218, 0.0
        %v3223 = vcombine.low %v3195, %v3202
        %v3225 = vunpack.c.l.s4 1983009808
        %v3226 = vunpack.c.0.s8 %v3225
        %v3227 = vlaneseq
        %v3228 = vshrl.u32 %v3227, 7
        %v3229 = vsub.s32 %v3226, %v3228
        %v3230 = vrot.slane %v3223, %v3229
        %v3231 = vcombine.low %v3219, %v3220
        %v3233 = vunpack.c.l.s4 1983009808
        %v3234 = vunpack.c.0.s8 %v3233
        %v3235 = vlaneseq
        %v3236 = vshrl.u32 %v3235, 7
        %v3237 = vsub.s32 %v3234, %v3236
        %v3238 = vrot.slane %v3231, %v3237
        %v3239 = vcombine.low %v3211, %v3218
        %v3241 = vunpack.c.l.s4 1983009808
        %v3242 = vunpack.c.0.s8 %v3241
        %v3243 = vlaneseq
        %v3244 = vshrl.u32 %v3243, 7
        %v3245 = vsub.s32 %v3242, %v3244
        %v3246 = vrot.slane %v3239, %v3245
        %v3247 = vcombine.low %v3221, %v3222
        %v3249 = vunpack.c.l.s4 1983009808
        %v3250 = vunpack.c.0.s8 %v3249
        %v3251 = vlaneseq
        %v3252 = vshrl.u32 %v3251, 7
        %v3253 = vsub.s32 %v3250, %v3252
        %v3254 = vrot.slane %v3247, %v3253
        %v3255 = vcombine.low %v3230, %v3238
        %v3256 = vcombine.high %v3230, %v3238
        %v3258 = vunpack.c.l.s4 1934713408
        %v3259 = vunpack.c.0.s8 %v3258
        %v3260 = vlaneseq
        %v3261 = vshrl.u32 %v3260, 7
        %v3262 = vsub.s32 %v3259, %v3261
        %v3263 = vrot.slane %v3255, %v3262
        %v3265 = vunpack.c.l.s4 1934713408
        %v3266 = vunpack.c.0.s8 %v3265
        %v3267 = vlaneseq
        %v3268 = vshrl.u32 %v3267, 7
        %v3269 = vsub.s32 %v3266, %v3268
        %v3270 = vrot.slane %v3256, %v3269
        %v3271 = vcombine.low %v3246, %v3254
        %v3272 = vcombine.high %v3246, %v3254
        %v3274 = vunpack.c.l.s4 1934713408
        %v3275 = vunpack.c.0.s8 %v3274
        %v3276 = vlaneseq
        %v3277 = vshrl.u32 %v3276, 7
        %v3278 = vsub.s32 %v3275, %v3277
        %v3279 = vrot.slane %v3271, %v3278
        %v3281 = vunpack.c.l.s4 1934713408
        %v3282 = vunpack.c.0.s8 %v3281
        %v3283 = vlaneseq
        %v3284 = vshrl.u32 %v3283, 7
        %v3285 = vsub.s32 %v3282, %v3284
        %v3286 = vrot.slane %v3272, %v3285
        %v3287 = vcombine.low %v3263, %v3279
        %v3288 = vcombine.high %v3263, %v3279
        %v3289 = vcombine.low %v3270, %v3286
        %v3290 = vcombine.high %v3270, %v3286
        %3292 = vrot.lane.b32.xlu0 %v3288, 8
        %v3293 = vpop.permute.xlu0 %3292
        %3296 = vrot.lane.b32.xlu0 %v3289, 16
        %v3297 = vpop.permute.xlu0 %3296
        %3300 = vrot.lane.b32.xlu0 %v3290, 24
        %v3301 = vpop.permute.xlu0 %3300
        %v3303 = vsel %vm1230, %v3287, %v3293
        %v3304 = vsel %vm1803, %v3303, %v3297
        %v3305 = vsel %vm1805, %v3304, %v3301
        %v3306 = vpack.c.bf16 %v3305, %v3305
        %s3307 = scalar_lea.vmem %s6, 16
        %v3308 = vld [vmem:[%s3307] sm:$0xf]
        %v3309 = vld [vmem:[%s3307 + $0x4] sm:$0xf]
        %v3310 = vld [vmem:[%s3307 + $0x8] sm:$0xf]
        %v3311 = vld [vmem:[%s3307 + $0xc] sm:$0xf]
        %v3316 = vunpack.c.l.b16 %v3308
        %v3317 = vunpack.c.l.b16 %v3309
        %v3318 = vunpack.c.l.b16 %v3310
        %v3319 = vunpack.c.l.b16 %v3311
        %v3320 = vpack.c.b16 %v3317, %v3316
        %v3321 = vpack.c.b16 %v3319, %v3318
        %v3325 = vsel %vm579, %v3306, 0
        %3327 = vmatprep.subr.bf16.mxu0 0
        %3328 = vmatpush1.bf16.msra.mxu0 %v3320
        %3329 = vmatprep.subr.bf16.mxu0 0
        %3330 = vmatpush1.bf16.msra.mxu0 %v3321
        %3331 = vmatprep.subr.bf16.mxu0 0
        %3332 = vmatpush1.bf16.msra.mxu0 0
        %3333 = vmatprep.subr.bf16.mxu0 0
        %3334 = vmatpush1.bf16.msra.mxu0 0
        %3335 = vmatprep.subr.bf16.mxu0 0
        %3336 = vmatpush1.bf16.msra.mxu0 0
        %3337 = vmatprep.subr.bf16.mxu0 0
        %3338 = vmatpush1.bf16.msra.mxu0 0
        %3339 = vmatprep.subr.bf16.mxu0 0
        %3340 = vmatpush1.bf16.msra.mxu0 0
        %3341 = vmatprep.subr.bf16.mxu0 0
        %3342 = vmatpush1.bf16.msra.mxu0 0
        %3343 = vmatprep.subr.bf16.mxu0 0
        %3344 = vmatpush1.bf16.msra.mxu0 0
        %3345 = vmatprep.subr.bf16.mxu0 0
        %3346 = vmatpush1.bf16.msra.mxu0 0
        %3347 = vmatprep.subr.bf16.mxu0 0
        %3348 = vmatpush1.bf16.msra.mxu0 0
        %3349 = vmatprep.subr.bf16.mxu0 0
        %3350 = vmatpush1.bf16.msra.mxu0 0
        %3351 = vmatprep.subr.bf16.mxu0 0
        %3352 = vmatpush1.bf16.msra.mxu0 0
        %3353 = vmatprep.subr.bf16.mxu0 0
        %3354 = vmatpush1.bf16.msra.mxu0 0
        %3355 = vmatprep.subr.bf16.mxu0 0
        %3356 = vmatpush1.bf16.msra.mxu0 0
        %3357 = vmatprep.subr.bf16.mxu0 0
        %3358 = vmatpush1.bf16.msra.mxu0 0
        %3359 = vmatprep.mubr.bf16.mxu0 0
        %3360 = vmatmul.mubr.bf16.gmra.mrb[0].mxu0 %v3325
        %v3361 = vpop.f32.mrb[0].mxu0
        %v3362 = vadd.f32 0.0, %v3361
        %v3363 = vpop.f32.mrb[0].mxu0
        %v3364 = vpop.f32.mrb[0].mxu0
        %v3365 = vpop.f32.mrb[0].mxu0
        %3366 = vdwg.mxu0
        %v3367 = vadd.f32 %v2078, %v3362
        %s3368 = scalar_lea.vmem [#allocation8], 1
        %v3369 = vld [vmem:[%s3368] sm:$0x1]
        %s3370 = scalar_lea.vmem [#allocation10], 1
        %v3371 = vld [vmem:[%s3370] sm:$0x1]
        %v3372 = vsel %vm579, %v3367, 0.0
        %3373 = vadd.xlane.f32.xlu0 %v3372
        %v3374 = vpop.xlane.xlu0 %3373
        %v3375 = vmul.f32 %v3374, %v583
        %v3376 = vsub.f32 %v3367, %v3375
        %v3377 = vmul.f32 %v3376, %v3376
        %v3378 = vsel %vm579, %v3377, 0.0
        %3379 = vadd.xlane.f32.xlu0 %v3378
        %v3380 = vpop.xlane.xlu0 %3379
        %v3381 = vmul.f32 %v3380, %v583
        %v3382 = vadd.f32 %v3381, 1e-05
        %v3383 = vrsqrt.pop %v3382
        %v3384 = vmul.f32 %v3376, %v3383
        %v3386 = vlaneseq
        %v3387 = vshrl.u32 %v3386, 7
        %v3388 = vsub.s32 0, %v3387
        %v3389 = vrot.slane %v3369, %v3388
        %v3391 = vmul.f32 %v3384, %v3389
        %v3393 = vlaneseq
        %v3394 = vshrl.u32 %v3393, 7
        %v3395 = vsub.s32 0, %v3394
        %v3396 = vrot.slane %v3371, %v3395
        %v3398 = vadd.f32 %v3391, %v3396
        %v3399 = vpack.c.bf16 %v3398, %v3398
        %s3400 = scalar_lea.vmem %s9, 16
        %v3401 = vld [vmem:[%s3400] sm:$0xf]
        %v3402 = vld [vmem:[%s3400 + $0x4] sm:$0xf]
        %v3403 = vld [vmem:[%s3400 + $0x8] sm:$0xf]
        %v3404 = vld [vmem:[%s3400 + $0xc] sm:$0xf]
        %s3405 = scalar_lea.vmem [#allocation11], 1
        %v3406 = vld [vmem:[%s3405] sm:$0x1]
        %v3408 = vlaneseq
        %v3409 = vshrl.u32 %v3408, 7
        %v3410 = vsub.s32 0, %v3409
        %v3411 = vrot.slane %v3406, %v3410
        %v3417 = vunpack.c.l.b16 %v3401
        %v3418 = vunpack.c.l.b16 %v3402
        %v3419 = vunpack.c.l.b16 %v3403
        %v3420 = vunpack.c.l.b16 %v3404
        %v3421 = vpack.c.b16 %v3418, %v3417
        %v3422 = vpack.c.b16 %v3420, %v3419
        %v3426 = vsel %vm579, %v3399, 0
        %3428 = vmatprep.subr.bf16.mxu0 0
        %3429 = vmatpush1.bf16.msra.mxu0 %v3421
        %3430 = vmatprep.subr.bf16.mxu0 0
        %3431 = vmatpush1.bf16.msra.mxu0 %v3422
        %3432 = vmatprep.subr.bf16.mxu0 0
        %3433 = vmatpush1.bf16.msra.mxu0 0
        %3434 = vmatprep.subr.bf16.mxu0 0
        %3435 = vmatpush1.bf16.msra.mxu0 0
        %3436 = vmatprep.subr.bf16.mxu0 0
        %3437 = vmatpush1.bf16.msra.mxu0 0
        %3438 = vmatprep.subr.bf16.mxu0 0
        %3439 = vmatpush1.bf16.msra.mxu0 0
        %3440 = vmatprep.subr.bf16.mxu0 0
        %3441 = vmatpush1.bf16.msra.mxu0 0
        %3442 = vmatprep.subr.bf16.mxu0 0
        %3443 = vmatpush1.bf16.msra.mxu0 0
        %3444 = vmatprep.subr.bf16.mxu0 0
        %3445 = vmatpush1.bf16.msra.mxu0 0
        %3446 = vmatprep.subr.bf16.mxu0 0
        %3447 = vmatpush1.bf16.msra.mxu0 0
        %3448 = vmatprep.subr.bf16.mxu0 0
        %3449 = vmatpush1.bf16.msra.mxu0 0
        %3450 = vmatprep.subr.bf16.mxu0 0
        %3451 = vmatpush1.bf16.msra.mxu0 0
        %3452 = vmatprep.subr.bf16.mxu0 0
        %3453 = vmatpush1.bf16.msra.mxu0 0
        %3454 = vmatprep.subr.bf16.mxu0 0
        %3455 = vmatpush1.bf16.msra.mxu0 0
        %3456 = vmatprep.subr.bf16.mxu0 0
        %3457 = vmatpush1.bf16.msra.mxu0 0
        %3458 = vmatprep.subr.bf16.mxu0 0
        %3459 = vmatpush1.bf16.msra.mxu0 0
        %3460 = vmatprep.mubr.bf16.mxu0 0
        %3461 = vmatmul.mubr.bf16.gmra.mrb[0].mxu0 %v3426
        %v3462 = vpop.f32.mrb[0].mxu0
        %v3463 = vadd.f32 %v3411, %v3462
        %v3464 = vpop.f32.mrb[0].mxu0
        %v3465 = vpop.f32.mrb[0].mxu0
        %v3466 = vpop.f32.mrb[0].mxu0
        %3467 = vdwg.mxu0
        %v3468 = vmax.f32 %v3463, 0.0
        %v3469 = vpack.c.bf16 %v3468, %v3468
        %s3470 = scalar_lea.vmem %s11, 64
        %v3471 = vld [vmem:[%s3470] sm:$0xf]
        %v3472 = vld [vmem:[%s3470 + $0x4] sm:$0xf]
        %v3473 = vld [vmem:[%s3470 + $0x8] sm:$0xf]
        %v3474 = vld [vmem:[%s3470 + $0xc] sm:$0xf]
        %v3475 = vld [vmem:[%s3470 + $0x10] sm:$0xf]
        %v3476 = vld [vmem:[%s3470 + $0x14] sm:$0xf]
        %v3477 = vld [vmem:[%s3470 + $0x18] sm:$0xf]
        %v3478 = vld [vmem:[%s3470 + $0x1c] sm:$0xf]
        %v3479 = vld [vmem:[%s3470 + $0x20] sm:$0xf]
        %v3480 = vld [vmem:[%s3470 + $0x24] sm:$0xf]
        %v3481 = vld [vmem:[%s3470 + $0x28] sm:$0xf]
        %v3482 = vld [vmem:[%s3470 + $0x2c] sm:$0xf]
        %v3483 = vld [vmem:[%s3470 + $0x30] sm:$0xf]
        %v3484 = vld [vmem:[%s3470 + $0x34] sm:$0xf]
        %v3485 = vld [vmem:[%s3470 + $0x38] sm:$0xf]
        %v3486 = vld [vmem:[%s3470 + $0x3c] sm:$0xf]
        %v3503 = vunpack.c.l.b16 %v3471
        %v3504 = vunpack.c.l.b16 %v3472
        %v3505 = vunpack.c.l.b16 %v3473
        %v3506 = vunpack.c.l.b16 %v3474
        %v3507 = vunpack.c.l.b16 %v3475
        %v3508 = vunpack.c.l.b16 %v3476
        %v3509 = vunpack.c.l.b16 %v3477
        %v3510 = vunpack.c.l.b16 %v3478
        %v3511 = vunpack.c.l.b16 %v3479
        %v3512 = vunpack.c.l.b16 %v3480
        %v3513 = vunpack.c.l.b16 %v3481
        %v3514 = vunpack.c.l.b16 %v3482
        %v3515 = vunpack.c.l.b16 %v3483
        %v3516 = vunpack.c.l.b16 %v3484
        %v3517 = vunpack.c.l.b16 %v3485
        %v3518 = vunpack.c.l.b16 %v3486
        %v3519 = vpack.c.b16 %v3504, %v3503
        %v3520 = vpack.c.b16 %v3506, %v3505
        %v3521 = vpack.c.b16 %v3508, %v3507
        %v3522 = vpack.c.b16 %v3510, %v3509
        %v3523 = vpack.c.b16 %v3512, %v3511
        %v3524 = vpack.c.b16 %v3514, %v3513
        %v3525 = vpack.c.b16 %v3516, %v3515
        %v3526 = vpack.c.b16 %v3518, %v3517
        %3535 = vmatprep.subr.bf16.mxu0 0
        %3536 = vmatpush1.bf16.msra.mxu0 %v3519
        %3537 = vmatprep.subr.bf16.mxu0 0
        %3538 = vmatpush1.bf16.msra.mxu0 %v3520
        %3539 = vmatprep.subr.bf16.mxu0 0
        %3540 = vmatpush1.bf16.msra.mxu0 %v3521
        %3541 = vmatprep.subr.bf16.mxu0 0
        %3542 = vmatpush1.bf16.msra.mxu0 %v3522
        %3543 = vmatprep.subr.bf16.mxu0 0
        %3544 = vmatpush1.bf16.msra.mxu0 %v3523
        %3545 = vmatprep.subr.bf16.mxu0 0
        %3546 = vmatpush1.bf16.msra.mxu0 %v3524
        %3547 = vmatprep.subr.bf16.mxu0 0
        %3548 = vmatpush1.bf16.msra.mxu0 %v3525
        %3549 = vmatprep.subr.bf16.mxu0 0
        %3550 = vmatpush1.bf16.msra.mxu0 %v3526
        %3551 = vmatprep.subr.bf16.mxu0 0
        %3552 = vmatpush1.bf16.msra.mxu0 0
        %3553 = vmatprep.subr.bf16.mxu0 0
        %3554 = vmatpush1.bf16.msra.mxu0 0
        %3555 = vmatprep.subr.bf16.mxu0 0
        %3556 = vmatpush1.bf16.msra.mxu0 0
        %3557 = vmatprep.subr.bf16.mxu0 0
        %3558 = vmatpush1.bf16.msra.mxu0 0
        %3559 = vmatprep.subr.bf16.mxu0 0
        %3560 = vmatpush1.bf16.msra.mxu0 0
        %3561 = vmatprep.subr.bf16.mxu0 0
        %3562 = vmatpush1.bf16.msra.mxu0 0
        %3563 = vmatprep.subr.bf16.mxu0 0
        %3564 = vmatpush1.bf16.msra.mxu0 0
        %3565 = vmatprep.subr.bf16.mxu0 0
        %3566 = vmatpush1.bf16.msra.mxu0 0
        %3567 = vmatprep.mubr.bf16.mxu0 0
        %3568 = vmatmul.mubr.bf16.gmra.mrb[0].mxu0 %v3469
        %v3569 = vpop.f32.mrb[0].mxu0
        %v3570 = vadd.f32 0.0, %v3569
        %v3571 = vpop.f32.mrb[0].mxu0
        %v3572 = vpop.f32.mrb[0].mxu0
        %v3573 = vpop.f32.mrb[0].mxu0
        %3574 = vdwg.mxu0
        %v3575 = vadd.f32 %v3367, %v3570
        %s3576 = scalar_lea.vmem [#allocation13], 1
        %v3577 = vld [vmem:[%s3576] sm:$0x1]
        %v3579 = vlaneseq
        %v3580 = vshrl.u32 %v3579, 7
        %v3581 = vsub.s32 0, %v3580
        %v3582 = vrot.slane %v3577, %v3581
        %v3584 = vadd.f32 %v3575, %v3582
        %v3585 = vpack.c.bf16 %v3584, %v3584
        %v3586 = vld [vmem:[%s13] sm:$0xf]
        %v3587 = vld [vmem:[%s13 + $0x4] sm:$0xf]
        %v3588 = vld [vmem:[%s13 + $0x8] sm:$0xf]
        %v3589 = vld [vmem:[%s13 + $0xc] sm:$0xf]
        %v3594 = vunpack.c.l.b16 %v3586
        %v3595 = vunpack.c.l.b16 %v3587
        %v3596 = vunpack.c.l.b16 %v3588
        %v3597 = vunpack.c.l.b16 %v3589
        %v3598 = vpack.c.b16 %v3595, %v3594
        %v3599 = vpack.c.b16 %v3597, %v3596
        %v3603 = vsel %vm579, %v3585, 0
        %3605 = vmatprep.subr.bf16.mxu0 0
        %3606 = vmatpush1.bf16.msra.mxu0 %v3598
        %3607 = vmatprep.subr.bf16.mxu0 0
        %3608 = vmatpush1.bf16.msra.mxu0 %v3599
        %3609 = vmatprep.subr.bf16.mxu0 0
        %3610 = vmatpush1.bf16.msra.mxu0 0
        %3611 = vmatprep.subr.bf16.mxu0 0
        %3612 = vmatpush1.bf16.msra.mxu0 0
        %3613 = vmatprep.subr.bf16.mxu0 0
        %3614 = vmatpush1.bf16.msra.mxu0 0
        %3615 = vmatprep.subr.bf16.mxu0 0
        %3616 = vmatpush1.bf16.msra.mxu0 0
        %3617 = vmatprep.subr.bf16.mxu0 0
        %3618 = vmatpush1.bf16.msra.mxu0 0
        %3619 = vmatprep.subr.bf16.mxu0 0
        %3620 = vmatpush1.bf16.msra.mxu0 0
        %3621 = vmatprep.subr.bf16.mxu0 0
        %3622 = vmatpush1.bf16.msra.mxu0 0
        %3623 = vmatprep.subr.bf16.mxu0 0
        %3624 = vmatpush1.bf16.msra.mxu0 0
        %3625 = vmatprep.subr.bf16.mxu0 0
        %3626 = vmatpush1.bf16.msra.mxu0 0
        %3627 = vmatprep.subr.bf16.mxu0 0
        %3628 = vmatpush1.bf16.msra.mxu0 0
        %3629 = vmatprep.subr.bf16.mxu0 0
        %3630 = vmatpush1.bf16.msra.mxu0 0
        %3631 = vmatprep.subr.bf16.mxu0 0
        %3632 = vmatpush1.bf16.msra.mxu0 0
        %3633 = vmatprep.subr.bf16.mxu0 0
        %3634 = vmatpush1.bf16.msra.mxu0 0
        %3635 = vmatprep.subr.bf16.mxu0 0
        %3636 = vmatpush1.bf16.msra.mxu0 0
        %3637 = vmatprep.mubr.bf16.mxu0 0
        %3638 = vmatmul.mubr.bf16.gmra.mrb[0].mxu0 %v3603
        %v3639 = vpop.f32.mrb[0].mxu0
        %v3640 = vadd.f32 0.0, %v3639
        %v3641 = vpop.f32.mrb[0].mxu0
        %v3642 = vpop.f32.mrb[0].mxu0
        %v3643 = vpop.f32.mrb[0].mxu0
        %3644 = vdwg.mxu0
        %3645 = vst [vmem:[%s569] sm:$0xff] %v3640
        %s3646 = sand.u32 %s341, 1
        %s3647 = scalar_lea.sflag [#allocation4], %s3646
        %s3648 = sand.u32 %s341, 1
        %s3649 = smul.addr %s3648, 8
        %s3650 = scalar_lea.vmem [#allocation14], %s3649
        // Predicated region
        $region105: #{tpu_custom_call.1} parent=75 // pred_check
          %p3651 = pneg %p351
        $region106: #{tpu_custom_call.1} parent=75 // pred_check_branch
          %3653 = sbr.rel (%p3651) target = $region108
        $region107: #{tpu_custom_call.1} parent=75 // pred_region
          %s3655 = ssub.s32 128, 128
          %3656 = vsyncadd %s3647, %s3655
          %s3657 = smul.addr %s34, 128
          %s3658 = scalar_lea.hbm %s14, %s3657
          %s3660 = sshll.u32 %s3650, 4
          %s3661 = int_to_ptr.vmem [resolvable:$true] %s3660
          %3663 = dma.vmem_to_hbm [thread:$0]  %s3661, 128, %s3658, %s3647
        $region108: #{tpu_custom_call.1} parent=75 // pred_fallthru
          _
      $region76: #{tpu_custom_call.1} parent=5 // pred_fallthru
        _
      %p3664 = scmp.le.s32.totalorder 2, %s29
      // Predicated region
      $region109: #{tpu_custom_call.1} parent=5 // pred_check
        %p3665 = pneg %p3664
      $region110: #{tpu_custom_call.1} parent=5 // pred_check_branch
        %3667 = sbr.rel (%p3665) target = $region112
      $region111: #{tpu_custom_call.1} parent=5 // pred_region
        %s3668 = ssub.s32 %s29, 2
        // Predicated region
        $region113: #{tpu_custom_call.1} parent=111 // pred_check
          %p3669 = pneg %p357
        $region114: #{tpu_custom_call.1} parent=111 // pred_check_branch
          %3671 = sbr.rel (%p3669) target = $region116
        $region115: #{tpu_custom_call.1} parent=111 // pred_region
          %s3672 = sand.u32 %s342, 1
          %s3673 = scalar_lea.sflag [#allocation4], %s3672
          %s3674 = sand.u32 %s342, 1
          %s3675 = smul.addr %s3674, 8
          %s3676 = scalar_lea.vmem [#allocation14], %s3675
          %3677 = dma.done %s3673, 128
        $region116: #{tpu_custom_call.1} parent=111 // pred_fallthru
          _
      $region112: #{tpu_custom_call.1} parent=5 // pred_fallthru
        _
    $region6: #{tpu_custom_call.1} parent=1 // loop_footer
      %s33 = sadd.s32 1, %s29
    $region7: #{tpu_custom_call.1} parent=1 // loop_footer_branch
      %28 = sbr.rel target = $region3
    $region8: #{tpu_custom_call.1} parent=1 // loop_exit
      _
    %3678 = vsyncpa [#allocation3], 1
    %s3679 = scalar_lea.sflag [#allocation3], 1
    %3680 = vsyncpa %s3679, 1
    %3681 = vsyncpa [#allocation6], 1
    %3682 = vsyncpa [#allocation9], 1
    %3683 = vsyncpa [#allocation12], 1
    %3684 = vsyncpa [#allocation4], 1
    %s3685 = scalar_lea.sflag [#allocation4], 1
    %3686 = vsyncpa %s3685, 1

</llo_original>
